<compile_context>
chip_gen: v7x
topology: tpu7x:2x2x1
jax: 0.10.0
libtpu: 0.0.40
codegen_flags: <defaults>
</compile_context>

<pallas_src>
import functools

import jax
import jax.numpy as jnp
from jax import lax
from jax.experimental import pallas as pl
from jax.experimental.pallas import tpu as pltpu


def _actor_kernel(num_layers, hidden_size, *refs):
    # refs (inputs): xproj (T, Bb, 4H)  = (x*mask_in) @ W_ih0^T + b0, time-major
    #                whh0_T (H, 4H)
    #                [wih_T (H,4H), whh_T (H,4H), b (1,4H)] * (num_layers - 1)
    #                mask_last (Bb, H)  = mask_out[:, -1, :]
    #                w2_T (H, C), b2 (1, C)
    # refs (outputs): prob (Bb, C), logits (Bb, C)
    xproj_ref = refs[0]
    whh0_ref = refs[1]
    idx = 2
    upper = []
    for _ in range(num_layers - 1):
        upper.append(refs[idx:idx + 3])
        idx += 3
    mask_ref = refs[idx]
    w2_ref = refs[idx + 1]
    b2_ref = refs[idx + 2]
    prob_ref = refs[idx + 3]
    out_ref = refs[idx + 4]

    H = hidden_size
    T, B, _ = xproj_ref.shape

    # Hoist weights into vregs once; they are reused by every unrolled step.
    whh0 = whh0_ref[...]
    upper_w = [(w[...], u[...], b[...]) for (w, u, b) in upper]

    def _sigmoid(x):
        # One EUP transcendental instead of exp + reciprocal.
        return 0.5 * jnp.tanh(0.5 * x) + 0.5

    def _cell(gates, c_prev):
        # Gate order i, f, g, o (torch.nn.LSTM).
        i_g = _sigmoid(gates[:, 0:H])
        f_g = _sigmoid(gates[:, H:2 * H])
        g_g = jnp.tanh(gates[:, 2 * H:3 * H])
        o_g = _sigmoid(gates[:, 3 * H:4 * H])
        c_new = f_g * c_prev + i_g * g_g
        h_new = o_g * jnp.tanh(c_new)
        return h_new, c_new

    def step(t, carry):
        new_carry = []
        # Layer 0: input projection (incl. combined bias) was precomputed.
        h, c = carry[0], carry[1]
        gates = xproj_ref[t] + jnp.dot(h, whh0,
                                       preferred_element_type=jnp.float32)
        h, c = _cell(gates, c)
        new_carry += [h, c]
        x = h
        # Remaining layers fused into the same timestep.
        for l in range(num_layers - 1):
            wih, whh, b = upper_w[l]
            h, c = carry[2 * (l + 1)], carry[2 * (l + 1) + 1]
            gates = (jnp.dot(x, wih, preferred_element_type=jnp.float32)
                     + jnp.dot(h, whh, preferred_element_type=jnp.float32)
                     + b)
            h, c = _cell(gates, c)
            new_carry += [h, c]
            x = h
        return tuple(new_carry)

    init = tuple(jnp.zeros((B, H), jnp.float32) for _ in range(2 * num_layers))
    final = lax.fori_loop(0, T, step, init, unroll=True)

    # share_layer output: last layer, last timestep, masked.
    h_last = final[2 * (num_layers - 1)] * mask_ref[...]            # (B, H)

    # linear2 + softmax head.
    logits = (jnp.dot(h_last, w2_ref[...],
                      preferred_element_type=jnp.float32) + b2_ref[...])
    out_ref[...] = logits
    m = jnp.max(logits, axis=1, keepdims=True)
    e = jnp.exp(logits - m)
    # Exact normalization (tiny head; approx reciprocal broke sum(prob)==1).
    prob_ref[...] = e / jnp.sum(e, axis=1, keepdims=True)


def _pick_batch_block(batch):
    # Shard large batches across TensorCores via a parallel grid (v7x has 2).
    for cand in (256, 128, 64, 32, 16, 8):
        if batch % cand == 0:
            return cand
    return batch


def actor_forward(x, mask_in, mask_out, params):
    """Actor_ forward.  x, mask_in: (B, T); mask_out: (B, T, H).

    Returns (prob, logits), each (B, outputs).
    """
    B, T = x.shape
    L = len(params["whh_T"])
    H = params["whh_T"][0].shape[0]
    C = params["w2_T"].shape[1]
    H4 = 4 * H
    # The share-layer LSTM assumes input_size == 1 (x reshaped to (B, T, 1)).
    assert params["wih_T"][0].shape == (1, H4), "share layer expects input_size == 1"

    # ---- wrapper-side prep (free relative to the kernel) -------------------
    x_masked = x.astype(jnp.float32) * mask_in.astype(jnp.float32)     # (B, T)
    wih0_row = params["wih_T"][0][0]                                    # (4H,)
    b0 = params["b"][0][0]                                              # (4H,)
    # Layer-0 projection as an outer product, time-major & lane-dense.
    xproj = (x_masked.T[:, :, None] * wih0_row[None, None, :]
             + b0[None, None, :]).astype(jnp.float32)                   # (T,B,4H)
    mask_last = mask_out[:, -1, :].astype(jnp.float32)                  # (B, H)

    inputs = [xproj, params["whh_T"][0]]
    for l in range(1, L):
        inputs += [params["wih_T"][l], params["whh_T"][l], params["b"][l]]
    inputs += [mask_last, params["w2_T"], params["b2"]]

    # ---- grid / specs ------------------------------------------------------
    bb = _pick_batch_block(B)
    grid = (B // bb,)

    in_specs = [pl.BlockSpec((T, bb, H4), lambda i: (0, i, 0)),
                pl.BlockSpec((H, H4), lambda i: (0, 0))]
    for _ in range(L - 1):
        in_specs += [pl.BlockSpec((H, H4), lambda i: (0, 0)),
                     pl.BlockSpec((H, H4), lambda i: (0, 0)),
                     pl.BlockSpec((1, H4), lambda i: (0, 0))]
    in_specs += [pl.BlockSpec((bb, H), lambda i: (i, 0)),
                 pl.BlockSpec((H, C), lambda i: (0, 0)),
                 pl.BlockSpec((1, C), lambda i: (0, 0))]
    out_specs = (pl.BlockSpec((bb, C), lambda i: (i, 0)),
                 pl.BlockSpec((bb, C), lambda i: (i, 0)))

    kernel = functools.partial(_actor_kernel, L, H)
    prob, logits = pl.pallas_call(
        kernel,
        grid=grid,
        in_specs=in_specs,
        out_specs=out_specs,
        out_shape=(jax.ShapeDtypeStruct((B, C), jnp.float32),
                   jax.ShapeDtypeStruct((B, C), jnp.float32)),
        compiler_params=pltpu.CompilerParams(
            dimension_semantics=("parallel",)),
    )(*inputs)
    return prob, logits


def actor_reference(x, mask_in, mask_out, params):
    """Pure-JAX reference (torch nn.LSTM + Linear + softmax semantics)."""
    B, T = x.shape
    H = params["whh_T"][0].shape[0]
    inp = (x.reshape(B, T, 1) * mask_in.reshape(B, T, 1)).astype(jnp.float32)
    for layer in range(len(params["whh_T"])):
        wih_t = params["wih_T"][layer]
        whh_t = params["whh_T"][layer]
        b = params["b"][layer]

        def step(carry, x_t, wih_t=wih_t, whh_t=whh_t, b=b):
            h, c = carry
            gates = x_t @ wih_t + h @ whh_t + b
            i = jax.nn.sigmoid(gates[:, :H])
            f = jax.nn.sigmoid(gates[:, H:2 * H])
            g = jnp.tanh(gates[:, 2 * H:3 * H])
            o = jax.nn.sigmoid(gates[:, 3 * H:])
            c = f * c + i * g
            h = o * jnp.tanh(c)
            return (h, c), h

        h0 = jnp.zeros((B, H), jnp.float32)
        c0 = jnp.zeros((B, H), jnp.float32)
        _, hs = lax.scan(step, (h0, c0), jnp.transpose(inp, (1, 0, 2)))
        inp = jnp.transpose(hs, (1, 0, 2))
    feats = (inp * mask_out.reshape(B, T, H))[:, -1, :]
    logits = feats @ params["w2_T"] + params["b2"]
    prob = jax.nn.softmax(logits, axis=1)
    return prob, logits


def init_params(key, input_size, hidden_size, num_layers, num_classes):
    """Deterministic synthetic params (torch default: U(-1/sqrt(H), 1/sqrt(H)))."""
    k = 1.0 / jnp.sqrt(jnp.float32(hidden_size))
    params = {"wih_T": [], "whh_T": [], "b": []}
    for layer in range(num_layers):
        in_feat = input_size if layer == 0 else hidden_size
        key, k1, k2, k3, k4 = jax.random.split(key, 5)
        w_ih = jax.random.uniform(k1, (4 * hidden_size, in_feat),
                                  jnp.float32, -k, k)
        w_hh = jax.random.uniform(k2, (4 * hidden_size, hidden_size),
                                  jnp.float32, -k, k)
        b_ih = jax.random.uniform(k3, (4 * hidden_size,), jnp.float32, -k, k)
        b_hh = jax.random.uniform(k4, (4 * hidden_size,), jnp.float32, -k, k)
        params["wih_T"].append(w_ih.T)                      # (in, 4H)
        params["whh_T"].append(w_hh.T)                      # (H, 4H)
        params["b"].append((b_ih + b_hh).reshape(1, -1))    # (1, 4H)
    key, k5, k6 = jax.random.split(key, 3)
    w2 = jax.random.uniform(k5, (num_classes, hidden_size), jnp.float32, -k, k)
    b2 = jax.random.uniform(k6, (num_classes,), jnp.float32, -k, k)
    params["w2_T"] = w2.T                                   # (H, C)
    params["b2"] = b2.reshape(1, -1)                        # (1, C)
    return params


if __name__ == "__main__":
    B, T = 2, 8                 # batch, sequence length
    INPUT_SIZE = 1              # share layer reshapes x to (B, T, 1)
    H = 32                      # hidden size
    L = 2                       # num LSTM layers in the share layer
    C = 4                       # Actor_ outputs

    key = jax.random.PRNGKey(0)
    key, kx, kmi, kmo = jax.random.split(key, 4)

    x = jax.random.normal(kx, (B, T), jnp.float32)
    mask_in = jax.random.bernoulli(kmi, 0.8, (B, T)).astype(jnp.float32)
    mask_out = jax.random.bernoulli(kmo, 0.8, (B, T, H)).astype(jnp.float32)

    params = init_params(key, INPUT_SIZE, H, L, C)

    prob, logits = actor_forward(x, mask_in, mask_out, params)
    prob = jax.block_until_ready(prob)
    logits = jax.block_until_ready(logits)

    prob_ref, logits_ref = actor_reference(x, mask_in, mask_out, params)
    assert prob.shape == (B, C) and logits.shape == (B, C)
    assert jnp.allclose(logits, logits_ref, atol=2e-3, rtol=2e-3), (logits, logits_ref)
    assert jnp.allclose(prob, prob_ref, atol=2e-3, rtol=2e-3), (prob, prob_ref)
    assert jnp.allclose(jnp.sum(prob, axis=1), 1.0, atol=1e-3)

    print("KERNEL_OK")
</pallas_src>

<mosaic_0001>
module attributes {stable_mosaic.version = 11 : i64} {
  func.func @_actor_kernel(%arg0: i32, %arg1: memref<8x2x128xf32, #tpu.memory_space<vmem>>, %arg2: memref<32x128xf32, #tpu.memory_space<vmem>>, %arg3: memref<32x128xf32, #tpu.memory_space<vmem>>, %arg4: memref<32x128xf32, #tpu.memory_space<vmem>>, %arg5: memref<1x128xf32, #tpu.memory_space<vmem>>, %arg6: memref<2x32xf32, #tpu.memory_space<vmem>>, %arg7: memref<32x4xf32, #tpu.memory_space<vmem>>, %arg8: memref<1x4xf32, #tpu.memory_space<vmem>>, %arg9: memref<2x4xf32, #tpu.memory_space<vmem>>, %arg10: memref<2x4xf32, #tpu.memory_space<vmem>>) attributes {dimension_semantics = [#tpu.dimension_semantics<parallel>], iteration_bounds = array<i64: 1>, scalar_prefetch = 0 : i64, scratch_operands = 0 : i64, tpu.core_type = #tpu.core_type<tc>, window_params = [{transform_indices = @transform_0, window_bounds = array<i64: 8, 2, 128>}, {pipeline_mode = #tpu.pipeline_mode<synchronous>, transform_indices = @transform_1, window_bounds = array<i64: 32, 128>}, {pipeline_mode = #tpu.pipeline_mode<synchronous>, transform_indices = @transform_2, window_bounds = array<i64: 32, 128>}, {pipeline_mode = #tpu.pipeline_mode<synchronous>, transform_indices = @transform_3, window_bounds = array<i64: 32, 128>}, {pipeline_mode = #tpu.pipeline_mode<synchronous>, transform_indices = @transform_4, window_bounds = array<i64: 1, 128>}, {transform_indices = @transform_5, window_bounds = array<i64: 2, 32>}, {pipeline_mode = #tpu.pipeline_mode<synchronous>, transform_indices = @transform_6, window_bounds = array<i64: 32, 4>}, {pipeline_mode = #tpu.pipeline_mode<synchronous>, transform_indices = @transform_7, window_bounds = array<i64: 1, 4>}, {transform_indices = @transform_8, window_bounds = array<i64: 2, 4>}, {transform_indices = @transform_9, window_bounds = array<i64: 2, 4>}]} {
    %c0 = arith.constant 0 : index
    %c0_0 = arith.constant 0 : index
    %0 = vector.load %arg2[%c0, %c0_0] : memref<32x128xf32, #tpu.memory_space<vmem>>, vector<32x128xf32>
    %c0_1 = arith.constant 0 : index
    %c0_2 = arith.constant 0 : index
    %1 = vector.load %arg3[%c0_1, %c0_2] : memref<32x128xf32, #tpu.memory_space<vmem>>, vector<32x128xf32>
    %c0_3 = arith.constant 0 : index
    %c0_4 = arith.constant 0 : index
    %2 = vector.load %arg4[%c0_3, %c0_4] : memref<32x128xf32, #tpu.memory_space<vmem>>, vector<32x128xf32>
    %c0_5 = arith.constant 0 : index
    %c0_6 = arith.constant 0 : index
    %3 = vector.load %arg5[%c0_5, %c0_6] : memref<1x128xf32, #tpu.memory_space<vmem>>, vector<1x128xf32>
    %cst = arith.constant 0.000000e+00 : f32
    %4 = vector.broadcast %cst : f32 to vector<2x32xf32>
    %cst_7 = arith.constant 0.000000e+00 : f32
    %5 = vector.broadcast %cst_7 : f32 to vector<2x32xf32>
    %cst_8 = arith.constant 0.000000e+00 : f32
    %6 = vector.broadcast %cst_8 : f32 to vector<2x32xf32>
    %cst_9 = arith.constant 0.000000e+00 : f32
    %7 = vector.broadcast %cst_9 : f32 to vector<2x32xf32>
    %c0_i32 = arith.constant 0 : i32
    %8 = arith.index_cast %c0_i32 : i32 to index
    %c0_10 = arith.constant 0 : index
    %c0_11 = arith.constant 0 : index
    %9 = vector.load %arg1[%8, %c0_10, %c0_11] : memref<8x2x128xf32, #tpu.memory_space<vmem>>, vector<1x2x128xf32>
    %10 = vector.shape_cast %9 : vector<1x2x128xf32> to vector<2x128xf32>
    %cst_12 = arith.constant dense<0.000000e+00> : vector<2x128xf32>
    %11 = tpu.matmul %4, %0, %cst_12 {dimension_numbers = #tpu.dot_dimension_numbers<[1], [0], [0], [1], [0, 0, 1, 1], [], []>} : vector<2x32xf32>, vector<32x128xf32>, vector<2x128xf32> -> vector<2x128xf32>
    %12 = arith.addf %10, %11 : vector<2x128xf32>
    %13 = vector.extract_strided_slice %12 {offsets = [0, 0], sizes = [2, 32], strides = [1, 1]} : vector<2x128xf32> to vector<2x32xf32>
    %cst_13 = arith.constant 5.000000e-01 : f32
    %14 = vector.broadcast %cst_13 : f32 to vector<2x32xf32>
    %15 = arith.mulf %14, %13 : vector<2x32xf32>
    %16 = math.tanh %15 : vector<2x32xf32>
    %cst_14 = arith.constant 5.000000e-01 : f32
    %17 = vector.broadcast %cst_14 : f32 to vector<2x32xf32>
    %18 = arith.mulf %17, %16 : vector<2x32xf32>
    %cst_15 = arith.constant 5.000000e-01 : f32
    %19 = vector.broadcast %cst_15 : f32 to vector<2x32xf32>
    %20 = arith.addf %18, %19 : vector<2x32xf32>
    %21 = vector.extract_strided_slice %12 {offsets = [0, 32], sizes = [2, 32], strides = [1, 1]} : vector<2x128xf32> to vector<2x32xf32>
    %cst_16 = arith.constant 5.000000e-01 : f32
    %22 = vector.broadcast %cst_16 : f32 to vector<2x32xf32>
    %23 = arith.mulf %22, %21 : vector<2x32xf32>
    %24 = math.tanh %23 : vector<2x32xf32>
    %cst_17 = arith.constant 5.000000e-01 : f32
    %25 = vector.broadcast %cst_17 : f32 to vector<2x32xf32>
    %26 = arith.mulf %25, %24 : vector<2x32xf32>
    %cst_18 = arith.constant 5.000000e-01 : f32
    %27 = vector.broadcast %cst_18 : f32 to vector<2x32xf32>
    %28 = arith.addf %26, %27 : vector<2x32xf32>
    %29 = vector.extract_strided_slice %12 {offsets = [0, 64], sizes = [2, 32], strides = [1, 1]} : vector<2x128xf32> to vector<2x32xf32>
    %30 = math.tanh %29 : vector<2x32xf32>
    %31 = vector.extract_strided_slice %12 {offsets = [0, 96], sizes = [2, 32], strides = [1, 1]} : vector<2x128xf32> to vector<2x32xf32>
    %cst_19 = arith.constant 5.000000e-01 : f32
    %32 = vector.broadcast %cst_19 : f32 to vector<2x32xf32>
    %33 = arith.mulf %32, %31 : vector<2x32xf32>
    %34 = math.tanh %33 : vector<2x32xf32>
    %cst_20 = arith.constant 5.000000e-01 : f32
    %35 = vector.broadcast %cst_20 : f32 to vector<2x32xf32>
    %36 = arith.mulf %35, %34 : vector<2x32xf32>
    %cst_21 = arith.constant 5.000000e-01 : f32
    %37 = vector.broadcast %cst_21 : f32 to vector<2x32xf32>
    %38 = arith.addf %36, %37 : vector<2x32xf32>
    %39 = arith.mulf %28, %5 : vector<2x32xf32>
    %40 = arith.mulf %20, %30 : vector<2x32xf32>
    %41 = arith.addf %39, %40 : vector<2x32xf32>
    %42 = math.tanh %41 : vector<2x32xf32>
    %43 = arith.mulf %38, %42 : vector<2x32xf32>
    %cst_22 = arith.constant dense<0.000000e+00> : vector<2x128xf32>
    %44 = tpu.matmul %43, %1, %cst_22 {dimension_numbers = #tpu.dot_dimension_numbers<[1], [0], [0], [1], [0, 0, 1, 1], [], []>} : vector<2x32xf32>, vector<32x128xf32>, vector<2x128xf32> -> vector<2x128xf32>
    %cst_23 = arith.constant dense<0.000000e+00> : vector<2x128xf32>
    %45 = tpu.matmul %6, %2, %cst_23 {dimension_numbers = #tpu.dot_dimension_numbers<[1], [0], [0], [1], [0, 0, 1, 1], [], []>} : vector<2x32xf32>, vector<32x128xf32>, vector<2x128xf32> -> vector<2x128xf32>
    %46 = arith.addf %44, %45 : vector<2x128xf32>
    %47 = vector.broadcast %3 : vector<1x128xf32> to vector<2x128xf32>
    %48 = arith.addf %46, %47 : vector<2x128xf32>
    %49 = vector.extract_strided_slice %48 {offsets = [0, 0], sizes = [2, 32], strides = [1, 1]} : vector<2x128xf32> to vector<2x32xf32>
    %cst_24 = arith.constant 5.000000e-01 : f32
    %50 = vector.broadcast %cst_24 : f32 to vector<2x32xf32>
    %51 = arith.mulf %50, %49 : vector<2x32xf32>
    %52 = math.tanh %51 : vector<2x32xf32>
    %cst_25 = arith.constant 5.000000e-01 : f32
    %53 = vector.broadcast %cst_25 : f32 to vector<2x32xf32>
    %54 = arith.mulf %53, %52 : vector<2x32xf32>
    %cst_26 = arith.constant 5.000000e-01 : f32
    %55 = vector.broadcast %cst_26 : f32 to vector<2x32xf32>
    %56 = arith.addf %54, %55 : vector<2x32xf32>
    %57 = vector.extract_strided_slice %48 {offsets = [0, 32], sizes = [2, 32], strides = [1, 1]} : vector<2x128xf32> to vector<2x32xf32>
    %cst_27 = arith.constant 5.000000e-01 : f32
    %58 = vector.broadcast %cst_27 : f32 to vector<2x32xf32>
    %59 = arith.mulf %58, %57 : vector<2x32xf32>
    %60 = math.tanh %59 : vector<2x32xf32>
    %cst_28 = arith.constant 5.000000e-01 : f32
    %61 = vector.broadcast %cst_28 : f32 to vector<2x32xf32>
    %62 = arith.mulf %61, %60 : vector<2x32xf32>
    %cst_29 = arith.constant 5.000000e-01 : f32
    %63 = vector.broadcast %cst_29 : f32 to vector<2x32xf32>
    %64 = arith.addf %62, %63 : vector<2x32xf32>
    %65 = vector.extract_strided_slice %48 {offsets = [0, 64], sizes = [2, 32], strides = [1, 1]} : vector<2x128xf32> to vector<2x32xf32>
    %66 = math.tanh %65 : vector<2x32xf32>
    %67 = vector.extract_strided_slice %48 {offsets = [0, 96], sizes = [2, 32], strides = [1, 1]} : vector<2x128xf32> to vector<2x32xf32>
    %cst_30 = arith.constant 5.000000e-01 : f32
    %68 = vector.broadcast %cst_30 : f32 to vector<2x32xf32>
    %69 = arith.mulf %68, %67 : vector<2x32xf32>
    %70 = math.tanh %69 : vector<2x32xf32>
    %cst_31 = arith.constant 5.000000e-01 : f32
    %71 = vector.broadcast %cst_31 : f32 to vector<2x32xf32>
    %72 = arith.mulf %71, %70 : vector<2x32xf32>
    %cst_32 = arith.constant 5.000000e-01 : f32
    %73 = vector.broadcast %cst_32 : f32 to vector<2x32xf32>
    %74 = arith.addf %72, %73 : vector<2x32xf32>
    %75 = arith.mulf %64, %7 : vector<2x32xf32>
    %76 = arith.mulf %56, %66 : vector<2x32xf32>
    %77 = arith.addf %75, %76 : vector<2x32xf32>
    %78 = math.tanh %77 : vector<2x32xf32>
    %79 = arith.mulf %74, %78 : vector<2x32xf32>
    %c1_i32 = arith.constant 1 : i32
    %80 = arith.index_cast %c1_i32 : i32 to index
    %c0_33 = arith.constant 0 : index
    %c0_34 = arith.constant 0 : index
    %81 = vector.load %arg1[%80, %c0_33, %c0_34] : memref<8x2x128xf32, #tpu.memory_space<vmem>>, vector<1x2x128xf32>
    %82 = vector.shape_cast %81 : vector<1x2x128xf32> to vector<2x128xf32>
    %cst_35 = arith.constant dense<0.000000e+00> : vector<2x128xf32>
    %83 = tpu.matmul %43, %0, %cst_35 {dimension_numbers = #tpu.dot_dimension_numbers<[1], [0], [0], [1], [0, 0, 1, 1], [], []>} : vector<2x32xf32>, vector<32x128xf32>, vector<2x128xf32> -> vector<2x128xf32>
    %84 = arith.addf %82, %83 : vector<2x128xf32>
    %85 = vector.extract_strided_slice %84 {offsets = [0, 0], sizes = [2, 32], strides = [1, 1]} : vector<2x128xf32> to vector<2x32xf32>
    %cst_36 = arith.constant 5.000000e-01 : f32
    %86 = vector.broadcast %cst_36 : f32 to vector<2x32xf32>
    %87 = arith.mulf %86, %85 : vector<2x32xf32>
    %88 = math.tanh %87 : vector<2x32xf32>
    %cst_37 = arith.constant 5.000000e-01 : f32
    %89 = vector.broadcast %cst_37 : f32 to vector<2x32xf32>
    %90 = arith.mulf %89, %88 : vector<2x32xf32>
    %cst_38 = arith.constant 5.000000e-01 : f32
    %91 = vector.broadcast %cst_38 : f32 to vector<2x32xf32>
    %92 = arith.addf %90, %91 : vector<2x32xf32>
    %93 = vector.extract_strided_slice %84 {offsets = [0, 32], sizes = [2, 32], strides = [1, 1]} : vector<2x128xf32> to vector<2x32xf32>
    %cst_39 = arith.constant 5.000000e-01 : f32
    %94 = vector.broadcast %cst_39 : f32 to vector<2x32xf32>
    %95 = arith.mulf %94, %93 : vector<2x32xf32>
    %96 = math.tanh %95 : vector<2x32xf32>
    %cst_40 = arith.constant 5.000000e-01 : f32
    %97 = vector.broadcast %cst_40 : f32 to vector<2x32xf32>
    %98 = arith.mulf %97, %96 : vector<2x32xf32>
    %cst_41 = arith.constant 5.000000e-01 : f32
    %99 = vector.broadcast %cst_41 : f32 to vector<2x32xf32>
    %100 = arith.addf %98, %99 : vector<2x32xf32>
    %101 = vector.extract_strided_slice %84 {offsets = [0, 64], sizes = [2, 32], strides = [1, 1]} : vector<2x128xf32> to vector<2x32xf32>
    %102 = math.tanh %101 : vector<2x32xf32>
    %103 = vector.extract_strided_slice %84 {offsets = [0, 96], sizes = [2, 32], strides = [1, 1]} : vector<2x128xf32> to vector<2x32xf32>
    %cst_42 = arith.constant 5.000000e-01 : f32
    %104 = vector.broadcast %cst_42 : f32 to vector<2x32xf32>
    %105 = arith.mulf %104, %103 : vector<2x32xf32>
    %106 = math.tanh %105 : vector<2x32xf32>
    %cst_43 = arith.constant 5.000000e-01 : f32
    %107 = vector.broadcast %cst_43 : f32 to vector<2x32xf32>
    %108 = arith.mulf %107, %106 : vector<2x32xf32>
    %cst_44 = arith.constant 5.000000e-01 : f32
    %109 = vector.broadcast %cst_44 : f32 to vector<2x32xf32>
    %110 = arith.addf %108, %109 : vector<2x32xf32>
    %111 = arith.mulf %100, %41 : vector<2x32xf32>
    %112 = arith.mulf %92, %102 : vector<2x32xf32>
    %113 = arith.addf %111, %112 : vector<2x32xf32>
    %114 = math.tanh %113 : vector<2x32xf32>
    %115 = arith.mulf %110, %114 : vector<2x32xf32>
    %cst_45 = arith.constant dense<0.000000e+00> : vector<2x128xf32>
    %116 = tpu.matmul %115, %1, %cst_45 {dimension_numbers = #tpu.dot_dimension_numbers<[1], [0], [0], [1], [0, 0, 1, 1], [], []>} : vector<2x32xf32>, vector<32x128xf32>, vector<2x128xf32> -> vector<2x128xf32>
    %cst_46 = arith.constant dense<0.000000e+00> : vector<2x128xf32>
    %117 = tpu.matmul %79, %2, %cst_46 {dimension_numbers = #tpu.dot_dimension_numbers<[1], [0], [0], [1], [0, 0, 1, 1], [], []>} : vector<2x32xf32>, vector<32x128xf32>, vector<2x128xf32> -> vector<2x128xf32>
    %118 = arith.addf %116, %117 : vector<2x128xf32>
    %119 = vector.broadcast %3 : vector<1x128xf32> to vector<2x128xf32>
    %120 = arith.addf %118, %119 : vector<2x128xf32>
    %121 = vector.extract_strided_slice %120 {offsets = [0, 0], sizes = [2, 32], strides = [1, 1]} : vector<2x128xf32> to vector<2x32xf32>
    %cst_47 = arith.constant 5.000000e-01 : f32
    %122 = vector.broadcast %cst_47 : f32 to vector<2x32xf32>
    %123 = arith.mulf %122, %121 : vector<2x32xf32>
    %124 = math.tanh %123 : vector<2x32xf32>
    %cst_48 = arith.constant 5.000000e-01 : f32
    %125 = vector.broadcast %cst_48 : f32 to vector<2x32xf32>
    %126 = arith.mulf %125, %124 : vector<2x32xf32>
    %cst_49 = arith.constant 5.000000e-01 : f32
    %127 = vector.broadcast %cst_49 : f32 to vector<2x32xf32>
    %128 = arith.addf %126, %127 : vector<2x32xf32>
    %129 = vector.extract_strided_slice %120 {offsets = [0, 32], sizes = [2, 32], strides = [1, 1]} : vector<2x128xf32> to vector<2x32xf32>
    %cst_50 = arith.constant 5.000000e-01 : f32
    %130 = vector.broadcast %cst_50 : f32 to vector<2x32xf32>
    %131 = arith.mulf %130, %129 : vector<2x32xf32>
    %132 = math.tanh %131 : vector<2x32xf32>
    %cst_51 = arith.constant 5.000000e-01 : f32
    %133 = vector.broadcast %cst_51 : f32 to vector<2x32xf32>
    %134 = arith.mulf %133, %132 : vector<2x32xf32>
    %cst_52 = arith.constant 5.000000e-01 : f32
    %135 = vector.broadcast %cst_52 : f32 to vector<2x32xf32>
    %136 = arith.addf %134, %135 : vector<2x32xf32>
    %137 = vector.extract_strided_slice %120 {offsets = [0, 64], sizes = [2, 32], strides = [1, 1]} : vector<2x128xf32> to vector<2x32xf32>
    %138 = math.tanh %137 : vector<2x32xf32>
    %139 = vector.extract_strided_slice %120 {offsets = [0, 96], sizes = [2, 32], strides = [1, 1]} : vector<2x128xf32> to vector<2x32xf32>
    %cst_53 = arith.constant 5.000000e-01 : f32
    %140 = vector.broadcast %cst_53 : f32 to vector<2x32xf32>
    %141 = arith.mulf %140, %139 : vector<2x32xf32>
    %142 = math.tanh %141 : vector<2x32xf32>
    %cst_54 = arith.constant 5.000000e-01 : f32
    %143 = vector.broadcast %cst_54 : f32 to vector<2x32xf32>
    %144 = arith.mulf %143, %142 : vector<2x32xf32>
    %cst_55 = arith.constant 5.000000e-01 : f32
    %145 = vector.broadcast %cst_55 : f32 to vector<2x32xf32>
    %146 = arith.addf %144, %145 : vector<2x32xf32>
    %147 = arith.mulf %136, %77 : vector<2x32xf32>
    %148 = arith.mulf %128, %138 : vector<2x32xf32>
    %149 = arith.addf %147, %148 : vector<2x32xf32>
    %150 = math.tanh %149 : vector<2x32xf32>
    %151 = arith.mulf %146, %150 : vector<2x32xf32>
    %c2_i32 = arith.constant 2 : i32
    %152 = arith.index_cast %c2_i32 : i32 to index
    %c0_56 = arith.constant 0 : index
    %c0_57 = arith.constant 0 : index
    %153 = vector.load %arg1[%152, %c0_56, %c0_57] : memref<8x2x128xf32, #tpu.memory_space<vmem>>, vector<1x2x128xf32>
    %154 = vector.shape_cast %153 : vector<1x2x128xf32> to vector<2x128xf32>
    %cst_58 = arith.constant dense<0.000000e+00> : vector<2x128xf32>
    %155 = tpu.matmul %115, %0, %cst_58 {dimension_numbers = #tpu.dot_dimension_numbers<[1], [0], [0], [1], [0, 0, 1, 1], [], []>} : vector<2x32xf32>, vector<32x128xf32>, vector<2x128xf32> -> vector<2x128xf32>
    %156 = arith.addf %154, %155 : vector<2x128xf32>
    %157 = vector.extract_strided_slice %156 {offsets = [0, 0], sizes = [2, 32], strides = [1, 1]} : vector<2x128xf32> to vector<2x32xf32>
    %cst_59 = arith.constant 5.000000e-01 : f32
    %158 = vector.broadcast %cst_59 : f32 to vector<2x32xf32>
    %159 = arith.mulf %158, %157 : vector<2x32xf32>
    %160 = math.tanh %159 : vector<2x32xf32>
    %cst_60 = arith.constant 5.000000e-01 : f32
    %161 = vector.broadcast %cst_60 : f32 to vector<2x32xf32>
    %162 = arith.mulf %161, %160 : vector<2x32xf32>
    %cst_61 = arith.constant 5.000000e-01 : f32
    %163 = vector.broadcast %cst_61 : f32 to vector<2x32xf32>
    %164 = arith.addf %162, %163 : vector<2x32xf32>
    %165 = vector.extract_strided_slice %156 {offsets = [0, 32], sizes = [2, 32], strides = [1, 1]} : vector<2x128xf32> to vector<2x32xf32>
    %cst_62 = arith.constant 5.000000e-01 : f32
    %166 = vector.broadcast %cst_62 : f32 to vector<2x32xf32>
    %167 = arith.mulf %166, %165 : vector<2x32xf32>
    %168 = math.tanh %167 : vector<2x32xf32>
    %cst_63 = arith.constant 5.000000e-01 : f32
    %169 = vector.broadcast %cst_63 : f32 to vector<2x32xf32>
    %170 = arith.mulf %169, %168 : vector<2x32xf32>
    %cst_64 = arith.constant 5.000000e-01 : f32
    %171 = vector.broadcast %cst_64 : f32 to vector<2x32xf32>
    %172 = arith.addf %170, %171 : vector<2x32xf32>
    %173 = vector.extract_strided_slice %156 {offsets = [0, 64], sizes = [2, 32], strides = [1, 1]} : vector<2x128xf32> to vector<2x32xf32>
    %174 = math.tanh %173 : vector<2x32xf32>
    %175 = vector.extract_strided_slice %156 {offsets = [0, 96], sizes = [2, 32], strides = [1, 1]} : vector<2x128xf32> to vector<2x32xf32>
    %cst_65 = arith.constant 5.000000e-01 : f32
    %176 = vector.broadcast %cst_65 : f32 to vector<2x32xf32>
    %177 = arith.mulf %176, %175 : vector<2x32xf32>
    %178 = math.tanh %177 : vector<2x32xf32>
    %cst_66 = arith.constant 5.000000e-01 : f32
    %179 = vector.broadcast %cst_66 : f32 to vector<2x32xf32>
    %180 = arith.mulf %179, %178 : vector<2x32xf32>
    %cst_67 = arith.constant 5.000000e-01 : f32
    %181 = vector.broadcast %cst_67 : f32 to vector<2x32xf32>
    %182 = arith.addf %180, %181 : vector<2x32xf32>
    %183 = arith.mulf %172, %113 : vector<2x32xf32>
    %184 = arith.mulf %164, %174 : vector<2x32xf32>
    %185 = arith.addf %183, %184 : vector<2x32xf32>
    %186 = math.tanh %185 : vector<2x32xf32>
    %187 = arith.mulf %182, %186 : vector<2x32xf32>
    %cst_68 = arith.constant dense<0.000000e+00> : vector<2x128xf32>
    %188 = tpu.matmul %187, %1, %cst_68 {dimension_numbers = #tpu.dot_dimension_numbers<[1], [0], [0], [1], [0, 0, 1, 1], [], []>} : vector<2x32xf32>, vector<32x128xf32>, vector<2x128xf32> -> vector<2x128xf32>
    %cst_69 = arith.constant dense<0.000000e+00> : vector<2x128xf32>
    %189 = tpu.matmul %151, %2, %cst_69 {dimension_numbers = #tpu.dot_dimension_numbers<[1], [0], [0], [1], [0, 0, 1, 1], [], []>} : vector<2x32xf32>, vector<32x128xf32>, vector<2x128xf32> -> vector<2x128xf32>
    %190 = arith.addf %188, %189 : vector<2x128xf32>
    %191 = vector.broadcast %3 : vector<1x128xf32> to vector<2x128xf32>
    %192 = arith.addf %190, %191 : vector<2x128xf32>
    %193 = vector.extract_strided_slice %192 {offsets = [0, 0], sizes = [2, 32], strides = [1, 1]} : vector<2x128xf32> to vector<2x32xf32>
    %cst_70 = arith.constant 5.000000e-01 : f32
    %194 = vector.broadcast %cst_70 : f32 to vector<2x32xf32>
    %195 = arith.mulf %194, %193 : vector<2x32xf32>
    %196 = math.tanh %195 : vector<2x32xf32>
    %cst_71 = arith.constant 5.000000e-01 : f32
    %197 = vector.broadcast %cst_71 : f32 to vector<2x32xf32>
    %198 = arith.mulf %197, %196 : vector<2x32xf32>
    %cst_72 = arith.constant 5.000000e-01 : f32
    %199 = vector.broadcast %cst_72 : f32 to vector<2x32xf32>
    %200 = arith.addf %198, %199 : vector<2x32xf32>
    %201 = vector.extract_strided_slice %192 {offsets = [0, 32], sizes = [2, 32], strides = [1, 1]} : vector<2x128xf32> to vector<2x32xf32>
    %cst_73 = arith.constant 5.000000e-01 : f32
    %202 = vector.broadcast %cst_73 : f32 to vector<2x32xf32>
    %203 = arith.mulf %202, %201 : vector<2x32xf32>
    %204 = math.tanh %203 : vector<2x32xf32>
    %cst_74 = arith.constant 5.000000e-01 : f32
    %205 = vector.broadcast %cst_74 : f32 to vector<2x32xf32>
    %206 = arith.mulf %205, %204 : vector<2x32xf32>
    %cst_75 = arith.constant 5.000000e-01 : f32
    %207 = vector.broadcast %cst_75 : f32 to vector<2x32xf32>
    %208 = arith.addf %206, %207 : vector<2x32xf32>
    %209 = vector.extract_strided_slice %192 {offsets = [0, 64], sizes = [2, 32], strides = [1, 1]} : vector<2x128xf32> to vector<2x32xf32>
    %210 = math.tanh %209 : vector<2x32xf32>
    %211 = vector.extract_strided_slice %192 {offsets = [0, 96], sizes = [2, 32], strides = [1, 1]} : vector<2x128xf32> to vector<2x32xf32>
    %cst_76 = arith.constant 5.000000e-01 : f32
    %212 = vector.broadcast %cst_76 : f32 to vector<2x32xf32>
    %213 = arith.mulf %212, %211 : vector<2x32xf32>
    %214 = math.tanh %213 : vector<2x32xf32>
    %cst_77 = arith.constant 5.000000e-01 : f32
    %215 = vector.broadcast %cst_77 : f32 to vector<2x32xf32>
    %216 = arith.mulf %215, %214 : vector<2x32xf32>
    %cst_78 = arith.constant 5.000000e-01 : f32
    %217 = vector.broadcast %cst_78 : f32 to vector<2x32xf32>
    %218 = arith.addf %216, %217 : vector<2x32xf32>
    %219 = arith.mulf %208, %149 : vector<2x32xf32>
    %220 = arith.mulf %200, %210 : vector<2x32xf32>
    %221 = arith.addf %219, %220 : vector<2x32xf32>
    %222 = math.tanh %221 : vector<2x32xf32>
    %223 = arith.mulf %218, %222 : vector<2x32xf32>
    %c3_i32 = arith.constant 3 : i32
    %224 = arith.index_cast %c3_i32 : i32 to index
    %c0_79 = arith.constant 0 : index
    %c0_80 = arith.constant 0 : index
    %225 = vector.load %arg1[%224, %c0_79, %c0_80] : memref<8x2x128xf32, #tpu.memory_space<vmem>>, vector<1x2x128xf32>
    %226 = vector.shape_cast %225 : vector<1x2x128xf32> to vector<2x128xf32>
    %cst_81 = arith.constant dense<0.000000e+00> : vector<2x128xf32>
    %227 = tpu.matmul %187, %0, %cst_81 {dimension_numbers = #tpu.dot_dimension_numbers<[1], [0], [0], [1], [0, 0, 1, 1], [], []>} : vector<2x32xf32>, vector<32x128xf32>, vector<2x128xf32> -> vector<2x128xf32>
    %228 = arith.addf %226, %227 : vector<2x128xf32>
    %229 = vector.extract_strided_slice %228 {offsets = [0, 0], sizes = [2, 32], strides = [1, 1]} : vector<2x128xf32> to vector<2x32xf32>
    %cst_82 = arith.constant 5.000000e-01 : f32
    %230 = vector.broadcast %cst_82 : f32 to vector<2x32xf32>
    %231 = arith.mulf %230, %229 : vector<2x32xf32>
    %232 = math.tanh %231 : vector<2x32xf32>
    %cst_83 = arith.constant 5.000000e-01 : f32
    %233 = vector.broadcast %cst_83 : f32 to vector<2x32xf32>
    %234 = arith.mulf %233, %232 : vector<2x32xf32>
    %cst_84 = arith.constant 5.000000e-01 : f32
    %235 = vector.broadcast %cst_84 : f32 to vector<2x32xf32>
    %236 = arith.addf %234, %235 : vector<2x32xf32>
    %237 = vector.extract_strided_slice %228 {offsets = [0, 32], sizes = [2, 32], strides = [1, 1]} : vector<2x128xf32> to vector<2x32xf32>
    %cst_85 = arith.constant 5.000000e-01 : f32
    %238 = vector.broadcast %cst_85 : f32 to vector<2x32xf32>
    %239 = arith.mulf %238, %237 : vector<2x32xf32>
    %240 = math.tanh %239 : vector<2x32xf32>
    %cst_86 = arith.constant 5.000000e-01 : f32
    %241 = vector.broadcast %cst_86 : f32 to vector<2x32xf32>
    %242 = arith.mulf %241, %240 : vector<2x32xf32>
    %cst_87 = arith.constant 5.000000e-01 : f32
    %243 = vector.broadcast %cst_87 : f32 to vector<2x32xf32>
    %244 = arith.addf %242, %243 : vector<2x32xf32>
    %245 = vector.extract_strided_slice %228 {offsets = [0, 64], sizes = [2, 32], strides = [1, 1]} : vector<2x128xf32> to vector<2x32xf32>
    %246 = math.tanh %245 : vector<2x32xf32>
    %247 = vector.extract_strided_slice %228 {offsets = [0, 96], sizes = [2, 32], strides = [1, 1]} : vector<2x128xf32> to vector<2x32xf32>
    %cst_88 = arith.constant 5.000000e-01 : f32
    %248 = vector.broadcast %cst_88 : f32 to vector<2x32xf32>
    %249 = arith.mulf %248, %247 : vector<2x32xf32>
    %250 = math.tanh %249 : vector<2x32xf32>
    %cst_89 = arith.constant 5.000000e-01 : f32
    %251 = vector.broadcast %cst_89 : f32 to vector<2x32xf32>
    %252 = arith.mulf %251, %250 : vector<2x32xf32>
    %cst_90 = arith.constant 5.000000e-01 : f32
    %253 = vector.broadcast %cst_90 : f32 to vector<2x32xf32>
    %254 = arith.addf %252, %253 : vector<2x32xf32>
    %255 = arith.mulf %244, %185 : vector<2x32xf32>
    %256 = arith.mulf %236, %246 : vector<2x32xf32>
    %257 = arith.addf %255, %256 : vector<2x32xf32>
    %258 = math.tanh %257 : vector<2x32xf32>
    %259 = arith.mulf %254, %258 : vector<2x32xf32>
    %cst_91 = arith.constant dense<0.000000e+00> : vector<2x128xf32>
    %260 = tpu.matmul %259, %1, %cst_91 {dimension_numbers = #tpu.dot_dimension_numbers<[1], [0], [0], [1], [0, 0, 1, 1], [], []>} : vector<2x32xf32>, vector<32x128xf32>, vector<2x128xf32> -> vector<2x128xf32>
    %cst_92 = arith.constant dense<0.000000e+00> : vector<2x128xf32>
    %261 = tpu.matmul %223, %2, %cst_92 {dimension_numbers = #tpu.dot_dimension_numbers<[1], [0], [0], [1], [0, 0, 1, 1], [], []>} : vector<2x32xf32>, vector<32x128xf32>, vector<2x128xf32> -> vector<2x128xf32>
    %262 = arith.addf %260, %261 : vector<2x128xf32>
    %263 = vector.broadcast %3 : vector<1x128xf32> to vector<2x128xf32>
    %264 = arith.addf %262, %263 : vector<2x128xf32>
    %265 = vector.extract_strided_slice %264 {offsets = [0, 0], sizes = [2, 32], strides = [1, 1]} : vector<2x128xf32> to vector<2x32xf32>
    %cst_93 = arith.constant 5.000000e-01 : f32
    %266 = vector.broadcast %cst_93 : f32 to vector<2x32xf32>
    %267 = arith.mulf %266, %265 : vector<2x32xf32>
    %268 = math.tanh %267 : vector<2x32xf32>
    %cst_94 = arith.constant 5.000000e-01 : f32
    %269 = vector.broadcast %cst_94 : f32 to vector<2x32xf32>
    %270 = arith.mulf %269, %268 : vector<2x32xf32>
    %cst_95 = arith.constant 5.000000e-01 : f32
    %271 = vector.broadcast %cst_95 : f32 to vector<2x32xf32>
    %272 = arith.addf %270, %271 : vector<2x32xf32>
    %273 = vector.extract_strided_slice %264 {offsets = [0, 32], sizes = [2, 32], strides = [1, 1]} : vector<2x128xf32> to vector<2x32xf32>
    %cst_96 = arith.constant 5.000000e-01 : f32
    %274 = vector.broadcast %cst_96 : f32 to vector<2x32xf32>
    %275 = arith.mulf %274, %273 : vector<2x32xf32>
    %276 = math.tanh %275 : vector<2x32xf32>
    %cst_97 = arith.constant 5.000000e-01 : f32
    %277 = vector.broadcast %cst_97 : f32 to vector<2x32xf32>
    %278 = arith.mulf %277, %276 : vector<2x32xf32>
    %cst_98 = arith.constant 5.000000e-01 : f32
    %279 = vector.broadcast %cst_98 : f32 to vector<2x32xf32>
    %280 = arith.addf %278, %279 : vector<2x32xf32>
    %281 = vector.extract_strided_slice %264 {offsets = [0, 64], sizes = [2, 32], strides = [1, 1]} : vector<2x128xf32> to vector<2x32xf32>
    %282 = math.tanh %281 : vector<2x32xf32>
    %283 = vector.extract_strided_slice %264 {offsets = [0, 96], sizes = [2, 32], strides = [1, 1]} : vector<2x128xf32> to vector<2x32xf32>
    %cst_99 = arith.constant 5.000000e-01 : f32
    %284 = vector.broadcast %cst_99 : f32 to vector<2x32xf32>
    %285 = arith.mulf %284, %283 : vector<2x32xf32>
    %286 = math.tanh %285 : vector<2x32xf32>
    %cst_100 = arith.constant 5.000000e-01 : f32
    %287 = vector.broadcast %cst_100 : f32 to vector<2x32xf32>
    %288 = arith.mulf %287, %286 : vector<2x32xf32>
    %cst_101 = arith.constant 5.000000e-01 : f32
    %289 = vector.broadcast %cst_101 : f32 to vector<2x32xf32>
    %290 = arith.addf %288, %289 : vector<2x32xf32>
    %291 = arith.mulf %280, %221 : vector<2x32xf32>
    %292 = arith.mulf %272, %282 : vector<2x32xf32>
    %293 = arith.addf %291, %292 : vector<2x32xf32>
    %294 = math.tanh %293 : vector<2x32xf32>
    %295 = arith.mulf %290, %294 : vector<2x32xf32>
    %c4_i32 = arith.constant 4 : i32
    %296 = arith.index_cast %c4_i32 : i32 to index
    %c0_102 = arith.constant 0 : index
    %c0_103 = arith.constant 0 : index
    %297 = vector.load %arg1[%296, %c0_102, %c0_103] : memref<8x2x128xf32, #tpu.memory_space<vmem>>, vector<1x2x128xf32>
    %298 = vector.shape_cast %297 : vector<1x2x128xf32> to vector<2x128xf32>
    %cst_104 = arith.constant dense<0.000000e+00> : vector<2x128xf32>
    %299 = tpu.matmul %259, %0, %cst_104 {dimension_numbers = #tpu.dot_dimension_numbers<[1], [0], [0], [1], [0, 0, 1, 1], [], []>} : vector<2x32xf32>, vector<32x128xf32>, vector<2x128xf32> -> vector<2x128xf32>
    %300 = arith.addf %298, %299 : vector<2x128xf32>
    %301 = vector.extract_strided_slice %300 {offsets = [0, 0], sizes = [2, 32], strides = [1, 1]} : vector<2x128xf32> to vector<2x32xf32>
    %cst_105 = arith.constant 5.000000e-01 : f32
    %302 = vector.broadcast %cst_105 : f32 to vector<2x32xf32>
    %303 = arith.mulf %302, %301 : vector<2x32xf32>
    %304 = math.tanh %303 : vector<2x32xf32>
    %cst_106 = arith.constant 5.000000e-01 : f32
    %305 = vector.broadcast %cst_106 : f32 to vector<2x32xf32>
    %306 = arith.mulf %305, %304 : vector<2x32xf32>
    %cst_107 = arith.constant 5.000000e-01 : f32
    %307 = vector.broadcast %cst_107 : f32 to vector<2x32xf32>
    %308 = arith.addf %306, %307 : vector<2x32xf32>
    %309 = vector.extract_strided_slice %300 {offsets = [0, 32], sizes = [2, 32], strides = [1, 1]} : vector<2x128xf32> to vector<2x32xf32>
    %cst_108 = arith.constant 5.000000e-01 : f32
    %310 = vector.broadcast %cst_108 : f32 to vector<2x32xf32>
    %311 = arith.mulf %310, %309 : vector<2x32xf32>
    %312 = math.tanh %311 : vector<2x32xf32>
    %cst_109 = arith.constant 5.000000e-01 : f32
    %313 = vector.broadcast %cst_109 : f32 to vector<2x32xf32>
    %314 = arith.mulf %313, %312 : vector<2x32xf32>
    %cst_110 = arith.constant 5.000000e-01 : f32
    %315 = vector.broadcast %cst_110 : f32 to vector<2x32xf32>
    %316 = arith.addf %314, %315 : vector<2x32xf32>
    %317 = vector.extract_strided_slice %300 {offsets = [0, 64], sizes = [2, 32], strides = [1, 1]} : vector<2x128xf32> to vector<2x32xf32>
    %318 = math.tanh %317 : vector<2x32xf32>
    %319 = vector.extract_strided_slice %300 {offsets = [0, 96], sizes = [2, 32], strides = [1, 1]} : vector<2x128xf32> to vector<2x32xf32>
    %cst_111 = arith.constant 5.000000e-01 : f32
    %320 = vector.broadcast %cst_111 : f32 to vector<2x32xf32>
    %321 = arith.mulf %320, %319 : vector<2x32xf32>
    %322 = math.tanh %321 : vector<2x32xf32>
    %cst_112 = arith.constant 5.000000e-01 : f32
    %323 = vector.broadcast %cst_112 : f32 to vector<2x32xf32>
    %324 = arith.mulf %323, %322 : vector<2x32xf32>
    %cst_113 = arith.constant 5.000000e-01 : f32
    %325 = vector.broadcast %cst_113 : f32 to vector<2x32xf32>
    %326 = arith.addf %324, %325 : vector<2x32xf32>
    %327 = arith.mulf %316, %257 : vector<2x32xf32>
    %328 = arith.mulf %308, %318 : vector<2x32xf32>
    %329 = arith.addf %327, %328 : vector<2x32xf32>
    %330 = math.tanh %329 : vector<2x32xf32>
    %331 = arith.mulf %326, %330 : vector<2x32xf32>
    %cst_114 = arith.constant dense<0.000000e+00> : vector<2x128xf32>
    %332 = tpu.matmul %331, %1, %cst_114 {dimension_numbers = #tpu.dot_dimension_numbers<[1], [0], [0], [1], [0, 0, 1, 1], [], []>} : vector<2x32xf32>, vector<32x128xf32>, vector<2x128xf32> -> vector<2x128xf32>
    %cst_115 = arith.constant dense<0.000000e+00> : vector<2x128xf32>
    %333 = tpu.matmul %295, %2, %cst_115 {dimension_numbers = #tpu.dot_dimension_numbers<[1], [0], [0], [1], [0, 0, 1, 1], [], []>} : vector<2x32xf32>, vector<32x128xf32>, vector<2x128xf32> -> vector<2x128xf32>
    %334 = arith.addf %332, %333 : vector<2x128xf32>
    %335 = vector.broadcast %3 : vector<1x128xf32> to vector<2x128xf32>
    %336 = arith.addf %334, %335 : vector<2x128xf32>
    %337 = vector.extract_strided_slice %336 {offsets = [0, 0], sizes = [2, 32], strides = [1, 1]} : vector<2x128xf32> to vector<2x32xf32>
    %cst_116 = arith.constant 5.000000e-01 : f32
    %338 = vector.broadcast %cst_116 : f32 to vector<2x32xf32>
    %339 = arith.mulf %338, %337 : vector<2x32xf32>
    %340 = math.tanh %339 : vector<2x32xf32>
    %cst_117 = arith.constant 5.000000e-01 : f32
    %341 = vector.broadcast %cst_117 : f32 to vector<2x32xf32>
    %342 = arith.mulf %341, %340 : vector<2x32xf32>
    %cst_118 = arith.constant 5.000000e-01 : f32
    %343 = vector.broadcast %cst_118 : f32 to vector<2x32xf32>
    %344 = arith.addf %342, %343 : vector<2x32xf32>
    %345 = vector.extract_strided_slice %336 {offsets = [0, 32], sizes = [2, 32], strides = [1, 1]} : vector<2x128xf32> to vector<2x32xf32>
    %cst_119 = arith.constant 5.000000e-01 : f32
    %346 = vector.broadcast %cst_119 : f32 to vector<2x32xf32>
    %347 = arith.mulf %346, %345 : vector<2x32xf32>
    %348 = math.tanh %347 : vector<2x32xf32>
    %cst_120 = arith.constant 5.000000e-01 : f32
    %349 = vector.broadcast %cst_120 : f32 to vector<2x32xf32>
    %350 = arith.mulf %349, %348 : vector<2x32xf32>
    %cst_121 = arith.constant 5.000000e-01 : f32
    %351 = vector.broadcast %cst_121 : f32 to vector<2x32xf32>
    %352 = arith.addf %350, %351 : vector<2x32xf32>
    %353 = vector.extract_strided_slice %336 {offsets = [0, 64], sizes = [2, 32], strides = [1, 1]} : vector<2x128xf32> to vector<2x32xf32>
    %354 = math.tanh %353 : vector<2x32xf32>
    %355 = vector.extract_strided_slice %336 {offsets = [0, 96], sizes = [2, 32], strides = [1, 1]} : vector<2x128xf32> to vector<2x32xf32>
    %cst_122 = arith.constant 5.000000e-01 : f32
    %356 = vector.broadcast %cst_122 : f32 to vector<2x32xf32>
    %357 = arith.mulf %356, %355 : vector<2x32xf32>
    %358 = math.tanh %357 : vector<2x32xf32>
    %cst_123 = arith.constant 5.000000e-01 : f32
    %359 = vector.broadcast %cst_123 : f32 to vector<2x32xf32>
    %360 = arith.mulf %359, %358 : vector<2x32xf32>
    %cst_124 = arith.constant 5.000000e-01 : f32
    %361 = vector.broadcast %cst_124 : f32 to vector<2x32xf32>
    %362 = arith.addf %360, %361 : vector<2x32xf32>
    %363 = arith.mulf %352, %293 : vector<2x32xf32>
    %364 = arith.mulf %344, %354 : vector<2x32xf32>
    %365 = arith.addf %363, %364 : vector<2x32xf32>
    %366 = math.tanh %365 : vector<2x32xf32>
    %367 = arith.mulf %362, %366 : vector<2x32xf32>
    %c5_i32 = arith.constant 5 : i32
    %368 = arith.index_cast %c5_i32 : i32 to index
    %c0_125 = arith.constant 0 : index
    %c0_126 = arith.constant 0 : index
    %369 = vector.load %arg1[%368, %c0_125, %c0_126] : memref<8x2x128xf32, #tpu.memory_space<vmem>>, vector<1x2x128xf32>
    %370 = vector.shape_cast %369 : vector<1x2x128xf32> to vector<2x128xf32>
    %cst_127 = arith.constant dense<0.000000e+00> : vector<2x128xf32>
    %371 = tpu.matmul %331, %0, %cst_127 {dimension_numbers = #tpu.dot_dimension_numbers<[1], [0], [0], [1], [0, 0, 1, 1], [], []>} : vector<2x32xf32>, vector<32x128xf32>, vector<2x128xf32> -> vector<2x128xf32>
    %372 = arith.addf %370, %371 : vector<2x128xf32>
    %373 = vector.extract_strided_slice %372 {offsets = [0, 0], sizes = [2, 32], strides = [1, 1]} : vector<2x128xf32> to vector<2x32xf32>
    %cst_128 = arith.constant 5.000000e-01 : f32
    %374 = vector.broadcast %cst_128 : f32 to vector<2x32xf32>
    %375 = arith.mulf %374, %373 : vector<2x32xf32>
    %376 = math.tanh %375 : vector<2x32xf32>
    %cst_129 = arith.constant 5.000000e-01 : f32
    %377 = vector.broadcast %cst_129 : f32 to vector<2x32xf32>
    %378 = arith.mulf %377, %376 : vector<2x32xf32>
    %cst_130 = arith.constant 5.000000e-01 : f32
    %379 = vector.broadcast %cst_130 : f32 to vector<2x32xf32>
    %380 = arith.addf %378, %379 : vector<2x32xf32>
    %381 = vector.extract_strided_slice %372 {offsets = [0, 32], sizes = [2, 32], strides = [1, 1]} : vector<2x128xf32> to vector<2x32xf32>
    %cst_131 = arith.constant 5.000000e-01 : f32
    %382 = vector.broadcast %cst_131 : f32 to vector<2x32xf32>
    %383 = arith.mulf %382, %381 : vector<2x32xf32>
    %384 = math.tanh %383 : vector<2x32xf32>
    %cst_132 = arith.constant 5.000000e-01 : f32
    %385 = vector.broadcast %cst_132 : f32 to vector<2x32xf32>
    %386 = arith.mulf %385, %384 : vector<2x32xf32>
    %cst_133 = arith.constant 5.000000e-01 : f32
    %387 = vector.broadcast %cst_133 : f32 to vector<2x32xf32>
    %388 = arith.addf %386, %387 : vector<2x32xf32>
    %389 = vector.extract_strided_slice %372 {offsets = [0, 64], sizes = [2, 32], strides = [1, 1]} : vector<2x128xf32> to vector<2x32xf32>
    %390 = math.tanh %389 : vector<2x32xf32>
    %391 = vector.extract_strided_slice %372 {offsets = [0, 96], sizes = [2, 32], strides = [1, 1]} : vector<2x128xf32> to vector<2x32xf32>
    %cst_134 = arith.constant 5.000000e-01 : f32
    %392 = vector.broadcast %cst_134 : f32 to vector<2x32xf32>
    %393 = arith.mulf %392, %391 : vector<2x32xf32>
    %394 = math.tanh %393 : vector<2x32xf32>
    %cst_135 = arith.constant 5.000000e-01 : f32
    %395 = vector.broadcast %cst_135 : f32 to vector<2x32xf32>
    %396 = arith.mulf %395, %394 : vector<2x32xf32>
    %cst_136 = arith.constant 5.000000e-01 : f32
    %397 = vector.broadcast %cst_136 : f32 to vector<2x32xf32>
    %398 = arith.addf %396, %397 : vector<2x32xf32>
    %399 = arith.mulf %388, %329 : vector<2x32xf32>
    %400 = arith.mulf %380, %390 : vector<2x32xf32>
    %401 = arith.addf %399, %400 : vector<2x32xf32>
    %402 = math.tanh %401 : vector<2x32xf32>
    %403 = arith.mulf %398, %402 : vector<2x32xf32>
    %cst_137 = arith.constant dense<0.000000e+00> : vector<2x128xf32>
    %404 = tpu.matmul %403, %1, %cst_137 {dimension_numbers = #tpu.dot_dimension_numbers<[1], [0], [0], [1], [0, 0, 1, 1], [], []>} : vector<2x32xf32>, vector<32x128xf32>, vector<2x128xf32> -> vector<2x128xf32>
    %cst_138 = arith.constant dense<0.000000e+00> : vector<2x128xf32>
    %405 = tpu.matmul %367, %2, %cst_138 {dimension_numbers = #tpu.dot_dimension_numbers<[1], [0], [0], [1], [0, 0, 1, 1], [], []>} : vector<2x32xf32>, vector<32x128xf32>, vector<2x128xf32> -> vector<2x128xf32>
    %406 = arith.addf %404, %405 : vector<2x128xf32>
    %407 = vector.broadcast %3 : vector<1x128xf32> to vector<2x128xf32>
    %408 = arith.addf %406, %407 : vector<2x128xf32>
    %409 = vector.extract_strided_slice %408 {offsets = [0, 0], sizes = [2, 32], strides = [1, 1]} : vector<2x128xf32> to vector<2x32xf32>
    %cst_139 = arith.constant 5.000000e-01 : f32
    %410 = vector.broadcast %cst_139 : f32 to vector<2x32xf32>
    %411 = arith.mulf %410, %409 : vector<2x32xf32>
    %412 = math.tanh %411 : vector<2x32xf32>
    %cst_140 = arith.constant 5.000000e-01 : f32
    %413 = vector.broadcast %cst_140 : f32 to vector<2x32xf32>
    %414 = arith.mulf %413, %412 : vector<2x32xf32>
    %cst_141 = arith.constant 5.000000e-01 : f32
    %415 = vector.broadcast %cst_141 : f32 to vector<2x32xf32>
    %416 = arith.addf %414, %415 : vector<2x32xf32>
    %417 = vector.extract_strided_slice %408 {offsets = [0, 32], sizes = [2, 32], strides = [1, 1]} : vector<2x128xf32> to vector<2x32xf32>
    %cst_142 = arith.constant 5.000000e-01 : f32
    %418 = vector.broadcast %cst_142 : f32 to vector<2x32xf32>
    %419 = arith.mulf %418, %417 : vector<2x32xf32>
    %420 = math.tanh %419 : vector<2x32xf32>
    %cst_143 = arith.constant 5.000000e-01 : f32
    %421 = vector.broadcast %cst_143 : f32 to vector<2x32xf32>
    %422 = arith.mulf %421, %420 : vector<2x32xf32>
    %cst_144 = arith.constant 5.000000e-01 : f32
    %423 = vector.broadcast %cst_144 : f32 to vector<2x32xf32>
    %424 = arith.addf %422, %423 : vector<2x32xf32>
    %425 = vector.extract_strided_slice %408 {offsets = [0, 64], sizes = [2, 32], strides = [1, 1]} : vector<2x128xf32> to vector<2x32xf32>
    %426 = math.tanh %425 : vector<2x32xf32>
    %427 = vector.extract_strided_slice %408 {offsets = [0, 96], sizes = [2, 32], strides = [1, 1]} : vector<2x128xf32> to vector<2x32xf32>
    %cst_145 = arith.constant 5.000000e-01 : f32
    %428 = vector.broadcast %cst_145 : f32 to vector<2x32xf32>
    %429 = arith.mulf %428, %427 : vector<2x32xf32>
    %430 = math.tanh %429 : vector<2x32xf32>
    %cst_146 = arith.constant 5.000000e-01 : f32
    %431 = vector.broadcast %cst_146 : f32 to vector<2x32xf32>
    %432 = arith.mulf %431, %430 : vector<2x32xf32>
    %cst_147 = arith.constant 5.000000e-01 : f32
    %433 = vector.broadcast %cst_147 : f32 to vector<2x32xf32>
    %434 = arith.addf %432, %433 : vector<2x32xf32>
    %435 = arith.mulf %424, %365 : vector<2x32xf32>
    %436 = arith.mulf %416, %426 : vector<2x32xf32>
    %437 = arith.addf %435, %436 : vector<2x32xf32>
    %438 = math.tanh %437 : vector<2x32xf32>
    %439 = arith.mulf %434, %438 : vector<2x32xf32>
    %c6_i32 = arith.constant 6 : i32
    %440 = arith.index_cast %c6_i32 : i32 to index
    %c0_148 = arith.constant 0 : index
    %c0_149 = arith.constant 0 : index
    %441 = vector.load %arg1[%440, %c0_148, %c0_149] : memref<8x2x128xf32, #tpu.memory_space<vmem>>, vector<1x2x128xf32>
    %442 = vector.shape_cast %441 : vector<1x2x128xf32> to vector<2x128xf32>
    %cst_150 = arith.constant dense<0.000000e+00> : vector<2x128xf32>
    %443 = tpu.matmul %403, %0, %cst_150 {dimension_numbers = #tpu.dot_dimension_numbers<[1], [0], [0], [1], [0, 0, 1, 1], [], []>} : vector<2x32xf32>, vector<32x128xf32>, vector<2x128xf32> -> vector<2x128xf32>
    %444 = arith.addf %442, %443 : vector<2x128xf32>
    %445 = vector.extract_strided_slice %444 {offsets = [0, 0], sizes = [2, 32], strides = [1, 1]} : vector<2x128xf32> to vector<2x32xf32>
    %cst_151 = arith.constant 5.000000e-01 : f32
    %446 = vector.broadcast %cst_151 : f32 to vector<2x32xf32>
    %447 = arith.mulf %446, %445 : vector<2x32xf32>
    %448 = math.tanh %447 : vector<2x32xf32>
    %cst_152 = arith.constant 5.000000e-01 : f32
    %449 = vector.broadcast %cst_152 : f32 to vector<2x32xf32>
    %450 = arith.mulf %449, %448 : vector<2x32xf32>
    %cst_153 = arith.constant 5.000000e-01 : f32
    %451 = vector.broadcast %cst_153 : f32 to vector<2x32xf32>
    %452 = arith.addf %450, %451 : vector<2x32xf32>
    %453 = vector.extract_strided_slice %444 {offsets = [0, 32], sizes = [2, 32], strides = [1, 1]} : vector<2x128xf32> to vector<2x32xf32>
    %cst_154 = arith.constant 5.000000e-01 : f32
    %454 = vector.broadcast %cst_154 : f32 to vector<2x32xf32>
    %455 = arith.mulf %454, %453 : vector<2x32xf32>
    %456 = math.tanh %455 : vector<2x32xf32>
    %cst_155 = arith.constant 5.000000e-01 : f32
    %457 = vector.broadcast %cst_155 : f32 to vector<2x32xf32>
    %458 = arith.mulf %457, %456 : vector<2x32xf32>
    %cst_156 = arith.constant 5.000000e-01 : f32
    %459 = vector.broadcast %cst_156 : f32 to vector<2x32xf32>
    %460 = arith.addf %458, %459 : vector<2x32xf32>
    %461 = vector.extract_strided_slice %444 {offsets = [0, 64], sizes = [2, 32], strides = [1, 1]} : vector<2x128xf32> to vector<2x32xf32>
    %462 = math.tanh %461 : vector<2x32xf32>
    %463 = vector.extract_strided_slice %444 {offsets = [0, 96], sizes = [2, 32], strides = [1, 1]} : vector<2x128xf32> to vector<2x32xf32>
    %cst_157 = arith.constant 5.000000e-01 : f32
    %464 = vector.broadcast %cst_157 : f32 to vector<2x32xf32>
    %465 = arith.mulf %464, %463 : vector<2x32xf32>
    %466 = math.tanh %465 : vector<2x32xf32>
    %cst_158 = arith.constant 5.000000e-01 : f32
    %467 = vector.broadcast %cst_158 : f32 to vector<2x32xf32>
    %468 = arith.mulf %467, %466 : vector<2x32xf32>
    %cst_159 = arith.constant 5.000000e-01 : f32
    %469 = vector.broadcast %cst_159 : f32 to vector<2x32xf32>
    %470 = arith.addf %468, %469 : vector<2x32xf32>
    %471 = arith.mulf %460, %401 : vector<2x32xf32>
    %472 = arith.mulf %452, %462 : vector<2x32xf32>
    %473 = arith.addf %471, %472 : vector<2x32xf32>
    %474 = math.tanh %473 : vector<2x32xf32>
    %475 = arith.mulf %470, %474 : vector<2x32xf32>
    %cst_160 = arith.constant dense<0.000000e+00> : vector<2x128xf32>
    %476 = tpu.matmul %475, %1, %cst_160 {dimension_numbers = #tpu.dot_dimension_numbers<[1], [0], [0], [1], [0, 0, 1, 1], [], []>} : vector<2x32xf32>, vector<32x128xf32>, vector<2x128xf32> -> vector<2x128xf32>
    %cst_161 = arith.constant dense<0.000000e+00> : vector<2x128xf32>
    %477 = tpu.matmul %439, %2, %cst_161 {dimension_numbers = #tpu.dot_dimension_numbers<[1], [0], [0], [1], [0, 0, 1, 1], [], []>} : vector<2x32xf32>, vector<32x128xf32>, vector<2x128xf32> -> vector<2x128xf32>
    %478 = arith.addf %476, %477 : vector<2x128xf32>
    %479 = vector.broadcast %3 : vector<1x128xf32> to vector<2x128xf32>
    %480 = arith.addf %478, %479 : vector<2x128xf32>
    %481 = vector.extract_strided_slice %480 {offsets = [0, 0], sizes = [2, 32], strides = [1, 1]} : vector<2x128xf32> to vector<2x32xf32>
    %cst_162 = arith.constant 5.000000e-01 : f32
    %482 = vector.broadcast %cst_162 : f32 to vector<2x32xf32>
    %483 = arith.mulf %482, %481 : vector<2x32xf32>
    %484 = math.tanh %483 : vector<2x32xf32>
    %cst_163 = arith.constant 5.000000e-01 : f32
    %485 = vector.broadcast %cst_163 : f32 to vector<2x32xf32>
    %486 = arith.mulf %485, %484 : vector<2x32xf32>
    %cst_164 = arith.constant 5.000000e-01 : f32
    %487 = vector.broadcast %cst_164 : f32 to vector<2x32xf32>
    %488 = arith.addf %486, %487 : vector<2x32xf32>
    %489 = vector.extract_strided_slice %480 {offsets = [0, 32], sizes = [2, 32], strides = [1, 1]} : vector<2x128xf32> to vector<2x32xf32>
    %cst_165 = arith.constant 5.000000e-01 : f32
    %490 = vector.broadcast %cst_165 : f32 to vector<2x32xf32>
    %491 = arith.mulf %490, %489 : vector<2x32xf32>
    %492 = math.tanh %491 : vector<2x32xf32>
    %cst_166 = arith.constant 5.000000e-01 : f32
    %493 = vector.broadcast %cst_166 : f32 to vector<2x32xf32>
    %494 = arith.mulf %493, %492 : vector<2x32xf32>
    %cst_167 = arith.constant 5.000000e-01 : f32
    %495 = vector.broadcast %cst_167 : f32 to vector<2x32xf32>
    %496 = arith.addf %494, %495 : vector<2x32xf32>
    %497 = vector.extract_strided_slice %480 {offsets = [0, 64], sizes = [2, 32], strides = [1, 1]} : vector<2x128xf32> to vector<2x32xf32>
    %498 = math.tanh %497 : vector<2x32xf32>
    %499 = vector.extract_strided_slice %480 {offsets = [0, 96], sizes = [2, 32], strides = [1, 1]} : vector<2x128xf32> to vector<2x32xf32>
    %cst_168 = arith.constant 5.000000e-01 : f32
    %500 = vector.broadcast %cst_168 : f32 to vector<2x32xf32>
    %501 = arith.mulf %500, %499 : vector<2x32xf32>
    %502 = math.tanh %501 : vector<2x32xf32>
    %cst_169 = arith.constant 5.000000e-01 : f32
    %503 = vector.broadcast %cst_169 : f32 to vector<2x32xf32>
    %504 = arith.mulf %503, %502 : vector<2x32xf32>
    %cst_170 = arith.constant 5.000000e-01 : f32
    %505 = vector.broadcast %cst_170 : f32 to vector<2x32xf32>
    %506 = arith.addf %504, %505 : vector<2x32xf32>
    %507 = arith.mulf %496, %437 : vector<2x32xf32>
    %508 = arith.mulf %488, %498 : vector<2x32xf32>
    %509 = arith.addf %507, %508 : vector<2x32xf32>
    %510 = math.tanh %509 : vector<2x32xf32>
    %511 = arith.mulf %506, %510 : vector<2x32xf32>
    %c7_i32 = arith.constant 7 : i32
    %512 = arith.index_cast %c7_i32 : i32 to index
    %c0_171 = arith.constant 0 : index
    %c0_172 = arith.constant 0 : index
    %513 = vector.load %arg1[%512, %c0_171, %c0_172] : memref<8x2x128xf32, #tpu.memory_space<vmem>>, vector<1x2x128xf32>
    %514 = vector.shape_cast %513 : vector<1x2x128xf32> to vector<2x128xf32>
    %cst_173 = arith.constant dense<0.000000e+00> : vector<2x128xf32>
    %515 = tpu.matmul %475, %0, %cst_173 {dimension_numbers = #tpu.dot_dimension_numbers<[1], [0], [0], [1], [0, 0, 1, 1], [], []>} : vector<2x32xf32>, vector<32x128xf32>, vector<2x128xf32> -> vector<2x128xf32>
    %516 = arith.addf %514, %515 : vector<2x128xf32>
    %517 = vector.extract_strided_slice %516 {offsets = [0, 0], sizes = [2, 32], strides = [1, 1]} : vector<2x128xf32> to vector<2x32xf32>
    %cst_174 = arith.constant 5.000000e-01 : f32
    %518 = vector.broadcast %cst_174 : f32 to vector<2x32xf32>
    %519 = arith.mulf %518, %517 : vector<2x32xf32>
    %520 = math.tanh %519 : vector<2x32xf32>
    %cst_175 = arith.constant 5.000000e-01 : f32
    %521 = vector.broadcast %cst_175 : f32 to vector<2x32xf32>
    %522 = arith.mulf %521, %520 : vector<2x32xf32>
    %cst_176 = arith.constant 5.000000e-01 : f32
    %523 = vector.broadcast %cst_176 : f32 to vector<2x32xf32>
    %524 = arith.addf %522, %523 : vector<2x32xf32>
    %525 = vector.extract_strided_slice %516 {offsets = [0, 32], sizes = [2, 32], strides = [1, 1]} : vector<2x128xf32> to vector<2x32xf32>
    %cst_177 = arith.constant 5.000000e-01 : f32
    %526 = vector.broadcast %cst_177 : f32 to vector<2x32xf32>
    %527 = arith.mulf %526, %525 : vector<2x32xf32>
    %528 = math.tanh %527 : vector<2x32xf32>
    %cst_178 = arith.constant 5.000000e-01 : f32
    %529 = vector.broadcast %cst_178 : f32 to vector<2x32xf32>
    %530 = arith.mulf %529, %528 : vector<2x32xf32>
    %cst_179 = arith.constant 5.000000e-01 : f32
    %531 = vector.broadcast %cst_179 : f32 to vector<2x32xf32>
    %532 = arith.addf %530, %531 : vector<2x32xf32>
    %533 = vector.extract_strided_slice %516 {offsets = [0, 64], sizes = [2, 32], strides = [1, 1]} : vector<2x128xf32> to vector<2x32xf32>
    %534 = math.tanh %533 : vector<2x32xf32>
    %535 = vector.extract_strided_slice %516 {offsets = [0, 96], sizes = [2, 32], strides = [1, 1]} : vector<2x128xf32> to vector<2x32xf32>
    %cst_180 = arith.constant 5.000000e-01 : f32
    %536 = vector.broadcast %cst_180 : f32 to vector<2x32xf32>
    %537 = arith.mulf %536, %535 : vector<2x32xf32>
    %538 = math.tanh %537 : vector<2x32xf32>
    %cst_181 = arith.constant 5.000000e-01 : f32
    %539 = vector.broadcast %cst_181 : f32 to vector<2x32xf32>
    %540 = arith.mulf %539, %538 : vector<2x32xf32>
    %cst_182 = arith.constant 5.000000e-01 : f32
    %541 = vector.broadcast %cst_182 : f32 to vector<2x32xf32>
    %542 = arith.addf %540, %541 : vector<2x32xf32>
    %543 = arith.mulf %532, %473 : vector<2x32xf32>
    %544 = arith.mulf %524, %534 : vector<2x32xf32>
    %545 = arith.addf %543, %544 : vector<2x32xf32>
    %546 = math.tanh %545 : vector<2x32xf32>
    %547 = arith.mulf %542, %546 : vector<2x32xf32>
    %cst_183 = arith.constant dense<0.000000e+00> : vector<2x128xf32>
    %548 = tpu.matmul %547, %1, %cst_183 {dimension_numbers = #tpu.dot_dimension_numbers<[1], [0], [0], [1], [0, 0, 1, 1], [], []>} : vector<2x32xf32>, vector<32x128xf32>, vector<2x128xf32> -> vector<2x128xf32>
    %cst_184 = arith.constant dense<0.000000e+00> : vector<2x128xf32>
    %549 = tpu.matmul %511, %2, %cst_184 {dimension_numbers = #tpu.dot_dimension_numbers<[1], [0], [0], [1], [0, 0, 1, 1], [], []>} : vector<2x32xf32>, vector<32x128xf32>, vector<2x128xf32> -> vector<2x128xf32>
    %550 = arith.addf %548, %549 : vector<2x128xf32>
    %551 = vector.broadcast %3 : vector<1x128xf32> to vector<2x128xf32>
    %552 = arith.addf %550, %551 : vector<2x128xf32>
    %553 = vector.extract_strided_slice %552 {offsets = [0, 0], sizes = [2, 32], strides = [1, 1]} : vector<2x128xf32> to vector<2x32xf32>
    %cst_185 = arith.constant 5.000000e-01 : f32
    %554 = vector.broadcast %cst_185 : f32 to vector<2x32xf32>
    %555 = arith.mulf %554, %553 : vector<2x32xf32>
    %556 = math.tanh %555 : vector<2x32xf32>
    %cst_186 = arith.constant 5.000000e-01 : f32
    %557 = vector.broadcast %cst_186 : f32 to vector<2x32xf32>
    %558 = arith.mulf %557, %556 : vector<2x32xf32>
    %cst_187 = arith.constant 5.000000e-01 : f32
    %559 = vector.broadcast %cst_187 : f32 to vector<2x32xf32>
    %560 = arith.addf %558, %559 : vector<2x32xf32>
    %561 = vector.extract_strided_slice %552 {offsets = [0, 32], sizes = [2, 32], strides = [1, 1]} : vector<2x128xf32> to vector<2x32xf32>
    %cst_188 = arith.constant 5.000000e-01 : f32
    %562 = vector.broadcast %cst_188 : f32 to vector<2x32xf32>
    %563 = arith.mulf %562, %561 : vector<2x32xf32>
    %564 = math.tanh %563 : vector<2x32xf32>
    %cst_189 = arith.constant 5.000000e-01 : f32
    %565 = vector.broadcast %cst_189 : f32 to vector<2x32xf32>
    %566 = arith.mulf %565, %564 : vector<2x32xf32>
    %cst_190 = arith.constant 5.000000e-01 : f32
    %567 = vector.broadcast %cst_190 : f32 to vector<2x32xf32>
    %568 = arith.addf %566, %567 : vector<2x32xf32>
    %569 = vector.extract_strided_slice %552 {offsets = [0, 64], sizes = [2, 32], strides = [1, 1]} : vector<2x128xf32> to vector<2x32xf32>
    %570 = math.tanh %569 : vector<2x32xf32>
    %571 = vector.extract_strided_slice %552 {offsets = [0, 96], sizes = [2, 32], strides = [1, 1]} : vector<2x128xf32> to vector<2x32xf32>
    %cst_191 = arith.constant 5.000000e-01 : f32
    %572 = vector.broadcast %cst_191 : f32 to vector<2x32xf32>
    %573 = arith.mulf %572, %571 : vector<2x32xf32>
    %574 = math.tanh %573 : vector<2x32xf32>
    %cst_192 = arith.constant 5.000000e-01 : f32
    %575 = vector.broadcast %cst_192 : f32 to vector<2x32xf32>
    %576 = arith.mulf %575, %574 : vector<2x32xf32>
    %cst_193 = arith.constant 5.000000e-01 : f32
    %577 = vector.broadcast %cst_193 : f32 to vector<2x32xf32>
    %578 = arith.addf %576, %577 : vector<2x32xf32>
    %579 = arith.mulf %568, %509 : vector<2x32xf32>
    %580 = arith.mulf %560, %570 : vector<2x32xf32>
    %581 = arith.addf %579, %580 : vector<2x32xf32>
    %582 = math.tanh %581 : vector<2x32xf32>
    %583 = arith.mulf %578, %582 : vector<2x32xf32>
    %c8_i32 = arith.constant 8 : i32
    %c0_194 = arith.constant 0 : index
    %c0_195 = arith.constant 0 : index
    %584 = vector.load %arg6[%c0_194, %c0_195] : memref<2x32xf32, #tpu.memory_space<vmem>>, vector<2x32xf32>
    %585 = arith.mulf %583, %584 : vector<2x32xf32>
    %c0_196 = arith.constant 0 : index
    %c0_197 = arith.constant 0 : index
    %586 = vector.load %arg7[%c0_196, %c0_197] : memref<32x4xf32, #tpu.memory_space<vmem>>, vector<32x4xf32>
    %cst_198 = arith.constant dense<0.000000e+00> : vector<2x4xf32>
    %587 = tpu.matmul %585, %586, %cst_198 {dimension_numbers = #tpu.dot_dimension_numbers<[1], [0], [0], [1], [0, 0, 1, 1], [], []>} : vector<2x32xf32>, vector<32x4xf32>, vector<2x4xf32> -> vector<2x4xf32>
    %c0_199 = arith.constant 0 : index
    %c0_200 = arith.constant 0 : index
    %588 = vector.load %arg8[%c0_199, %c0_200] : memref<1x4xf32, #tpu.memory_space<vmem>>, vector<1x4xf32>
    %589 = vector.broadcast %588 : vector<1x4xf32> to vector<2x4xf32>
    %590 = arith.addf %587, %589 : vector<2x4xf32>
    %c0_201 = arith.constant 0 : index
    %c0_202 = arith.constant 0 : index
    %591 = vector.load %arg10[%c0_201, %c0_202] : memref<2x4xf32, #tpu.memory_space<vmem>>, vector<2x4xf32>
    tpu.vector_store %arg10[%c0_201, %c0_202], %590 {strides = array<i32>} : memref<2x4xf32, #tpu.memory_space<vmem>>, vector<2x4xf32>,
    %cst_203 = arith.constant dense<0xFF800000> : vector<2xf32>
    %592 = vector.multi_reduction <maximumf>, %590, %cst_203 [1] : vector<2x4xf32> to vector<2xf32>
    %593 = vector.shape_cast %592 : vector<2xf32> to vector<2x1xf32>
    %594 = vector.broadcast %593 : vector<2x1xf32> to vector<2x4xf32>
    %595 = arith.subf %590, %594 : vector<2x4xf32>
    %596 = math.exp %595 : vector<2x4xf32>
    %cst_204 = arith.constant dense<0.000000e+00> : vector<2xf32>
    %597 = vector.multi_reduction <add>, %596, %cst_204 [1] : vector<2x4xf32> to vector<2xf32>
    %598 = vector.shape_cast %597 : vector<2xf32> to vector<2x1xf32>
    %599 = vector.broadcast %598 : vector<2x1xf32> to vector<2x4xf32>
    %600 = arith.divf %596, %599 : vector<2x4xf32>
    %c0_205 = arith.constant 0 : index
    %c0_206 = arith.constant 0 : index
    %601 = vector.load %arg9[%c0_205, %c0_206] : memref<2x4xf32, #tpu.memory_space<vmem>>, vector<2x4xf32>
    tpu.vector_store %arg9[%c0_205, %c0_206], %600 {strides = array<i32>} : memref<2x4xf32, #tpu.memory_space<vmem>>, vector<2x4xf32>,
    return
  }
  func.func @transform_0(%arg0: i32) -> (i32, i32, i32) {
    %c0_i32 = arith.constant 0 : i32
    %c0_i32_0 = arith.constant 0 : i32
    %c0_i32_1 = arith.constant 0 : i32
    return %c0_i32, %arg0, %c0_i32_0 : i32, i32, i32
  }
  func.func @transform_1(%arg0: i32) -> (i32, i32) {
    %c0_i32 = arith.constant 0 : i32
    %c0_i32_0 = arith.constant 0 : i32
    %c0_i32_1 = arith.constant 0 : i32
    return %c0_i32, %c0_i32_0 : i32, i32
  }
  func.func @transform_2(%arg0: i32) -> (i32, i32) {
    %c0_i32 = arith.constant 0 : i32
    %c0_i32_0 = arith.constant 0 : i32
    %c0_i32_1 = arith.constant 0 : i32
    return %c0_i32, %c0_i32_0 : i32, i32
  }
  func.func @transform_3(%arg0: i32) -> (i32, i32) {
    %c0_i32 = arith.constant 0 : i32
    %c0_i32_0 = arith.constant 0 : i32
    %c0_i32_1 = arith.constant 0 : i32
    return %c0_i32, %c0_i32_0 : i32, i32
  }
  func.func @transform_4(%arg0: i32) -> (i32, i32) {
    %c0_i32 = arith.constant 0 : i32
    %c0_i32_0 = arith.constant 0 : i32
    %c0_i32_1 = arith.constant 0 : i32
    return %c0_i32, %c0_i32_0 : i32, i32
  }
  func.func @transform_5(%arg0: i32) -> (i32, i32) {
    %c0_i32 = arith.constant 0 : i32
    %c0_i32_0 = arith.constant 0 : i32
    return %arg0, %c0_i32 : i32, i32
  }
  func.func @transform_6(%arg0: i32) -> (i32, i32) {
    %c0_i32 = arith.constant 0 : i32
    %c0_i32_0 = arith.constant 0 : i32
    %c0_i32_1 = arith.constant 0 : i32
    return %c0_i32, %c0_i32_0 : i32, i32
  }
  func.func @transform_7(%arg0: i32) -> (i32, i32) {
    %c0_i32 = arith.constant 0 : i32
    %c0_i32_0 = arith.constant 0 : i32
    %c0_i32_1 = arith.constant 0 : i32
    return %c0_i32, %c0_i32_0 : i32, i32
  }
  func.func @transform_8(%arg0: i32) -> (i32, i32) {
    %c0_i32 = arith.constant 0 : i32
    %c0_i32_0 = arith.constant 0 : i32
    return %arg0, %c0_i32 : i32, i32
  }
  func.func @transform_9(%arg0: i32) -> (i32, i32) {
    %c0_i32 = arith.constant 0 : i32
    %c0_i32_0 = arith.constant 0 : i32
    return %arg0, %c0_i32 : i32, i32
  }
}

</mosaic_0001>

<llo_original>
// kernel: tpu_custom_call.1
$region0: #{tpu_custom_call.1}
  #allocation0 [shape = 'u32[]', space=smem, size = 0x4, offset = 0x4, fixed_abs, tag = 'smem constant byte address 0x4 - core index']
  #allocation1 [shape = 'u32[144,128]{1,0:T(1,128)}', space=vmem, size = 0x12000, scoped, tag = 'internal scratch']
  %s0 = inlined_call_operand.hbm [shape: f32[8,2,128], index: 0, kind: input, shape index: {}]
  %s1 = inlined_call_operand.vmem [shape: f32[32,128], index: 1, kind: input, shape index: {}]
  %s2 = inlined_call_operand.hbm [shape: f32[32,128], index: 2, kind: input, shape index: {}]
  %s3 = inlined_call_operand.hbm [shape: f32[32,128], index: 3, kind: input, shape index: {}]
  %s4 = inlined_call_operand.vmem [shape: f32[1,128], index: 4, kind: input, shape index: {}]
  %s5 = inlined_call_operand.vmem [shape: f32[2,32], index: 5, kind: input, shape index: {}]
  %s6 = inlined_call_operand.vmem [shape: f32[32,4], index: 6, kind: input, shape index: {}]
  %s7 = inlined_call_operand.vmem [shape: f32[1,4], index: 7, kind: input, shape index: {}]
  %s8 = inlined_call_operand.hbm [shape: f32[2,4], index: 8, kind: output, shape index: {0}]
  %s9 = inlined_call_operand.hbm [shape: f32[2,4], index: 9, kind: output, shape index: {1}]
  %10 = xla_tuple %s8, %s9
  %s11 = sld [smem:[#allocation0]]
  $region62: #{tpu_custom_call.1} parent=0
    _
  %s13 = ssub.s32 1, %s11
  %s14 = scalar_select 0, %s13, %s11
  $region1: #{tpu_custom_call.1} parent=0
    #allocation2 [shape = 'u8[8192]{0}', space=vmem, size = 0x2000, scoped, tag = 'input window, operand 0, single buffered']
    #allocation3 [shape = 's32[1]{0}', space=sflag, size = 0x4, scoped, tag = 'scoped memory for tpu_custom_call.1']
    #allocation4 [shape = 's32[1]{0}', space=sflag, size = 0x4, scoped, tag = 'scoped memory for tpu_custom_call.1']
    #allocation5 [shape = 'u8[16384]{0}', space=vmem, size = 0x4000, scoped, tag = 'input window, operand 2, single buffered']
    #allocation6 [shape = 's32[1]{0}', space=sflag, size = 0x4, scoped, tag = 'scoped memory for tpu_custom_call.1']
    #allocation7 [shape = 'u8[16384]{0}', space=vmem, size = 0x4000, scoped, tag = 'input window, operand 3, single buffered']
    #allocation8 [shape = 'u8[1024]{0}', space=vmem, size = 0x400, scoped, tag = 'output window, operand 0, single buffered']
    #allocation9 [shape = 'u8[1024]{0}', space=vmem, size = 0x400, scoped, tag = 'output window, operand 1, single buffered']
    #allocation10 [shape = 's32[1]{0}', space=sflag, size = 0x4, scoped, tag = 'scoped memory for tpu_custom_call.1']
    %15 = vsyncpa [#allocation3], 0
    %16 = vsyncpa [#allocation6], 0
    %17 = vsyncpa [#allocation4], 0
    %18 = vsyncpa [#allocation10], 0
    // Predicated region
    $region2: #{tpu_custom_call.1} parent=1 // pred_check
      _
    $region3: #{tpu_custom_call.1} parent=1 // pred_check_branch
      %20 = sbr.rel (0) target = $region5
    $region4: #{tpu_custom_call.1} parent=1 // pred_region
      %s22 = ssub.s32 256, 256
      %23 = vsyncadd [#allocation3], %s22
      %s24 = sshll.u32 [#allocation2], 4
      %s25 = int_to_ptr.vmem [resolvable:$true] %s24
      %30 = dma.hbm_to_vmem [thread:$0]  %s0, 256, %s25, [#allocation3], 32, 32, 2
    $region5: #{tpu_custom_call.1} parent=1 // pred_fallthru
      _
    // Predicated region
    $region6: #{tpu_custom_call.1} parent=1 // pred_check
      _
    $region7: #{tpu_custom_call.1} parent=1 // pred_check_branch
      %32 = sbr.rel (0) target = $region9
    $region8: #{tpu_custom_call.1} parent=1 // pred_region
      _
    $region9: #{tpu_custom_call.1} parent=1 // pred_fallthru
      _
    // Predicated region
    $region10: #{tpu_custom_call.1} parent=1 // pred_check
      _
    $region11: #{tpu_custom_call.1} parent=1 // pred_check_branch
      %34 = sbr.rel (0) target = $region13
    $region12: #{tpu_custom_call.1} parent=1 // pred_region
      %s36 = ssub.s32 512, 512
      %37 = vsyncadd [#allocation6], %s36
      %s38 = sshll.u32 [#allocation5], 4
      %s39 = int_to_ptr.vmem [resolvable:$true] %s38
      %44 = dma.hbm_to_vmem [thread:$0]  %s2, 512, %s39, [#allocation6], 128, 128, 8
    $region13: #{tpu_custom_call.1} parent=1 // pred_fallthru
      _
    // Predicated region
    $region14: #{tpu_custom_call.1} parent=1 // pred_check
      _
    $region15: #{tpu_custom_call.1} parent=1 // pred_check_branch
      %46 = sbr.rel (0) target = $region17
    $region16: #{tpu_custom_call.1} parent=1 // pred_region
      %s48 = ssub.s32 512, 512
      %49 = vsyncadd [#allocation6], %s48
      %s50 = sshll.u32 [#allocation7], 4
      %s51 = int_to_ptr.vmem [resolvable:$true] %s50
      %56 = dma.hbm_to_vmem [thread:$0]  %s3, 512, %s51, [#allocation6], 128, 128, 8
    $region17: #{tpu_custom_call.1} parent=1 // pred_fallthru
      _
    // Predicated region
    $region18: #{tpu_custom_call.1} parent=1 // pred_check
      _
    $region19: #{tpu_custom_call.1} parent=1 // pred_check_branch
      %58 = sbr.rel (0) target = $region21
    $region20: #{tpu_custom_call.1} parent=1 // pred_region
      _
    $region21: #{tpu_custom_call.1} parent=1 // pred_fallthru
      _
    // Predicated region
    $region22: #{tpu_custom_call.1} parent=1 // pred_check
      _
    $region23: #{tpu_custom_call.1} parent=1 // pred_check_branch
      %60 = sbr.rel (0) target = $region25
    $region24: #{tpu_custom_call.1} parent=1 // pred_region
      _
    $region25: #{tpu_custom_call.1} parent=1 // pred_fallthru
      _
    // Predicated region
    $region26: #{tpu_custom_call.1} parent=1 // pred_check
      _
    $region27: #{tpu_custom_call.1} parent=1 // pred_check_branch
      %62 = sbr.rel (0) target = $region29
    $region28: #{tpu_custom_call.1} parent=1 // pred_region
      _
    $region29: #{tpu_custom_call.1} parent=1 // pred_fallthru
      _
    // Predicated region
    $region30: #{tpu_custom_call.1} parent=1 // pred_check
      _
    $region31: #{tpu_custom_call.1} parent=1 // pred_check_branch
      %64 = sbr.rel (0) target = $region33
    $region32: #{tpu_custom_call.1} parent=1 // pred_region
      _
    $region33: #{tpu_custom_call.1} parent=1 // pred_fallthru
      _
    // Predicated region
    $region34: #{tpu_custom_call.1} parent=1 // pred_check
      _
    $region35: #{tpu_custom_call.1} parent=1 // pred_check_branch
      %66 = sbr.rel (0) target = $region37
    $region36: #{tpu_custom_call.1} parent=1 // pred_region
      %67 = dma.done [#allocation3], 256
    $region37: #{tpu_custom_call.1} parent=1 // pred_fallthru
      _
    // Predicated region
    $region38: #{tpu_custom_call.1} parent=1 // pred_check
      _
    $region39: #{tpu_custom_call.1} parent=1 // pred_check_branch
      %69 = sbr.rel (0) target = $region41
    $region40: #{tpu_custom_call.1} parent=1 // pred_region
      %70 = dma.done [#allocation6], 512
    $region41: #{tpu_custom_call.1} parent=1 // pred_fallthru
      _
    // Predicated region
    $region42: #{tpu_custom_call.1} parent=1 // pred_check
      _
    $region43: #{tpu_custom_call.1} parent=1 // pred_check_branch
      %72 = sbr.rel (0) target = $region45
    $region44: #{tpu_custom_call.1} parent=1 // pred_region
      %73 = dma.done [#allocation6], 512
    $region45: #{tpu_custom_call.1} parent=1 // pred_fallthru
      _
    %v74 = vld [vmem:[%s1] sm:$0xff]
    %v75 = vld [vmem:[%s1 + $0x8] sm:$0xff]
    %v76 = vld [vmem:[%s1 + $0x10] sm:$0xff]
    %v77 = vld [vmem:[%s1 + $0x18] sm:$0xff]
    %v78 = vld [vmem:[#allocation5] sm:$0xff]
    %v79 = vld [vmem:[#allocation5 + $0x8] sm:$0xff]
    %v80 = vld [vmem:[#allocation5 + $0x10] sm:$0xff]
    %v81 = vld [vmem:[#allocation5 + $0x18] sm:$0xff]
    %v82 = vld [vmem:[#allocation7] sm:$0xff]
    %v83 = vld [vmem:[#allocation7 + $0x8] sm:$0xff]
    %v84 = vld [vmem:[#allocation7 + $0x10] sm:$0xff]
    %v85 = vld [vmem:[#allocation7 + $0x18] sm:$0xff]
    %v86 = vld [vmem:[%s4] sm:$0x1]
    %v87 = vld [vmem:[#allocation2] sm:$0x3]
    %vm88 = vcmask 261120
    %v90 = vsel %vm88, 0.0, 0
    %92 = vmatprep.subr.mxu0 0.0
    %93 = vmatpush1.msra.mxu0 %v74
    %94 = vmatprep.subr.mxu0 0.0
    %95 = vmatpush1.msra.mxu0 %v75
    %96 = vmatprep.subr.mxu0 0.0
    %97 = vmatpush1.msra.mxu0 %v76
    %98 = vmatprep.subr.mxu0 0.0
    %99 = vmatpush1.msra.mxu0 %v77
    %100 = vmatprep.subr.mxu0 0.0
    %101 = vmatpush1.msra.mxu0 0.0
    %102 = vmatprep.subr.mxu0 0.0
    %103 = vmatpush1.msra.mxu0 0.0
    %104 = vmatprep.subr.mxu0 0.0
    %105 = vmatpush1.msra.mxu0 0.0
    %106 = vmatprep.subr.mxu0 0.0
    %107 = vmatpush1.msra.mxu0 0.0
    %108 = vmatprep.subr.mxu0 0.0
    %109 = vmatpush1.msra.mxu0 0.0
    %110 = vmatprep.subr.mxu0 0.0
    %111 = vmatpush1.msra.mxu0 0.0
    %112 = vmatprep.subr.mxu0 0.0
    %113 = vmatpush1.msra.mxu0 0.0
    %114 = vmatprep.subr.mxu0 0.0
    %115 = vmatpush1.msra.mxu0 0.0
    %116 = vmatprep.subr.mxu0 0.0
    %117 = vmatpush1.msra.mxu0 0.0
    %118 = vmatprep.subr.mxu0 0.0
    %119 = vmatpush1.msra.mxu0 0.0
    %120 = vmatprep.subr.mxu0 0.0
    %121 = vmatpush1.msra.mxu0 0.0
    %122 = vmatprep.subr.mxu0 0.0
    %123 = vmatpush1.msra.mxu0 0.0
    %124 = vmatprep.subr.mxu0 0.0
    %125 = vmatpush1.msra.mxu0 0.0
    %126 = vmatprep.subr.mxu0 0.0
    %127 = vmatpush1.msra.mxu0 0.0
    %128 = vmatprep.subr.mxu0 0.0
    %129 = vmatpush1.msra.mxu0 0.0
    %130 = vmatprep.subr.mxu0 0.0
    %131 = vmatpush1.msra.mxu0 0.0
    %132 = vmatprep.subr.mxu0 0.0
    %133 = vmatpush1.msra.mxu0 0.0
    %134 = vmatprep.subr.mxu0 0.0
    %135 = vmatpush1.msra.mxu0 0.0
    %136 = vmatprep.subr.mxu0 0.0
    %137 = vmatpush1.msra.mxu0 0.0
    %138 = vmatprep.subr.mxu0 0.0
    %139 = vmatpush1.msra.mxu0 0.0
    %140 = vmatprep.subr.mxu0 0.0
    %141 = vmatpush1.msra.mxu0 0.0
    %142 = vmatprep.subr.mxu0 0.0
    %143 = vmatpush1.msra.mxu0 0.0
    %144 = vmatprep.subr.mxu0 0.0
    %145 = vmatpush1.msra.mxu0 0.0
    %146 = vmatprep.subr.mxu0 0.0
    %147 = vmatpush1.msra.mxu0 0.0
    %148 = vmatprep.subr.mxu0 0.0
    %149 = vmatpush1.msra.mxu0 0.0
    %150 = vmatprep.subr.mxu0 0.0
    %151 = vmatpush1.msra.mxu0 0.0
    %152 = vmatprep.subr.mxu0 0.0
    %153 = vmatpush1.msra.mxu0 0.0
    %154 = vmatprep.subr.mxu0 0.0
    %155 = vmatpush1.msra.mxu0 0.0
    %156 = vmatprep.mubr.f32.mxu0 0.0
    %157 = vmatmul.mubr.f32.gmra.mrb[0].mxu0 %v90
    %v158 = vpop.f32.mrb[0].mxu0
    %v159 = vadd.f32 0.0, %v158
    %v160 = vpop.f32.mrb[0].mxu0
    %161 = vdwg.mxu0
    %v162 = vadd.f32 %v87, %v159
    %v163 = vmul.f32 %v162, 0.5
    %v164 = vtanh.pop %v163
    %v165 = vmul.f32 %v164, 0.5
    %v166 = vadd.f32 %v165, 0.5
    %v167 = vtanh.pop %v162
    %v168 = vmul.f32 %v166, 0.0
    %170 = vrot.lane.b32.xlu0 %v167, 64
    %v171 = vpop.permute.xlu0 %170
    %v173 = vmul.f32 %v166, %v171
    %175 = vrot.lane.b32.xlu0 %v173, 32
    %v176 = vpop.permute.xlu0 %175
    %v178 = vadd.f32 %v168, %v176
    %v179 = vtanh.pop %v178
    %181 = vrot.lane.b32.xlu0 %v179, 64
    %v182 = vpop.permute.xlu0 %181
    %v184 = vmul.f32 %v166, %v182
    %185 = vmatprep.subr.mxu0 0.0
    %186 = vmatpush1.msra.mxu0 %v82
    %187 = vmatprep.subr.mxu0 0.0
    %188 = vmatpush1.msra.mxu0 %v83
    %189 = vmatprep.subr.mxu0 0.0
    %190 = vmatpush1.msra.mxu0 %v84
    %191 = vmatprep.subr.mxu0 0.0
    %192 = vmatpush1.msra.mxu0 %v85
    %193 = vmatprep.subr.mxu0 0.0
    %194 = vmatpush1.msra.mxu0 0.0
    %195 = vmatprep.subr.mxu0 0.0
    %196 = vmatpush1.msra.mxu0 0.0
    %197 = vmatprep.subr.mxu0 0.0
    %198 = vmatpush1.msra.mxu0 0.0
    %199 = vmatprep.subr.mxu0 0.0
    %200 = vmatpush1.msra.mxu0 0.0
    %201 = vmatprep.subr.mxu0 0.0
    %202 = vmatpush1.msra.mxu0 0.0
    %203 = vmatprep.subr.mxu0 0.0
    %204 = vmatpush1.msra.mxu0 0.0
    %205 = vmatprep.subr.mxu0 0.0
    %206 = vmatpush1.msra.mxu0 0.0
    %207 = vmatprep.subr.mxu0 0.0
    %208 = vmatpush1.msra.mxu0 0.0
    %209 = vmatprep.subr.mxu0 0.0
    %210 = vmatpush1.msra.mxu0 0.0
    %211 = vmatprep.subr.mxu0 0.0
    %212 = vmatpush1.msra.mxu0 0.0
    %213 = vmatprep.subr.mxu0 0.0
    %214 = vmatpush1.msra.mxu0 0.0
    %215 = vmatprep.subr.mxu0 0.0
    %216 = vmatpush1.msra.mxu0 0.0
    %217 = vmatprep.subr.mxu0 0.0
    %218 = vmatpush1.msra.mxu0 0.0
    %219 = vmatprep.subr.mxu0 0.0
    %220 = vmatpush1.msra.mxu0 0.0
    %221 = vmatprep.subr.mxu0 0.0
    %222 = vmatpush1.msra.mxu0 0.0
    %223 = vmatprep.subr.mxu0 0.0
    %224 = vmatpush1.msra.mxu0 0.0
    %225 = vmatprep.subr.mxu0 0.0
    %226 = vmatpush1.msra.mxu0 0.0
    %227 = vmatprep.subr.mxu0 0.0
    %228 = vmatpush1.msra.mxu0 0.0
    %229 = vmatprep.subr.mxu0 0.0
    %230 = vmatpush1.msra.mxu0 0.0
    %231 = vmatprep.subr.mxu0 0.0
    %232 = vmatpush1.msra.mxu0 0.0
    %233 = vmatprep.subr.mxu0 0.0
    %234 = vmatpush1.msra.mxu0 0.0
    %235 = vmatprep.subr.mxu0 0.0
    %236 = vmatpush1.msra.mxu0 0.0
    %237 = vmatprep.subr.mxu0 0.0
    %238 = vmatpush1.msra.mxu0 0.0
    %239 = vmatprep.subr.mxu0 0.0
    %240 = vmatpush1.msra.mxu0 0.0
    %241 = vmatprep.subr.mxu0 0.0
    %242 = vmatpush1.msra.mxu0 0.0
    %243 = vmatprep.subr.mxu0 0.0
    %244 = vmatpush1.msra.mxu0 0.0
    %245 = vmatprep.subr.mxu0 0.0
    %246 = vmatpush1.msra.mxu0 0.0
    %247 = vmatprep.subr.mxu0 0.0
    %248 = vmatpush1.msra.mxu0 0.0
    %249 = vmatprep.mubr.f32.mxu0 0.0
    %250 = vmatmul.mubr.f32.gmra.mrb[0].mxu0 %v90
    %v251 = vpop.f32.mrb[0].mxu0
    %v252 = vadd.f32 0.0, %v251
    %v253 = vpop.f32.mrb[0].mxu0
    %254 = vdwg.mxu0
    %256 = vrot.lane.b32.xlu0 %v184, 32
    %v257 = vpop.permute.xlu0 %256
    %v258 = vsel %vm88, %v257, 0
    %260 = vmatprep.subr.mxu0 0.0
    %261 = vmatpush1.msra.mxu0 %v78
    %262 = vmatprep.subr.mxu0 0.0
    %263 = vmatpush1.msra.mxu0 %v79
    %264 = vmatprep.subr.mxu0 0.0
    %265 = vmatpush1.msra.mxu0 %v80
    %266 = vmatprep.subr.mxu0 0.0
    %267 = vmatpush1.msra.mxu0 %v81
    %268 = vmatprep.subr.mxu0 0.0
    %269 = vmatpush1.msra.mxu0 0.0
    %270 = vmatprep.subr.mxu0 0.0
    %271 = vmatpush1.msra.mxu0 0.0
    %272 = vmatprep.subr.mxu0 0.0
    %273 = vmatpush1.msra.mxu0 0.0
    %274 = vmatprep.subr.mxu0 0.0
    %275 = vmatpush1.msra.mxu0 0.0
    %276 = vmatprep.subr.mxu0 0.0
    %277 = vmatpush1.msra.mxu0 0.0
    %278 = vmatprep.subr.mxu0 0.0
    %279 = vmatpush1.msra.mxu0 0.0
    %280 = vmatprep.subr.mxu0 0.0
    %281 = vmatpush1.msra.mxu0 0.0
    %282 = vmatprep.subr.mxu0 0.0
    %283 = vmatpush1.msra.mxu0 0.0
    %284 = vmatprep.subr.mxu0 0.0
    %285 = vmatpush1.msra.mxu0 0.0
    %286 = vmatprep.subr.mxu0 0.0
    %287 = vmatpush1.msra.mxu0 0.0
    %288 = vmatprep.subr.mxu0 0.0
    %289 = vmatpush1.msra.mxu0 0.0
    %290 = vmatprep.subr.mxu0 0.0
    %291 = vmatpush1.msra.mxu0 0.0
    %292 = vmatprep.subr.mxu0 0.0
    %293 = vmatpush1.msra.mxu0 0.0
    %294 = vmatprep.subr.mxu0 0.0
    %295 = vmatpush1.msra.mxu0 0.0
    %296 = vmatprep.subr.mxu0 0.0
    %297 = vmatpush1.msra.mxu0 0.0
    %298 = vmatprep.subr.mxu0 0.0
    %299 = vmatpush1.msra.mxu0 0.0
    %300 = vmatprep.subr.mxu0 0.0
    %301 = vmatpush1.msra.mxu0 0.0
    %302 = vmatprep.subr.mxu0 0.0
    %303 = vmatpush1.msra.mxu0 0.0
    %304 = vmatprep.subr.mxu0 0.0
    %305 = vmatpush1.msra.mxu0 0.0
    %306 = vmatprep.subr.mxu0 0.0
    %307 = vmatpush1.msra.mxu0 0.0
    %308 = vmatprep.subr.mxu0 0.0
    %309 = vmatpush1.msra.mxu0 0.0
    %310 = vmatprep.subr.mxu0 0.0
    %311 = vmatpush1.msra.mxu0 0.0
    %312 = vmatprep.subr.mxu0 0.0
    %313 = vmatpush1.msra.mxu0 0.0
    %314 = vmatprep.subr.mxu0 0.0
    %315 = vmatpush1.msra.mxu0 0.0
    %316 = vmatprep.subr.mxu0 0.0
    %317 = vmatpush1.msra.mxu0 0.0
    %318 = vmatprep.subr.mxu0 0.0
    %319 = vmatpush1.msra.mxu0 0.0
    %320 = vmatprep.subr.mxu0 0.0
    %321 = vmatpush1.msra.mxu0 0.0
    %322 = vmatprep.subr.mxu0 0.0
    %323 = vmatpush1.msra.mxu0 0.0
    %324 = vmatprep.mubr.f32.mxu0 0.0
    %325 = vmatmul.mubr.f32.gmra.mrb[0].mxu0 %v258
    %v326 = vpop.f32.mrb[0].mxu0
    %v327 = vadd.f32 %v252, %v326
    %v328 = vpop.f32.mrb[0].mxu0
    %329 = vdwg.mxu0
    %v331 = vlaneseq
    %v332 = vshrl.u32 %v331, 7
    %v333 = vsub.s32 0, %v332
    %v334 = vrot.slane %v86, %v333
    %v336 = vadd.f32 %v327, %v334
    %v337 = vmul.f32 %v336, 0.5
    %v338 = vtanh.pop %v337
    %v339 = vmul.f32 %v338, 0.5
    %v340 = vadd.f32 %v339, 0.5
    %v341 = vtanh.pop %v336
    %v342 = vmul.f32 %v340, 0.0
    %344 = vrot.lane.b32.xlu0 %v341, 64
    %v345 = vpop.permute.xlu0 %344
    %v347 = vmul.f32 %v340, %v345
    %349 = vrot.lane.b32.xlu0 %v347, 32
    %v350 = vpop.permute.xlu0 %349
    %v352 = vadd.f32 %v342, %v350
    %v353 = vtanh.pop %v352
    %355 = vrot.lane.b32.xlu0 %v353, 64
    %v356 = vpop.permute.xlu0 %355
    %v358 = vmul.f32 %v340, %v356
    %s359 = scalar_lea.vmem [#allocation2], 2
    %v360 = vld [vmem:[%s359] sm:$0x3]
    %361 = vmatprep.subr.mxu0 0.0
    %362 = vmatpush1.msra.mxu0 %v74
    %363 = vmatprep.subr.mxu0 0.0
    %364 = vmatpush1.msra.mxu0 %v75
    %365 = vmatprep.subr.mxu0 0.0
    %366 = vmatpush1.msra.mxu0 %v76
    %367 = vmatprep.subr.mxu0 0.0
    %368 = vmatpush1.msra.mxu0 %v77
    %369 = vmatprep.subr.mxu0 0.0
    %370 = vmatpush1.msra.mxu0 0.0
    %371 = vmatprep.subr.mxu0 0.0
    %372 = vmatpush1.msra.mxu0 0.0
    %373 = vmatprep.subr.mxu0 0.0
    %374 = vmatpush1.msra.mxu0 0.0
    %375 = vmatprep.subr.mxu0 0.0
    %376 = vmatpush1.msra.mxu0 0.0
    %377 = vmatprep.subr.mxu0 0.0
    %378 = vmatpush1.msra.mxu0 0.0
    %379 = vmatprep.subr.mxu0 0.0
    %380 = vmatpush1.msra.mxu0 0.0
    %381 = vmatprep.subr.mxu0 0.0
    %382 = vmatpush1.msra.mxu0 0.0
    %383 = vmatprep.subr.mxu0 0.0
    %384 = vmatpush1.msra.mxu0 0.0
    %385 = vmatprep.subr.mxu0 0.0
    %386 = vmatpush1.msra.mxu0 0.0
    %387 = vmatprep.subr.mxu0 0.0
    %388 = vmatpush1.msra.mxu0 0.0
    %389 = vmatprep.subr.mxu0 0.0
    %390 = vmatpush1.msra.mxu0 0.0
    %391 = vmatprep.subr.mxu0 0.0
    %392 = vmatpush1.msra.mxu0 0.0
    %393 = vmatprep.subr.mxu0 0.0
    %394 = vmatpush1.msra.mxu0 0.0
    %395 = vmatprep.subr.mxu0 0.0
    %396 = vmatpush1.msra.mxu0 0.0
    %397 = vmatprep.subr.mxu0 0.0
    %398 = vmatpush1.msra.mxu0 0.0
    %399 = vmatprep.subr.mxu0 0.0
    %400 = vmatpush1.msra.mxu0 0.0
    %401 = vmatprep.subr.mxu0 0.0
    %402 = vmatpush1.msra.mxu0 0.0
    %403 = vmatprep.subr.mxu0 0.0
    %404 = vmatpush1.msra.mxu0 0.0
    %405 = vmatprep.subr.mxu0 0.0
    %406 = vmatpush1.msra.mxu0 0.0
    %407 = vmatprep.subr.mxu0 0.0
    %408 = vmatpush1.msra.mxu0 0.0
    %409 = vmatprep.subr.mxu0 0.0
    %410 = vmatpush1.msra.mxu0 0.0
    %411 = vmatprep.subr.mxu0 0.0
    %412 = vmatpush1.msra.mxu0 0.0
    %413 = vmatprep.subr.mxu0 0.0
    %414 = vmatpush1.msra.mxu0 0.0
    %415 = vmatprep.subr.mxu0 0.0
    %416 = vmatpush1.msra.mxu0 0.0
    %417 = vmatprep.subr.mxu0 0.0
    %418 = vmatpush1.msra.mxu0 0.0
    %419 = vmatprep.subr.mxu0 0.0
    %420 = vmatpush1.msra.mxu0 0.0
    %421 = vmatprep.subr.mxu0 0.0
    %422 = vmatpush1.msra.mxu0 0.0
    %423 = vmatprep.subr.mxu0 0.0
    %424 = vmatpush1.msra.mxu0 0.0
    %425 = vmatprep.mubr.f32.mxu0 0.0
    %426 = vmatmul.mubr.f32.gmra.mrb[0].mxu0 %v258
    %v427 = vpop.f32.mrb[0].mxu0
    %v428 = vadd.f32 0.0, %v427
    %v429 = vpop.f32.mrb[0].mxu0
    %430 = vdwg.mxu0
    %v431 = vadd.f32 %v360, %v428
    %v432 = vmul.f32 %v431, 0.5
    %v433 = vtanh.pop %v432
    %v434 = vmul.f32 %v433, 0.5
    %v435 = vadd.f32 %v434, 0.5
    %v436 = vtanh.pop %v431
    %v437 = vmul.f32 %v435, %v178
    %439 = vrot.lane.b32.xlu0 %v436, 64
    %v440 = vpop.permute.xlu0 %439
    %v442 = vmul.f32 %v435, %v440
    %444 = vrot.lane.b32.xlu0 %v442, 32
    %v445 = vpop.permute.xlu0 %444
    %v447 = vadd.f32 %v437, %v445
    %v448 = vtanh.pop %v447
    %450 = vrot.lane.b32.xlu0 %v448, 64
    %v451 = vpop.permute.xlu0 %450
    %v453 = vmul.f32 %v435, %v451
    %455 = vrot.lane.b32.xlu0 %v358, 32
    %v456 = vpop.permute.xlu0 %455
    %v457 = vsel %vm88, %v456, 0
    %459 = vmatprep.subr.mxu0 0.0
    %460 = vmatpush1.msra.mxu0 %v82
    %461 = vmatprep.subr.mxu0 0.0
    %462 = vmatpush1.msra.mxu0 %v83
    %463 = vmatprep.subr.mxu0 0.0
    %464 = vmatpush1.msra.mxu0 %v84
    %465 = vmatprep.subr.mxu0 0.0
    %466 = vmatpush1.msra.mxu0 %v85
    %467 = vmatprep.subr.mxu0 0.0
    %468 = vmatpush1.msra.mxu0 0.0
    %469 = vmatprep.subr.mxu0 0.0
    %470 = vmatpush1.msra.mxu0 0.0
    %471 = vmatprep.subr.mxu0 0.0
    %472 = vmatpush1.msra.mxu0 0.0
    %473 = vmatprep.subr.mxu0 0.0
    %474 = vmatpush1.msra.mxu0 0.0
    %475 = vmatprep.subr.mxu0 0.0
    %476 = vmatpush1.msra.mxu0 0.0
    %477 = vmatprep.subr.mxu0 0.0
    %478 = vmatpush1.msra.mxu0 0.0
    %479 = vmatprep.subr.mxu0 0.0
    %480 = vmatpush1.msra.mxu0 0.0
    %481 = vmatprep.subr.mxu0 0.0
    %482 = vmatpush1.msra.mxu0 0.0
    %483 = vmatprep.subr.mxu0 0.0
    %484 = vmatpush1.msra.mxu0 0.0
    %485 = vmatprep.subr.mxu0 0.0
    %486 = vmatpush1.msra.mxu0 0.0
    %487 = vmatprep.subr.mxu0 0.0
    %488 = vmatpush1.msra.mxu0 0.0
    %489 = vmatprep.subr.mxu0 0.0
    %490 = vmatpush1.msra.mxu0 0.0
    %491 = vmatprep.subr.mxu0 0.0
    %492 = vmatpush1.msra.mxu0 0.0
    %493 = vmatprep.subr.mxu0 0.0
    %494 = vmatpush1.msra.mxu0 0.0
    %495 = vmatprep.subr.mxu0 0.0
    %496 = vmatpush1.msra.mxu0 0.0
    %497 = vmatprep.subr.mxu0 0.0
    %498 = vmatpush1.msra.mxu0 0.0
    %499 = vmatprep.subr.mxu0 0.0
    %500 = vmatpush1.msra.mxu0 0.0
    %501 = vmatprep.subr.mxu0 0.0
    %502 = vmatpush1.msra.mxu0 0.0
    %503 = vmatprep.subr.mxu0 0.0
    %504 = vmatpush1.msra.mxu0 0.0
    %505 = vmatprep.subr.mxu0 0.0
    %506 = vmatpush1.msra.mxu0 0.0
    %507 = vmatprep.subr.mxu0 0.0
    %508 = vmatpush1.msra.mxu0 0.0
    %509 = vmatprep.subr.mxu0 0.0
    %510 = vmatpush1.msra.mxu0 0.0
    %511 = vmatprep.subr.mxu0 0.0
    %512 = vmatpush1.msra.mxu0 0.0
    %513 = vmatprep.subr.mxu0 0.0
    %514 = vmatpush1.msra.mxu0 0.0
    %515 = vmatprep.subr.mxu0 0.0
    %516 = vmatpush1.msra.mxu0 0.0
    %517 = vmatprep.subr.mxu0 0.0
    %518 = vmatpush1.msra.mxu0 0.0
    %519 = vmatprep.subr.mxu0 0.0
    %520 = vmatpush1.msra.mxu0 0.0
    %521 = vmatprep.subr.mxu0 0.0
    %522 = vmatpush1.msra.mxu0 0.0
    %523 = vmatprep.mubr.f32.mxu0 0.0
    %524 = vmatmul.mubr.f32.gmra.mrb[0].mxu0 %v457
    %v525 = vpop.f32.mrb[0].mxu0
    %v526 = vadd.f32 0.0, %v525
    %v527 = vpop.f32.mrb[0].mxu0
    %528 = vdwg.mxu0
    %530 = vrot.lane.b32.xlu0 %v453, 32
    %v531 = vpop.permute.xlu0 %530
    %v532 = vsel %vm88, %v531, 0
    %534 = vmatprep.subr.mxu0 0.0
    %535 = vmatpush1.msra.mxu0 %v78
    %536 = vmatprep.subr.mxu0 0.0
    %537 = vmatpush1.msra.mxu0 %v79
    %538 = vmatprep.subr.mxu0 0.0
    %539 = vmatpush1.msra.mxu0 %v80
    %540 = vmatprep.subr.mxu0 0.0
    %541 = vmatpush1.msra.mxu0 %v81
    %542 = vmatprep.subr.mxu0 0.0
    %543 = vmatpush1.msra.mxu0 0.0
    %544 = vmatprep.subr.mxu0 0.0
    %545 = vmatpush1.msra.mxu0 0.0
    %546 = vmatprep.subr.mxu0 0.0
    %547 = vmatpush1.msra.mxu0 0.0
    %548 = vmatprep.subr.mxu0 0.0
    %549 = vmatpush1.msra.mxu0 0.0
    %550 = vmatprep.subr.mxu0 0.0
    %551 = vmatpush1.msra.mxu0 0.0
    %552 = vmatprep.subr.mxu0 0.0
    %553 = vmatpush1.msra.mxu0 0.0
    %554 = vmatprep.subr.mxu0 0.0
    %555 = vmatpush1.msra.mxu0 0.0
    %556 = vmatprep.subr.mxu0 0.0
    %557 = vmatpush1.msra.mxu0 0.0
    %558 = vmatprep.subr.mxu0 0.0
    %559 = vmatpush1.msra.mxu0 0.0
    %560 = vmatprep.subr.mxu0 0.0
    %561 = vmatpush1.msra.mxu0 0.0
    %562 = vmatprep.subr.mxu0 0.0
    %563 = vmatpush1.msra.mxu0 0.0
    %564 = vmatprep.subr.mxu0 0.0
    %565 = vmatpush1.msra.mxu0 0.0
    %566 = vmatprep.subr.mxu0 0.0
    %567 = vmatpush1.msra.mxu0 0.0
    %568 = vmatprep.subr.mxu0 0.0
    %569 = vmatpush1.msra.mxu0 0.0
    %570 = vmatprep.subr.mxu0 0.0
    %571 = vmatpush1.msra.mxu0 0.0
    %572 = vmatprep.subr.mxu0 0.0
    %573 = vmatpush1.msra.mxu0 0.0
    %574 = vmatprep.subr.mxu0 0.0
    %575 = vmatpush1.msra.mxu0 0.0
    %576 = vmatprep.subr.mxu0 0.0
    %577 = vmatpush1.msra.mxu0 0.0
    %578 = vmatprep.subr.mxu0 0.0
    %579 = vmatpush1.msra.mxu0 0.0
    %580 = vmatprep.subr.mxu0 0.0
    %581 = vmatpush1.msra.mxu0 0.0
    %582 = vmatprep.subr.mxu0 0.0
    %583 = vmatpush1.msra.mxu0 0.0
    %584 = vmatprep.subr.mxu0 0.0
    %585 = vmatpush1.msra.mxu0 0.0
    %586 = vmatprep.subr.mxu0 0.0
    %587 = vmatpush1.msra.mxu0 0.0
    %588 = vmatprep.subr.mxu0 0.0
    %589 = vmatpush1.msra.mxu0 0.0
    %590 = vmatprep.subr.mxu0 0.0
    %591 = vmatpush1.msra.mxu0 0.0
    %592 = vmatprep.subr.mxu0 0.0
    %593 = vmatpush1.msra.mxu0 0.0
    %594 = vmatprep.subr.mxu0 0.0
    %595 = vmatpush1.msra.mxu0 0.0
    %596 = vmatprep.subr.mxu0 0.0
    %597 = vmatpush1.msra.mxu0 0.0
    %598 = vmatprep.mubr.f32.mxu0 0.0
    %599 = vmatmul.mubr.f32.gmra.mrb[0].mxu0 %v532
    %v600 = vpop.f32.mrb[0].mxu0
    %v601 = vadd.f32 %v526, %v600
    %v602 = vpop.f32.mrb[0].mxu0
    %603 = vdwg.mxu0
    %v604 = vadd.f32 %v601, %v334
    %v605 = vmul.f32 %v604, 0.5
    %v606 = vtanh.pop %v605
    %v607 = vmul.f32 %v606, 0.5
    %v608 = vadd.f32 %v607, 0.5
    %v609 = vtanh.pop %v604
    %v610 = vmul.f32 %v608, %v352
    %612 = vrot.lane.b32.xlu0 %v609, 64
    %v613 = vpop.permute.xlu0 %612
    %v615 = vmul.f32 %v608, %v613
    %617 = vrot.lane.b32.xlu0 %v615, 32
    %v618 = vpop.permute.xlu0 %617
    %v620 = vadd.f32 %v610, %v618
    %v621 = vtanh.pop %v620
    %623 = vrot.lane.b32.xlu0 %v621, 64
    %v624 = vpop.permute.xlu0 %623
    %v626 = vmul.f32 %v608, %v624
    %s627 = scalar_lea.vmem [#allocation2], 4
    %v628 = vld [vmem:[%s627] sm:$0x3]
    %629 = vmatprep.subr.mxu0 0.0
    %630 = vmatpush1.msra.mxu0 %v74
    %631 = vmatprep.subr.mxu0 0.0
    %632 = vmatpush1.msra.mxu0 %v75
    %633 = vmatprep.subr.mxu0 0.0
    %634 = vmatpush1.msra.mxu0 %v76
    %635 = vmatprep.subr.mxu0 0.0
    %636 = vmatpush1.msra.mxu0 %v77
    %637 = vmatprep.subr.mxu0 0.0
    %638 = vmatpush1.msra.mxu0 0.0
    %639 = vmatprep.subr.mxu0 0.0
    %640 = vmatpush1.msra.mxu0 0.0
    %641 = vmatprep.subr.mxu0 0.0
    %642 = vmatpush1.msra.mxu0 0.0
    %643 = vmatprep.subr.mxu0 0.0
    %644 = vmatpush1.msra.mxu0 0.0
    %645 = vmatprep.subr.mxu0 0.0
    %646 = vmatpush1.msra.mxu0 0.0
    %647 = vmatprep.subr.mxu0 0.0
    %648 = vmatpush1.msra.mxu0 0.0
    %649 = vmatprep.subr.mxu0 0.0
    %650 = vmatpush1.msra.mxu0 0.0
    %651 = vmatprep.subr.mxu0 0.0
    %652 = vmatpush1.msra.mxu0 0.0
    %653 = vmatprep.subr.mxu0 0.0
    %654 = vmatpush1.msra.mxu0 0.0
    %655 = vmatprep.subr.mxu0 0.0
    %656 = vmatpush1.msra.mxu0 0.0
    %657 = vmatprep.subr.mxu0 0.0
    %658 = vmatpush1.msra.mxu0 0.0
    %659 = vmatprep.subr.mxu0 0.0
    %660 = vmatpush1.msra.mxu0 0.0
    %661 = vmatprep.subr.mxu0 0.0
    %662 = vmatpush1.msra.mxu0 0.0
    %663 = vmatprep.subr.mxu0 0.0
    %664 = vmatpush1.msra.mxu0 0.0
    %665 = vmatprep.subr.mxu0 0.0
    %666 = vmatpush1.msra.mxu0 0.0
    %667 = vmatprep.subr.mxu0 0.0
    %668 = vmatpush1.msra.mxu0 0.0
    %669 = vmatprep.subr.mxu0 0.0
    %670 = vmatpush1.msra.mxu0 0.0
    %671 = vmatprep.subr.mxu0 0.0
    %672 = vmatpush1.msra.mxu0 0.0
    %673 = vmatprep.subr.mxu0 0.0
    %674 = vmatpush1.msra.mxu0 0.0
    %675 = vmatprep.subr.mxu0 0.0
    %676 = vmatpush1.msra.mxu0 0.0
    %677 = vmatprep.subr.mxu0 0.0
    %678 = vmatpush1.msra.mxu0 0.0
    %679 = vmatprep.subr.mxu0 0.0
    %680 = vmatpush1.msra.mxu0 0.0
    %681 = vmatprep.subr.mxu0 0.0
    %682 = vmatpush1.msra.mxu0 0.0
    %683 = vmatprep.subr.mxu0 0.0
    %684 = vmatpush1.msra.mxu0 0.0
    %685 = vmatprep.subr.mxu0 0.0
    %686 = vmatpush1.msra.mxu0 0.0
    %687 = vmatprep.subr.mxu0 0.0
    %688 = vmatpush1.msra.mxu0 0.0
    %689 = vmatprep.subr.mxu0 0.0
    %690 = vmatpush1.msra.mxu0 0.0
    %691 = vmatprep.subr.mxu0 0.0
    %692 = vmatpush1.msra.mxu0 0.0
    %693 = vmatprep.mubr.f32.mxu0 0.0
    %694 = vmatmul.mubr.f32.gmra.mrb[0].mxu0 %v532
    %v695 = vpop.f32.mrb[0].mxu0
    %v696 = vadd.f32 0.0, %v695
    %v697 = vpop.f32.mrb[0].mxu0
    %698 = vdwg.mxu0
    %v699 = vadd.f32 %v628, %v696
    %v700 = vmul.f32 %v699, 0.5
    %v701 = vtanh.pop %v700
    %v702 = vmul.f32 %v701, 0.5
    %v703 = vadd.f32 %v702, 0.5
    %v704 = vtanh.pop %v699
    %v705 = vmul.f32 %v703, %v447
    %707 = vrot.lane.b32.xlu0 %v704, 64
    %v708 = vpop.permute.xlu0 %707
    %v710 = vmul.f32 %v703, %v708
    %712 = vrot.lane.b32.xlu0 %v710, 32
    %v713 = vpop.permute.xlu0 %712
    %v715 = vadd.f32 %v705, %v713
    %v716 = vtanh.pop %v715
    %718 = vrot.lane.b32.xlu0 %v716, 64
    %v719 = vpop.permute.xlu0 %718
    %v721 = vmul.f32 %v703, %v719
    %723 = vrot.lane.b32.xlu0 %v626, 32
    %v724 = vpop.permute.xlu0 %723
    %v725 = vsel %vm88, %v724, 0
    %727 = vmatprep.subr.mxu0 0.0
    %728 = vmatpush1.msra.mxu0 %v82
    %729 = vmatprep.subr.mxu0 0.0
    %730 = vmatpush1.msra.mxu0 %v83
    %731 = vmatprep.subr.mxu0 0.0
    %732 = vmatpush1.msra.mxu0 %v84
    %733 = vmatprep.subr.mxu0 0.0
    %734 = vmatpush1.msra.mxu0 %v85
    %735 = vmatprep.subr.mxu0 0.0
    %736 = vmatpush1.msra.mxu0 0.0
    %737 = vmatprep.subr.mxu0 0.0
    %738 = vmatpush1.msra.mxu0 0.0
    %739 = vmatprep.subr.mxu0 0.0
    %740 = vmatpush1.msra.mxu0 0.0
    %741 = vmatprep.subr.mxu0 0.0
    %742 = vmatpush1.msra.mxu0 0.0
    %743 = vmatprep.subr.mxu0 0.0
    %744 = vmatpush1.msra.mxu0 0.0
    %745 = vmatprep.subr.mxu0 0.0
    %746 = vmatpush1.msra.mxu0 0.0
    %747 = vmatprep.subr.mxu0 0.0
    %748 = vmatpush1.msra.mxu0 0.0
    %749 = vmatprep.subr.mxu0 0.0
    %750 = vmatpush1.msra.mxu0 0.0
    %751 = vmatprep.subr.mxu0 0.0
    %752 = vmatpush1.msra.mxu0 0.0
    %753 = vmatprep.subr.mxu0 0.0
    %754 = vmatpush1.msra.mxu0 0.0
    %755 = vmatprep.subr.mxu0 0.0
    %756 = vmatpush1.msra.mxu0 0.0
    %757 = vmatprep.subr.mxu0 0.0
    %758 = vmatpush1.msra.mxu0 0.0
    %759 = vmatprep.subr.mxu0 0.0
    %760 = vmatpush1.msra.mxu0 0.0
    %761 = vmatprep.subr.mxu0 0.0
    %762 = vmatpush1.msra.mxu0 0.0
    %763 = vmatprep.subr.mxu0 0.0
    %764 = vmatpush1.msra.mxu0 0.0
    %765 = vmatprep.subr.mxu0 0.0
    %766 = vmatpush1.msra.mxu0 0.0
    %767 = vmatprep.subr.mxu0 0.0
    %768 = vmatpush1.msra.mxu0 0.0
    %769 = vmatprep.subr.mxu0 0.0
    %770 = vmatpush1.msra.mxu0 0.0
    %771 = vmatprep.subr.mxu0 0.0
    %772 = vmatpush1.msra.mxu0 0.0
    %773 = vmatprep.subr.mxu0 0.0
    %774 = vmatpush1.msra.mxu0 0.0
    %775 = vmatprep.subr.mxu0 0.0
    %776 = vmatpush1.msra.mxu0 0.0
    %777 = vmatprep.subr.mxu0 0.0
    %778 = vmatpush1.msra.mxu0 0.0
    %779 = vmatprep.subr.mxu0 0.0
    %780 = vmatpush1.msra.mxu0 0.0
    %781 = vmatprep.subr.mxu0 0.0
    %782 = vmatpush1.msra.mxu0 0.0
    %783 = vmatprep.subr.mxu0 0.0
    %784 = vmatpush1.msra.mxu0 0.0
    %785 = vmatprep.subr.mxu0 0.0
    %786 = vmatpush1.msra.mxu0 0.0
    %787 = vmatprep.subr.mxu0 0.0
    %788 = vmatpush1.msra.mxu0 0.0
    %789 = vmatprep.subr.mxu0 0.0
    %790 = vmatpush1.msra.mxu0 0.0
    %791 = vmatprep.mubr.f32.mxu0 0.0
    %792 = vmatmul.mubr.f32.gmra.mrb[0].mxu0 %v725
    %v793 = vpop.f32.mrb[0].mxu0
    %v794 = vadd.f32 0.0, %v793
    %v795 = vpop.f32.mrb[0].mxu0
    %796 = vdwg.mxu0
    %798 = vrot.lane.b32.xlu0 %v721, 32
    %v799 = vpop.permute.xlu0 %798
    %v800 = vsel %vm88, %v799, 0
    %802 = vmatprep.subr.mxu0 0.0
    %803 = vmatpush1.msra.mxu0 %v78
    %804 = vmatprep.subr.mxu0 0.0
    %805 = vmatpush1.msra.mxu0 %v79
    %806 = vmatprep.subr.mxu0 0.0
    %807 = vmatpush1.msra.mxu0 %v80
    %808 = vmatprep.subr.mxu0 0.0
    %809 = vmatpush1.msra.mxu0 %v81
    %810 = vmatprep.subr.mxu0 0.0
    %811 = vmatpush1.msra.mxu0 0.0
    %812 = vmatprep.subr.mxu0 0.0
    %813 = vmatpush1.msra.mxu0 0.0
    %814 = vmatprep.subr.mxu0 0.0
    %815 = vmatpush1.msra.mxu0 0.0
    %816 = vmatprep.subr.mxu0 0.0
    %817 = vmatpush1.msra.mxu0 0.0
    %818 = vmatprep.subr.mxu0 0.0
    %819 = vmatpush1.msra.mxu0 0.0
    %820 = vmatprep.subr.mxu0 0.0
    %821 = vmatpush1.msra.mxu0 0.0
    %822 = vmatprep.subr.mxu0 0.0
    %823 = vmatpush1.msra.mxu0 0.0
    %824 = vmatprep.subr.mxu0 0.0
    %825 = vmatpush1.msra.mxu0 0.0
    %826 = vmatprep.subr.mxu0 0.0
    %827 = vmatpush1.msra.mxu0 0.0
    %828 = vmatprep.subr.mxu0 0.0
    %829 = vmatpush1.msra.mxu0 0.0
    %830 = vmatprep.subr.mxu0 0.0
    %831 = vmatpush1.msra.mxu0 0.0
    %832 = vmatprep.subr.mxu0 0.0
    %833 = vmatpush1.msra.mxu0 0.0
    %834 = vmatprep.subr.mxu0 0.0
    %835 = vmatpush1.msra.mxu0 0.0
    %836 = vmatprep.subr.mxu0 0.0
    %837 = vmatpush1.msra.mxu0 0.0
    %838 = vmatprep.subr.mxu0 0.0
    %839 = vmatpush1.msra.mxu0 0.0
    %840 = vmatprep.subr.mxu0 0.0
    %841 = vmatpush1.msra.mxu0 0.0
    %842 = vmatprep.subr.mxu0 0.0
    %843 = vmatpush1.msra.mxu0 0.0
    %844 = vmatprep.subr.mxu0 0.0
    %845 = vmatpush1.msra.mxu0 0.0
    %846 = vmatprep.subr.mxu0 0.0
    %847 = vmatpush1.msra.mxu0 0.0
    %848 = vmatprep.subr.mxu0 0.0
    %849 = vmatpush1.msra.mxu0 0.0
    %850 = vmatprep.subr.mxu0 0.0
    %851 = vmatpush1.msra.mxu0 0.0
    %852 = vmatprep.subr.mxu0 0.0
    %853 = vmatpush1.msra.mxu0 0.0
    %854 = vmatprep.subr.mxu0 0.0
    %855 = vmatpush1.msra.mxu0 0.0
    %856 = vmatprep.subr.mxu0 0.0
    %857 = vmatpush1.msra.mxu0 0.0
    %858 = vmatprep.subr.mxu0 0.0
    %859 = vmatpush1.msra.mxu0 0.0
    %860 = vmatprep.subr.mxu0 0.0
    %861 = vmatpush1.msra.mxu0 0.0
    %862 = vmatprep.subr.mxu0 0.0
    %863 = vmatpush1.msra.mxu0 0.0
    %864 = vmatprep.subr.mxu0 0.0
    %865 = vmatpush1.msra.mxu0 0.0
    %866 = vmatprep.mubr.f32.mxu0 0.0
    %867 = vmatmul.mubr.f32.gmra.mrb[0].mxu0 %v800
    %v868 = vpop.f32.mrb[0].mxu0
    %v869 = vadd.f32 %v794, %v868
    %v870 = vpop.f32.mrb[0].mxu0
    %871 = vdwg.mxu0
    %v872 = vadd.f32 %v869, %v334
    %v873 = vmul.f32 %v872, 0.5
    %v874 = vtanh.pop %v873
    %v875 = vmul.f32 %v874, 0.5
    %v876 = vadd.f32 %v875, 0.5
    %v877 = vtanh.pop %v872
    %v878 = vmul.f32 %v876, %v620
    %880 = vrot.lane.b32.xlu0 %v877, 64
    %v881 = vpop.permute.xlu0 %880
    %v883 = vmul.f32 %v876, %v881
    %885 = vrot.lane.b32.xlu0 %v883, 32
    %v886 = vpop.permute.xlu0 %885
    %v888 = vadd.f32 %v878, %v886
    %v889 = vtanh.pop %v888
    %891 = vrot.lane.b32.xlu0 %v889, 64
    %v892 = vpop.permute.xlu0 %891
    %v894 = vmul.f32 %v876, %v892
    %s895 = scalar_lea.vmem [#allocation2], 6
    %v896 = vld [vmem:[%s895] sm:$0x3]
    %897 = vmatprep.subr.mxu0 0.0
    %898 = vmatpush1.msra.mxu0 %v74
    %899 = vmatprep.subr.mxu0 0.0
    %900 = vmatpush1.msra.mxu0 %v75
    %901 = vmatprep.subr.mxu0 0.0
    %902 = vmatpush1.msra.mxu0 %v76
    %903 = vmatprep.subr.mxu0 0.0
    %904 = vmatpush1.msra.mxu0 %v77
    %905 = vmatprep.subr.mxu0 0.0
    %906 = vmatpush1.msra.mxu0 0.0
    %907 = vmatprep.subr.mxu0 0.0
    %908 = vmatpush1.msra.mxu0 0.0
    %909 = vmatprep.subr.mxu0 0.0
    %910 = vmatpush1.msra.mxu0 0.0
    %911 = vmatprep.subr.mxu0 0.0
    %912 = vmatpush1.msra.mxu0 0.0
    %913 = vmatprep.subr.mxu0 0.0
    %914 = vmatpush1.msra.mxu0 0.0
    %915 = vmatprep.subr.mxu0 0.0
    %916 = vmatpush1.msra.mxu0 0.0
    %917 = vmatprep.subr.mxu0 0.0
    %918 = vmatpush1.msra.mxu0 0.0
    %919 = vmatprep.subr.mxu0 0.0
    %920 = vmatpush1.msra.mxu0 0.0
    %921 = vmatprep.subr.mxu0 0.0
    %922 = vmatpush1.msra.mxu0 0.0
    %923 = vmatprep.subr.mxu0 0.0
    %924 = vmatpush1.msra.mxu0 0.0
    %925 = vmatprep.subr.mxu0 0.0
    %926 = vmatpush1.msra.mxu0 0.0
    %927 = vmatprep.subr.mxu0 0.0
    %928 = vmatpush1.msra.mxu0 0.0
    %929 = vmatprep.subr.mxu0 0.0
    %930 = vmatpush1.msra.mxu0 0.0
    %931 = vmatprep.subr.mxu0 0.0
    %932 = vmatpush1.msra.mxu0 0.0
    %933 = vmatprep.subr.mxu0 0.0
    %934 = vmatpush1.msra.mxu0 0.0
    %935 = vmatprep.subr.mxu0 0.0
    %936 = vmatpush1.msra.mxu0 0.0
    %937 = vmatprep.subr.mxu0 0.0
    %938 = vmatpush1.msra.mxu0 0.0
    %939 = vmatprep.subr.mxu0 0.0
    %940 = vmatpush1.msra.mxu0 0.0
    %941 = vmatprep.subr.mxu0 0.0
    %942 = vmatpush1.msra.mxu0 0.0
    %943 = vmatprep.subr.mxu0 0.0
    %944 = vmatpush1.msra.mxu0 0.0
    %945 = vmatprep.subr.mxu0 0.0
    %946 = vmatpush1.msra.mxu0 0.0
    %947 = vmatprep.subr.mxu0 0.0
    %948 = vmatpush1.msra.mxu0 0.0
    %949 = vmatprep.subr.mxu0 0.0
    %950 = vmatpush1.msra.mxu0 0.0
    %951 = vmatprep.subr.mxu0 0.0
    %952 = vmatpush1.msra.mxu0 0.0
    %953 = vmatprep.subr.mxu0 0.0
    %954 = vmatpush1.msra.mxu0 0.0
    %955 = vmatprep.subr.mxu0 0.0
    %956 = vmatpush1.msra.mxu0 0.0
    %957 = vmatprep.subr.mxu0 0.0
    %958 = vmatpush1.msra.mxu0 0.0
    %959 = vmatprep.subr.mxu0 0.0
    %960 = vmatpush1.msra.mxu0 0.0
    %961 = vmatprep.mubr.f32.mxu0 0.0
    %962 = vmatmul.mubr.f32.gmra.mrb[0].mxu0 %v800
    %v963 = vpop.f32.mrb[0].mxu0
    %v964 = vadd.f32 0.0, %v963
    %v965 = vpop.f32.mrb[0].mxu0
    %966 = vdwg.mxu0
    %v967 = vadd.f32 %v896, %v964
    %v968 = vmul.f32 %v967, 0.5
    %v969 = vtanh.pop %v968
    %v970 = vmul.f32 %v969, 0.5
    %v971 = vadd.f32 %v970, 0.5
    %v972 = vtanh.pop %v967
    %v973 = vmul.f32 %v971, %v715
    %975 = vrot.lane.b32.xlu0 %v972, 64
    %v976 = vpop.permute.xlu0 %975
    %v978 = vmul.f32 %v971, %v976
    %980 = vrot.lane.b32.xlu0 %v978, 32
    %v981 = vpop.permute.xlu0 %980
    %v983 = vadd.f32 %v973, %v981
    %v984 = vtanh.pop %v983
    %986 = vrot.lane.b32.xlu0 %v984, 64
    %v987 = vpop.permute.xlu0 %986
    %v989 = vmul.f32 %v971, %v987
    %991 = vrot.lane.b32.xlu0 %v894, 32
    %v992 = vpop.permute.xlu0 %991
    %v993 = vsel %vm88, %v992, 0
    %995 = vmatprep.subr.mxu0 0.0
    %996 = vmatpush1.msra.mxu0 %v82
    %997 = vmatprep.subr.mxu0 0.0
    %998 = vmatpush1.msra.mxu0 %v83
    %999 = vmatprep.subr.mxu0 0.0
    %1000 = vmatpush1.msra.mxu0 %v84
    %1001 = vmatprep.subr.mxu0 0.0
    %1002 = vmatpush1.msra.mxu0 %v85
    %1003 = vmatprep.subr.mxu0 0.0
    %1004 = vmatpush1.msra.mxu0 0.0
    %1005 = vmatprep.subr.mxu0 0.0
    %1006 = vmatpush1.msra.mxu0 0.0
    %1007 = vmatprep.subr.mxu0 0.0
    %1008 = vmatpush1.msra.mxu0 0.0
    %1009 = vmatprep.subr.mxu0 0.0
    %1010 = vmatpush1.msra.mxu0 0.0
    %1011 = vmatprep.subr.mxu0 0.0
    %1012 = vmatpush1.msra.mxu0 0.0
    %1013 = vmatprep.subr.mxu0 0.0
    %1014 = vmatpush1.msra.mxu0 0.0
    %1015 = vmatprep.subr.mxu0 0.0
    %1016 = vmatpush1.msra.mxu0 0.0
    %1017 = vmatprep.subr.mxu0 0.0
    %1018 = vmatpush1.msra.mxu0 0.0
    %1019 = vmatprep.subr.mxu0 0.0
    %1020 = vmatpush1.msra.mxu0 0.0
    %1021 = vmatprep.subr.mxu0 0.0
    %1022 = vmatpush1.msra.mxu0 0.0
    %1023 = vmatprep.subr.mxu0 0.0
    %1024 = vmatpush1.msra.mxu0 0.0
    %1025 = vmatprep.subr.mxu0 0.0
    %1026 = vmatpush1.msra.mxu0 0.0
    %1027 = vmatprep.subr.mxu0 0.0
    %1028 = vmatpush1.msra.mxu0 0.0
    %1029 = vmatprep.subr.mxu0 0.0
    %1030 = vmatpush1.msra.mxu0 0.0
    %1031 = vmatprep.subr.mxu0 0.0
    %1032 = vmatpush1.msra.mxu0 0.0
    %1033 = vmatprep.subr.mxu0 0.0
    %1034 = vmatpush1.msra.mxu0 0.0
    %1035 = vmatprep.subr.mxu0 0.0
    %1036 = vmatpush1.msra.mxu0 0.0
    %1037 = vmatprep.subr.mxu0 0.0
    %1038 = vmatpush1.msra.mxu0 0.0
    %1039 = vmatprep.subr.mxu0 0.0
    %1040 = vmatpush1.msra.mxu0 0.0
    %1041 = vmatprep.subr.mxu0 0.0
    %1042 = vmatpush1.msra.mxu0 0.0
    %1043 = vmatprep.subr.mxu0 0.0
    %1044 = vmatpush1.msra.mxu0 0.0
    %1045 = vmatprep.subr.mxu0 0.0
    %1046 = vmatpush1.msra.mxu0 0.0
    %1047 = vmatprep.subr.mxu0 0.0
    %1048 = vmatpush1.msra.mxu0 0.0
    %1049 = vmatprep.subr.mxu0 0.0
    %1050 = vmatpush1.msra.mxu0 0.0
    %1051 = vmatprep.subr.mxu0 0.0
    %1052 = vmatpush1.msra.mxu0 0.0
    %1053 = vmatprep.subr.mxu0 0.0
    %1054 = vmatpush1.msra.mxu0 0.0
    %1055 = vmatprep.subr.mxu0 0.0
    %1056 = vmatpush1.msra.mxu0 0.0
    %1057 = vmatprep.subr.mxu0 0.0
    %1058 = vmatpush1.msra.mxu0 0.0
    %1059 = vmatprep.mubr.f32.mxu0 0.0
    %1060 = vmatmul.mubr.f32.gmra.mrb[0].mxu0 %v993
    %v1061 = vpop.f32.mrb[0].mxu0
    %v1062 = vadd.f32 0.0, %v1061
    %v1063 = vpop.f32.mrb[0].mxu0
    %1064 = vdwg.mxu0
    %1066 = vrot.lane.b32.xlu0 %v989, 32
    %v1067 = vpop.permute.xlu0 %1066
    %v1068 = vsel %vm88, %v1067, 0
    %1070 = vmatprep.subr.mxu0 0.0
    %1071 = vmatpush1.msra.mxu0 %v78
    %1072 = vmatprep.subr.mxu0 0.0
    %1073 = vmatpush1.msra.mxu0 %v79
    %1074 = vmatprep.subr.mxu0 0.0
    %1075 = vmatpush1.msra.mxu0 %v80
    %1076 = vmatprep.subr.mxu0 0.0
    %1077 = vmatpush1.msra.mxu0 %v81
    %1078 = vmatprep.subr.mxu0 0.0
    %1079 = vmatpush1.msra.mxu0 0.0
    %1080 = vmatprep.subr.mxu0 0.0
    %1081 = vmatpush1.msra.mxu0 0.0
    %1082 = vmatprep.subr.mxu0 0.0
    %1083 = vmatpush1.msra.mxu0 0.0
    %1084 = vmatprep.subr.mxu0 0.0
    %1085 = vmatpush1.msra.mxu0 0.0
    %1086 = vmatprep.subr.mxu0 0.0
    %1087 = vmatpush1.msra.mxu0 0.0
    %1088 = vmatprep.subr.mxu0 0.0
    %1089 = vmatpush1.msra.mxu0 0.0
    %1090 = vmatprep.subr.mxu0 0.0
    %1091 = vmatpush1.msra.mxu0 0.0
    %1092 = vmatprep.subr.mxu0 0.0
    %1093 = vmatpush1.msra.mxu0 0.0
    %1094 = vmatprep.subr.mxu0 0.0
    %1095 = vmatpush1.msra.mxu0 0.0
    %1096 = vmatprep.subr.mxu0 0.0
    %1097 = vmatpush1.msra.mxu0 0.0
    %1098 = vmatprep.subr.mxu0 0.0
    %1099 = vmatpush1.msra.mxu0 0.0
    %1100 = vmatprep.subr.mxu0 0.0
    %1101 = vmatpush1.msra.mxu0 0.0
    %1102 = vmatprep.subr.mxu0 0.0
    %1103 = vmatpush1.msra.mxu0 0.0
    %1104 = vmatprep.subr.mxu0 0.0
    %1105 = vmatpush1.msra.mxu0 0.0
    %1106 = vmatprep.subr.mxu0 0.0
    %1107 = vmatpush1.msra.mxu0 0.0
    %1108 = vmatprep.subr.mxu0 0.0
    %1109 = vmatpush1.msra.mxu0 0.0
    %1110 = vmatprep.subr.mxu0 0.0
    %1111 = vmatpush1.msra.mxu0 0.0
    %1112 = vmatprep.subr.mxu0 0.0
    %1113 = vmatpush1.msra.mxu0 0.0
    %1114 = vmatprep.subr.mxu0 0.0
    %1115 = vmatpush1.msra.mxu0 0.0
    %1116 = vmatprep.subr.mxu0 0.0
    %1117 = vmatpush1.msra.mxu0 0.0
    %1118 = vmatprep.subr.mxu0 0.0
    %1119 = vmatpush1.msra.mxu0 0.0
    %1120 = vmatprep.subr.mxu0 0.0
    %1121 = vmatpush1.msra.mxu0 0.0
    %1122 = vmatprep.subr.mxu0 0.0
    %1123 = vmatpush1.msra.mxu0 0.0
    %1124 = vmatprep.subr.mxu0 0.0
    %1125 = vmatpush1.msra.mxu0 0.0
    %1126 = vmatprep.subr.mxu0 0.0
    %1127 = vmatpush1.msra.mxu0 0.0
    %1128 = vmatprep.subr.mxu0 0.0
    %1129 = vmatpush1.msra.mxu0 0.0
    %1130 = vmatprep.subr.mxu0 0.0
    %1131 = vmatpush1.msra.mxu0 0.0
    %1132 = vmatprep.subr.mxu0 0.0
    %1133 = vmatpush1.msra.mxu0 0.0
    %1134 = vmatprep.mubr.f32.mxu0 0.0
    %1135 = vmatmul.mubr.f32.gmra.mrb[0].mxu0 %v1068
    %v1136 = vpop.f32.mrb[0].mxu0
    %v1137 = vadd.f32 %v1062, %v1136
    %v1138 = vpop.f32.mrb[0].mxu0
    %1139 = vdwg.mxu0
    %v1140 = vadd.f32 %v1137, %v334
    %v1141 = vmul.f32 %v1140, 0.5
    %v1142 = vtanh.pop %v1141
    %v1143 = vmul.f32 %v1142, 0.5
    %v1144 = vadd.f32 %v1143, 0.5
    %v1145 = vtanh.pop %v1140
    %v1146 = vmul.f32 %v1144, %v888
    %1148 = vrot.lane.b32.xlu0 %v1145, 64
    %v1149 = vpop.permute.xlu0 %1148
    %v1151 = vmul.f32 %v1144, %v1149
    %1153 = vrot.lane.b32.xlu0 %v1151, 32
    %v1154 = vpop.permute.xlu0 %1153
    %v1156 = vadd.f32 %v1146, %v1154
    %v1157 = vtanh.pop %v1156
    %1159 = vrot.lane.b32.xlu0 %v1157, 64
    %v1160 = vpop.permute.xlu0 %1159
    %v1162 = vmul.f32 %v1144, %v1160
    %s1163 = scalar_lea.vmem [#allocation2], 8
    %v1164 = vld [vmem:[%s1163] sm:$0x3]
    %1165 = vmatprep.subr.mxu0 0.0
    %1166 = vmatpush1.msra.mxu0 %v74
    %1167 = vmatprep.subr.mxu0 0.0
    %1168 = vmatpush1.msra.mxu0 %v75
    %1169 = vmatprep.subr.mxu0 0.0
    %1170 = vmatpush1.msra.mxu0 %v76
    %1171 = vmatprep.subr.mxu0 0.0
    %1172 = vmatpush1.msra.mxu0 %v77
    %1173 = vmatprep.subr.mxu0 0.0
    %1174 = vmatpush1.msra.mxu0 0.0
    %1175 = vmatprep.subr.mxu0 0.0
    %1176 = vmatpush1.msra.mxu0 0.0
    %1177 = vmatprep.subr.mxu0 0.0
    %1178 = vmatpush1.msra.mxu0 0.0
    %1179 = vmatprep.subr.mxu0 0.0
    %1180 = vmatpush1.msra.mxu0 0.0
    %1181 = vmatprep.subr.mxu0 0.0
    %1182 = vmatpush1.msra.mxu0 0.0
    %1183 = vmatprep.subr.mxu0 0.0
    %1184 = vmatpush1.msra.mxu0 0.0
    %1185 = vmatprep.subr.mxu0 0.0
    %1186 = vmatpush1.msra.mxu0 0.0
    %1187 = vmatprep.subr.mxu0 0.0
    %1188 = vmatpush1.msra.mxu0 0.0
    %1189 = vmatprep.subr.mxu0 0.0
    %1190 = vmatpush1.msra.mxu0 0.0
    %1191 = vmatprep.subr.mxu0 0.0
    %1192 = vmatpush1.msra.mxu0 0.0
    %1193 = vmatprep.subr.mxu0 0.0
    %1194 = vmatpush1.msra.mxu0 0.0
    %1195 = vmatprep.subr.mxu0 0.0
    %1196 = vmatpush1.msra.mxu0 0.0
    %1197 = vmatprep.subr.mxu0 0.0
    %1198 = vmatpush1.msra.mxu0 0.0
    %1199 = vmatprep.subr.mxu0 0.0
    %1200 = vmatpush1.msra.mxu0 0.0
    %1201 = vmatprep.subr.mxu0 0.0
    %1202 = vmatpush1.msra.mxu0 0.0
    %1203 = vmatprep.subr.mxu0 0.0
    %1204 = vmatpush1.msra.mxu0 0.0
    %1205 = vmatprep.subr.mxu0 0.0
    %1206 = vmatpush1.msra.mxu0 0.0
    %1207 = vmatprep.subr.mxu0 0.0
    %1208 = vmatpush1.msra.mxu0 0.0
    %1209 = vmatprep.subr.mxu0 0.0
    %1210 = vmatpush1.msra.mxu0 0.0
    %1211 = vmatprep.subr.mxu0 0.0
    %1212 = vmatpush1.msra.mxu0 0.0
    %1213 = vmatprep.subr.mxu0 0.0
    %1214 = vmatpush1.msra.mxu0 0.0
    %1215 = vmatprep.subr.mxu0 0.0
    %1216 = vmatpush1.msra.mxu0 0.0
    %1217 = vmatprep.subr.mxu0 0.0
    %1218 = vmatpush1.msra.mxu0 0.0
    %1219 = vmatprep.subr.mxu0 0.0
    %1220 = vmatpush1.msra.mxu0 0.0
    %1221 = vmatprep.subr.mxu0 0.0
    %1222 = vmatpush1.msra.mxu0 0.0
    %1223 = vmatprep.subr.mxu0 0.0
    %1224 = vmatpush1.msra.mxu0 0.0
    %1225 = vmatprep.subr.mxu0 0.0
    %1226 = vmatpush1.msra.mxu0 0.0
    %1227 = vmatprep.subr.mxu0 0.0
    %1228 = vmatpush1.msra.mxu0 0.0
    %1229 = vmatprep.mubr.f32.mxu0 0.0
    %1230 = vmatmul.mubr.f32.gmra.mrb[0].mxu0 %v1068
    %v1231 = vpop.f32.mrb[0].mxu0
    %v1232 = vadd.f32 0.0, %v1231
    %v1233 = vpop.f32.mrb[0].mxu0
    %1234 = vdwg.mxu0
    %v1235 = vadd.f32 %v1164, %v1232
    %v1236 = vmul.f32 %v1235, 0.5
    %v1237 = vtanh.pop %v1236
    %v1238 = vmul.f32 %v1237, 0.5
    %v1239 = vadd.f32 %v1238, 0.5
    %v1240 = vtanh.pop %v1235
    %v1241 = vmul.f32 %v1239, %v983
    %1243 = vrot.lane.b32.xlu0 %v1240, 64
    %v1244 = vpop.permute.xlu0 %1243
    %v1246 = vmul.f32 %v1239, %v1244
    %1248 = vrot.lane.b32.xlu0 %v1246, 32
    %v1249 = vpop.permute.xlu0 %1248
    %v1251 = vadd.f32 %v1241, %v1249
    %v1252 = vtanh.pop %v1251
    %1254 = vrot.lane.b32.xlu0 %v1252, 64
    %v1255 = vpop.permute.xlu0 %1254
    %v1257 = vmul.f32 %v1239, %v1255
    %1259 = vrot.lane.b32.xlu0 %v1162, 32
    %v1260 = vpop.permute.xlu0 %1259
    %v1261 = vsel %vm88, %v1260, 0
    %1263 = vmatprep.subr.mxu0 0.0
    %1264 = vmatpush1.msra.mxu0 %v82
    %1265 = vmatprep.subr.mxu0 0.0
    %1266 = vmatpush1.msra.mxu0 %v83
    %1267 = vmatprep.subr.mxu0 0.0
    %1268 = vmatpush1.msra.mxu0 %v84
    %1269 = vmatprep.subr.mxu0 0.0
    %1270 = vmatpush1.msra.mxu0 %v85
    %1271 = vmatprep.subr.mxu0 0.0
    %1272 = vmatpush1.msra.mxu0 0.0
    %1273 = vmatprep.subr.mxu0 0.0
    %1274 = vmatpush1.msra.mxu0 0.0
    %1275 = vmatprep.subr.mxu0 0.0
    %1276 = vmatpush1.msra.mxu0 0.0
    %1277 = vmatprep.subr.mxu0 0.0
    %1278 = vmatpush1.msra.mxu0 0.0
    %1279 = vmatprep.subr.mxu0 0.0
    %1280 = vmatpush1.msra.mxu0 0.0
    %1281 = vmatprep.subr.mxu0 0.0
    %1282 = vmatpush1.msra.mxu0 0.0
    %1283 = vmatprep.subr.mxu0 0.0
    %1284 = vmatpush1.msra.mxu0 0.0
    %1285 = vmatprep.subr.mxu0 0.0
    %1286 = vmatpush1.msra.mxu0 0.0
    %1287 = vmatprep.subr.mxu0 0.0
    %1288 = vmatpush1.msra.mxu0 0.0
    %1289 = vmatprep.subr.mxu0 0.0
    %1290 = vmatpush1.msra.mxu0 0.0
    %1291 = vmatprep.subr.mxu0 0.0
    %1292 = vmatpush1.msra.mxu0 0.0
    %1293 = vmatprep.subr.mxu0 0.0
    %1294 = vmatpush1.msra.mxu0 0.0
    %1295 = vmatprep.subr.mxu0 0.0
    %1296 = vmatpush1.msra.mxu0 0.0
    %1297 = vmatprep.subr.mxu0 0.0
    %1298 = vmatpush1.msra.mxu0 0.0
    %1299 = vmatprep.subr.mxu0 0.0
    %1300 = vmatpush1.msra.mxu0 0.0
    %1301 = vmatprep.subr.mxu0 0.0
    %1302 = vmatpush1.msra.mxu0 0.0
    %1303 = vmatprep.subr.mxu0 0.0
    %1304 = vmatpush1.msra.mxu0 0.0
    %1305 = vmatprep.subr.mxu0 0.0
    %1306 = vmatpush1.msra.mxu0 0.0
    %1307 = vmatprep.subr.mxu0 0.0
    %1308 = vmatpush1.msra.mxu0 0.0
    %1309 = vmatprep.subr.mxu0 0.0
    %1310 = vmatpush1.msra.mxu0 0.0
    %1311 = vmatprep.subr.mxu0 0.0
    %1312 = vmatpush1.msra.mxu0 0.0
    %1313 = vmatprep.subr.mxu0 0.0
    %1314 = vmatpush1.msra.mxu0 0.0
    %1315 = vmatprep.subr.mxu0 0.0
    %1316 = vmatpush1.msra.mxu0 0.0
    %1317 = vmatprep.subr.mxu0 0.0
    %1318 = vmatpush1.msra.mxu0 0.0
    %1319 = vmatprep.subr.mxu0 0.0
    %1320 = vmatpush1.msra.mxu0 0.0
    %1321 = vmatprep.subr.mxu0 0.0
    %1322 = vmatpush1.msra.mxu0 0.0
    %1323 = vmatprep.subr.mxu0 0.0
    %1324 = vmatpush1.msra.mxu0 0.0
    %1325 = vmatprep.subr.mxu0 0.0
    %1326 = vmatpush1.msra.mxu0 0.0
    %1327 = vmatprep.mubr.f32.mxu0 0.0
    %1328 = vmatmul.mubr.f32.gmra.mrb[0].mxu0 %v1261
    %v1329 = vpop.f32.mrb[0].mxu0
    %v1330 = vadd.f32 0.0, %v1329
    %v1331 = vpop.f32.mrb[0].mxu0
    %1332 = vdwg.mxu0
    %1334 = vrot.lane.b32.xlu0 %v1257, 32
    %v1335 = vpop.permute.xlu0 %1334
    %v1336 = vsel %vm88, %v1335, 0
    %1338 = vmatprep.subr.mxu0 0.0
    %1339 = vmatpush1.msra.mxu0 %v78
    %1340 = vmatprep.subr.mxu0 0.0
    %1341 = vmatpush1.msra.mxu0 %v79
    %1342 = vmatprep.subr.mxu0 0.0
    %1343 = vmatpush1.msra.mxu0 %v80
    %1344 = vmatprep.subr.mxu0 0.0
    %1345 = vmatpush1.msra.mxu0 %v81
    %1346 = vmatprep.subr.mxu0 0.0
    %1347 = vmatpush1.msra.mxu0 0.0
    %1348 = vmatprep.subr.mxu0 0.0
    %1349 = vmatpush1.msra.mxu0 0.0
    %1350 = vmatprep.subr.mxu0 0.0
    %1351 = vmatpush1.msra.mxu0 0.0
    %1352 = vmatprep.subr.mxu0 0.0
    %1353 = vmatpush1.msra.mxu0 0.0
    %1354 = vmatprep.subr.mxu0 0.0
    %1355 = vmatpush1.msra.mxu0 0.0
    %1356 = vmatprep.subr.mxu0 0.0
    %1357 = vmatpush1.msra.mxu0 0.0
    %1358 = vmatprep.subr.mxu0 0.0
    %1359 = vmatpush1.msra.mxu0 0.0
    %1360 = vmatprep.subr.mxu0 0.0
    %1361 = vmatpush1.msra.mxu0 0.0
    %1362 = vmatprep.subr.mxu0 0.0
    %1363 = vmatpush1.msra.mxu0 0.0
    %1364 = vmatprep.subr.mxu0 0.0
    %1365 = vmatpush1.msra.mxu0 0.0
    %1366 = vmatprep.subr.mxu0 0.0
    %1367 = vmatpush1.msra.mxu0 0.0
    %1368 = vmatprep.subr.mxu0 0.0
    %1369 = vmatpush1.msra.mxu0 0.0
    %1370 = vmatprep.subr.mxu0 0.0
    %1371 = vmatpush1.msra.mxu0 0.0
    %1372 = vmatprep.subr.mxu0 0.0
    %1373 = vmatpush1.msra.mxu0 0.0
    %1374 = vmatprep.subr.mxu0 0.0
    %1375 = vmatpush1.msra.mxu0 0.0
    %1376 = vmatprep.subr.mxu0 0.0
    %1377 = vmatpush1.msra.mxu0 0.0
    %1378 = vmatprep.subr.mxu0 0.0
    %1379 = vmatpush1.msra.mxu0 0.0
    %1380 = vmatprep.subr.mxu0 0.0
    %1381 = vmatpush1.msra.mxu0 0.0
    %1382 = vmatprep.subr.mxu0 0.0
    %1383 = vmatpush1.msra.mxu0 0.0
    %1384 = vmatprep.subr.mxu0 0.0
    %1385 = vmatpush1.msra.mxu0 0.0
    %1386 = vmatprep.subr.mxu0 0.0
    %1387 = vmatpush1.msra.mxu0 0.0
    %1388 = vmatprep.subr.mxu0 0.0
    %1389 = vmatpush1.msra.mxu0 0.0
    %1390 = vmatprep.subr.mxu0 0.0
    %1391 = vmatpush1.msra.mxu0 0.0
    %1392 = vmatprep.subr.mxu0 0.0
    %1393 = vmatpush1.msra.mxu0 0.0
    %1394 = vmatprep.subr.mxu0 0.0
    %1395 = vmatpush1.msra.mxu0 0.0
    %1396 = vmatprep.subr.mxu0 0.0
    %1397 = vmatpush1.msra.mxu0 0.0
    %1398 = vmatprep.subr.mxu0 0.0
    %1399 = vmatpush1.msra.mxu0 0.0
    %1400 = vmatprep.subr.mxu0 0.0
    %1401 = vmatpush1.msra.mxu0 0.0
    %1402 = vmatprep.mubr.f32.mxu0 0.0
    %1403 = vmatmul.mubr.f32.gmra.mrb[0].mxu0 %v1336
    %v1404 = vpop.f32.mrb[0].mxu0
    %v1405 = vadd.f32 %v1330, %v1404
    %v1406 = vpop.f32.mrb[0].mxu0
    %1407 = vdwg.mxu0
    %v1408 = vadd.f32 %v1405, %v334
    %v1409 = vmul.f32 %v1408, 0.5
    %v1410 = vtanh.pop %v1409
    %v1411 = vmul.f32 %v1410, 0.5
    %v1412 = vadd.f32 %v1411, 0.5
    %v1413 = vtanh.pop %v1408
    %v1414 = vmul.f32 %v1412, %v1156
    %1416 = vrot.lane.b32.xlu0 %v1413, 64
    %v1417 = vpop.permute.xlu0 %1416
    %v1419 = vmul.f32 %v1412, %v1417
    %1421 = vrot.lane.b32.xlu0 %v1419, 32
    %v1422 = vpop.permute.xlu0 %1421
    %v1424 = vadd.f32 %v1414, %v1422
    %v1425 = vtanh.pop %v1424
    %1427 = vrot.lane.b32.xlu0 %v1425, 64
    %v1428 = vpop.permute.xlu0 %1427
    %v1430 = vmul.f32 %v1412, %v1428
    %s1431 = scalar_lea.vmem [#allocation2], 10
    %v1432 = vld [vmem:[%s1431] sm:$0x3]
    %1433 = vmatprep.subr.mxu0 0.0
    %1434 = vmatpush1.msra.mxu0 %v74
    %1435 = vmatprep.subr.mxu0 0.0
    %1436 = vmatpush1.msra.mxu0 %v75
    %1437 = vmatprep.subr.mxu0 0.0
    %1438 = vmatpush1.msra.mxu0 %v76
    %1439 = vmatprep.subr.mxu0 0.0
    %1440 = vmatpush1.msra.mxu0 %v77
    %1441 = vmatprep.subr.mxu0 0.0
    %1442 = vmatpush1.msra.mxu0 0.0
    %1443 = vmatprep.subr.mxu0 0.0
    %1444 = vmatpush1.msra.mxu0 0.0
    %1445 = vmatprep.subr.mxu0 0.0
    %1446 = vmatpush1.msra.mxu0 0.0
    %1447 = vmatprep.subr.mxu0 0.0
    %1448 = vmatpush1.msra.mxu0 0.0
    %1449 = vmatprep.subr.mxu0 0.0
    %1450 = vmatpush1.msra.mxu0 0.0
    %1451 = vmatprep.subr.mxu0 0.0
    %1452 = vmatpush1.msra.mxu0 0.0
    %1453 = vmatprep.subr.mxu0 0.0
    %1454 = vmatpush1.msra.mxu0 0.0
    %1455 = vmatprep.subr.mxu0 0.0
    %1456 = vmatpush1.msra.mxu0 0.0
    %1457 = vmatprep.subr.mxu0 0.0
    %1458 = vmatpush1.msra.mxu0 0.0
    %1459 = vmatprep.subr.mxu0 0.0
    %1460 = vmatpush1.msra.mxu0 0.0
    %1461 = vmatprep.subr.mxu0 0.0
    %1462 = vmatpush1.msra.mxu0 0.0
    %1463 = vmatprep.subr.mxu0 0.0
    %1464 = vmatpush1.msra.mxu0 0.0
    %1465 = vmatprep.subr.mxu0 0.0
    %1466 = vmatpush1.msra.mxu0 0.0
    %1467 = vmatprep.subr.mxu0 0.0
    %1468 = vmatpush1.msra.mxu0 0.0
    %1469 = vmatprep.subr.mxu0 0.0
    %1470 = vmatpush1.msra.mxu0 0.0
    %1471 = vmatprep.subr.mxu0 0.0
    %1472 = vmatpush1.msra.mxu0 0.0
    %1473 = vmatprep.subr.mxu0 0.0
    %1474 = vmatpush1.msra.mxu0 0.0
    %1475 = vmatprep.subr.mxu0 0.0
    %1476 = vmatpush1.msra.mxu0 0.0
    %1477 = vmatprep.subr.mxu0 0.0
    %1478 = vmatpush1.msra.mxu0 0.0
    %1479 = vmatprep.subr.mxu0 0.0
    %1480 = vmatpush1.msra.mxu0 0.0
    %1481 = vmatprep.subr.mxu0 0.0
    %1482 = vmatpush1.msra.mxu0 0.0
    %1483 = vmatprep.subr.mxu0 0.0
    %1484 = vmatpush1.msra.mxu0 0.0
    %1485 = vmatprep.subr.mxu0 0.0
    %1486 = vmatpush1.msra.mxu0 0.0
    %1487 = vmatprep.subr.mxu0 0.0
    %1488 = vmatpush1.msra.mxu0 0.0
    %1489 = vmatprep.subr.mxu0 0.0
    %1490 = vmatpush1.msra.mxu0 0.0
    %1491 = vmatprep.subr.mxu0 0.0
    %1492 = vmatpush1.msra.mxu0 0.0
    %1493 = vmatprep.subr.mxu0 0.0
    %1494 = vmatpush1.msra.mxu0 0.0
    %1495 = vmatprep.subr.mxu0 0.0
    %1496 = vmatpush1.msra.mxu0 0.0
    %1497 = vmatprep.mubr.f32.mxu0 0.0
    %1498 = vmatmul.mubr.f32.gmra.mrb[0].mxu0 %v1336
    %v1499 = vpop.f32.mrb[0].mxu0
    %v1500 = vadd.f32 0.0, %v1499
    %v1501 = vpop.f32.mrb[0].mxu0
    %1502 = vdwg.mxu0
    %v1503 = vadd.f32 %v1432, %v1500
    %v1504 = vmul.f32 %v1503, 0.5
    %v1505 = vtanh.pop %v1504
    %v1506 = vmul.f32 %v1505, 0.5
    %v1507 = vadd.f32 %v1506, 0.5
    %v1508 = vtanh.pop %v1503
    %v1509 = vmul.f32 %v1507, %v1251
    %1511 = vrot.lane.b32.xlu0 %v1508, 64
    %v1512 = vpop.permute.xlu0 %1511
    %v1514 = vmul.f32 %v1507, %v1512
    %1516 = vrot.lane.b32.xlu0 %v1514, 32
    %v1517 = vpop.permute.xlu0 %1516
    %v1519 = vadd.f32 %v1509, %v1517
    %v1520 = vtanh.pop %v1519
    %1522 = vrot.lane.b32.xlu0 %v1520, 64
    %v1523 = vpop.permute.xlu0 %1522
    %v1525 = vmul.f32 %v1507, %v1523
    %1527 = vrot.lane.b32.xlu0 %v1430, 32
    %v1528 = vpop.permute.xlu0 %1527
    %v1529 = vsel %vm88, %v1528, 0
    %1531 = vmatprep.subr.mxu0 0.0
    %1532 = vmatpush1.msra.mxu0 %v82
    %1533 = vmatprep.subr.mxu0 0.0
    %1534 = vmatpush1.msra.mxu0 %v83
    %1535 = vmatprep.subr.mxu0 0.0
    %1536 = vmatpush1.msra.mxu0 %v84
    %1537 = vmatprep.subr.mxu0 0.0
    %1538 = vmatpush1.msra.mxu0 %v85
    %1539 = vmatprep.subr.mxu0 0.0
    %1540 = vmatpush1.msra.mxu0 0.0
    %1541 = vmatprep.subr.mxu0 0.0
    %1542 = vmatpush1.msra.mxu0 0.0
    %1543 = vmatprep.subr.mxu0 0.0
    %1544 = vmatpush1.msra.mxu0 0.0
    %1545 = vmatprep.subr.mxu0 0.0
    %1546 = vmatpush1.msra.mxu0 0.0
    %1547 = vmatprep.subr.mxu0 0.0
    %1548 = vmatpush1.msra.mxu0 0.0
    %1549 = vmatprep.subr.mxu0 0.0
    %1550 = vmatpush1.msra.mxu0 0.0
    %1551 = vmatprep.subr.mxu0 0.0
    %1552 = vmatpush1.msra.mxu0 0.0
    %1553 = vmatprep.subr.mxu0 0.0
    %1554 = vmatpush1.msra.mxu0 0.0
    %1555 = vmatprep.subr.mxu0 0.0
    %1556 = vmatpush1.msra.mxu0 0.0
    %1557 = vmatprep.subr.mxu0 0.0
    %1558 = vmatpush1.msra.mxu0 0.0
    %1559 = vmatprep.subr.mxu0 0.0
    %1560 = vmatpush1.msra.mxu0 0.0
    %1561 = vmatprep.subr.mxu0 0.0
    %1562 = vmatpush1.msra.mxu0 0.0
    %1563 = vmatprep.subr.mxu0 0.0
    %1564 = vmatpush1.msra.mxu0 0.0
    %1565 = vmatprep.subr.mxu0 0.0
    %1566 = vmatpush1.msra.mxu0 0.0
    %1567 = vmatprep.subr.mxu0 0.0
    %1568 = vmatpush1.msra.mxu0 0.0
    %1569 = vmatprep.subr.mxu0 0.0
    %1570 = vmatpush1.msra.mxu0 0.0
    %1571 = vmatprep.subr.mxu0 0.0
    %1572 = vmatpush1.msra.mxu0 0.0
    %1573 = vmatprep.subr.mxu0 0.0
    %1574 = vmatpush1.msra.mxu0 0.0
    %1575 = vmatprep.subr.mxu0 0.0
    %1576 = vmatpush1.msra.mxu0 0.0
    %1577 = vmatprep.subr.mxu0 0.0
    %1578 = vmatpush1.msra.mxu0 0.0
    %1579 = vmatprep.subr.mxu0 0.0
    %1580 = vmatpush1.msra.mxu0 0.0
    %1581 = vmatprep.subr.mxu0 0.0
    %1582 = vmatpush1.msra.mxu0 0.0
    %1583 = vmatprep.subr.mxu0 0.0
    %1584 = vmatpush1.msra.mxu0 0.0
    %1585 = vmatprep.subr.mxu0 0.0
    %1586 = vmatpush1.msra.mxu0 0.0
    %1587 = vmatprep.subr.mxu0 0.0
    %1588 = vmatpush1.msra.mxu0 0.0
    %1589 = vmatprep.subr.mxu0 0.0
    %1590 = vmatpush1.msra.mxu0 0.0
    %1591 = vmatprep.subr.mxu0 0.0
    %1592 = vmatpush1.msra.mxu0 0.0
    %1593 = vmatprep.subr.mxu0 0.0
    %1594 = vmatpush1.msra.mxu0 0.0
    %1595 = vmatprep.mubr.f32.mxu0 0.0
    %1596 = vmatmul.mubr.f32.gmra.mrb[0].mxu0 %v1529
    %v1597 = vpop.f32.mrb[0].mxu0
    %v1598 = vadd.f32 0.0, %v1597
    %v1599 = vpop.f32.mrb[0].mxu0
    %1600 = vdwg.mxu0
    %1602 = vrot.lane.b32.xlu0 %v1525, 32
    %v1603 = vpop.permute.xlu0 %1602
    %v1604 = vsel %vm88, %v1603, 0
    %1606 = vmatprep.subr.mxu0 0.0
    %1607 = vmatpush1.msra.mxu0 %v78
    %1608 = vmatprep.subr.mxu0 0.0
    %1609 = vmatpush1.msra.mxu0 %v79
    %1610 = vmatprep.subr.mxu0 0.0
    %1611 = vmatpush1.msra.mxu0 %v80
    %1612 = vmatprep.subr.mxu0 0.0
    %1613 = vmatpush1.msra.mxu0 %v81
    %1614 = vmatprep.subr.mxu0 0.0
    %1615 = vmatpush1.msra.mxu0 0.0
    %1616 = vmatprep.subr.mxu0 0.0
    %1617 = vmatpush1.msra.mxu0 0.0
    %1618 = vmatprep.subr.mxu0 0.0
    %1619 = vmatpush1.msra.mxu0 0.0
    %1620 = vmatprep.subr.mxu0 0.0
    %1621 = vmatpush1.msra.mxu0 0.0
    %1622 = vmatprep.subr.mxu0 0.0
    %1623 = vmatpush1.msra.mxu0 0.0
    %1624 = vmatprep.subr.mxu0 0.0
    %1625 = vmatpush1.msra.mxu0 0.0
    %1626 = vmatprep.subr.mxu0 0.0
    %1627 = vmatpush1.msra.mxu0 0.0
    %1628 = vmatprep.subr.mxu0 0.0
    %1629 = vmatpush1.msra.mxu0 0.0
    %1630 = vmatprep.subr.mxu0 0.0
    %1631 = vmatpush1.msra.mxu0 0.0
    %1632 = vmatprep.subr.mxu0 0.0
    %1633 = vmatpush1.msra.mxu0 0.0
    %1634 = vmatprep.subr.mxu0 0.0
    %1635 = vmatpush1.msra.mxu0 0.0
    %1636 = vmatprep.subr.mxu0 0.0
    %1637 = vmatpush1.msra.mxu0 0.0
    %1638 = vmatprep.subr.mxu0 0.0
    %1639 = vmatpush1.msra.mxu0 0.0
    %1640 = vmatprep.subr.mxu0 0.0
    %1641 = vmatpush1.msra.mxu0 0.0
    %1642 = vmatprep.subr.mxu0 0.0
    %1643 = vmatpush1.msra.mxu0 0.0
    %1644 = vmatprep.subr.mxu0 0.0
    %1645 = vmatpush1.msra.mxu0 0.0
    %1646 = vmatprep.subr.mxu0 0.0
    %1647 = vmatpush1.msra.mxu0 0.0
    %1648 = vmatprep.subr.mxu0 0.0
    %1649 = vmatpush1.msra.mxu0 0.0
    %1650 = vmatprep.subr.mxu0 0.0
    %1651 = vmatpush1.msra.mxu0 0.0
    %1652 = vmatprep.subr.mxu0 0.0
    %1653 = vmatpush1.msra.mxu0 0.0
    %1654 = vmatprep.subr.mxu0 0.0
    %1655 = vmatpush1.msra.mxu0 0.0
    %1656 = vmatprep.subr.mxu0 0.0
    %1657 = vmatpush1.msra.mxu0 0.0
    %1658 = vmatprep.subr.mxu0 0.0
    %1659 = vmatpush1.msra.mxu0 0.0
    %1660 = vmatprep.subr.mxu0 0.0
    %1661 = vmatpush1.msra.mxu0 0.0
    %1662 = vmatprep.subr.mxu0 0.0
    %1663 = vmatpush1.msra.mxu0 0.0
    %1664 = vmatprep.subr.mxu0 0.0
    %1665 = vmatpush1.msra.mxu0 0.0
    %1666 = vmatprep.subr.mxu0 0.0
    %1667 = vmatpush1.msra.mxu0 0.0
    %1668 = vmatprep.subr.mxu0 0.0
    %1669 = vmatpush1.msra.mxu0 0.0
    %1670 = vmatprep.mubr.f32.mxu0 0.0
    %1671 = vmatmul.mubr.f32.gmra.mrb[0].mxu0 %v1604
    %v1672 = vpop.f32.mrb[0].mxu0
    %v1673 = vadd.f32 %v1598, %v1672
    %v1674 = vpop.f32.mrb[0].mxu0
    %1675 = vdwg.mxu0
    %v1676 = vadd.f32 %v1673, %v334
    %v1677 = vmul.f32 %v1676, 0.5
    %v1678 = vtanh.pop %v1677
    %v1679 = vmul.f32 %v1678, 0.5
    %v1680 = vadd.f32 %v1679, 0.5
    %v1681 = vtanh.pop %v1676
    %v1682 = vmul.f32 %v1680, %v1424
    %1684 = vrot.lane.b32.xlu0 %v1681, 64
    %v1685 = vpop.permute.xlu0 %1684
    %v1687 = vmul.f32 %v1680, %v1685
    %1689 = vrot.lane.b32.xlu0 %v1687, 32
    %v1690 = vpop.permute.xlu0 %1689
    %v1692 = vadd.f32 %v1682, %v1690
    %v1693 = vtanh.pop %v1692
    %1695 = vrot.lane.b32.xlu0 %v1693, 64
    %v1696 = vpop.permute.xlu0 %1695
    %v1698 = vmul.f32 %v1680, %v1696
    %s1699 = scalar_lea.vmem [#allocation2], 12
    %v1700 = vld [vmem:[%s1699] sm:$0x3]
    %1701 = vmatprep.subr.mxu0 0.0
    %1702 = vmatpush1.msra.mxu0 %v74
    %1703 = vmatprep.subr.mxu0 0.0
    %1704 = vmatpush1.msra.mxu0 %v75
    %1705 = vmatprep.subr.mxu0 0.0
    %1706 = vmatpush1.msra.mxu0 %v76
    %1707 = vmatprep.subr.mxu0 0.0
    %1708 = vmatpush1.msra.mxu0 %v77
    %1709 = vmatprep.subr.mxu0 0.0
    %1710 = vmatpush1.msra.mxu0 0.0
    %1711 = vmatprep.subr.mxu0 0.0
    %1712 = vmatpush1.msra.mxu0 0.0
    %1713 = vmatprep.subr.mxu0 0.0
    %1714 = vmatpush1.msra.mxu0 0.0
    %1715 = vmatprep.subr.mxu0 0.0
    %1716 = vmatpush1.msra.mxu0 0.0
    %1717 = vmatprep.subr.mxu0 0.0
    %1718 = vmatpush1.msra.mxu0 0.0
    %1719 = vmatprep.subr.mxu0 0.0
    %1720 = vmatpush1.msra.mxu0 0.0
    %1721 = vmatprep.subr.mxu0 0.0
    %1722 = vmatpush1.msra.mxu0 0.0
    %1723 = vmatprep.subr.mxu0 0.0
    %1724 = vmatpush1.msra.mxu0 0.0
    %1725 = vmatprep.subr.mxu0 0.0
    %1726 = vmatpush1.msra.mxu0 0.0
    %1727 = vmatprep.subr.mxu0 0.0
    %1728 = vmatpush1.msra.mxu0 0.0
    %1729 = vmatprep.subr.mxu0 0.0
    %1730 = vmatpush1.msra.mxu0 0.0
    %1731 = vmatprep.subr.mxu0 0.0
    %1732 = vmatpush1.msra.mxu0 0.0
    %1733 = vmatprep.subr.mxu0 0.0
    %1734 = vmatpush1.msra.mxu0 0.0
    %1735 = vmatprep.subr.mxu0 0.0
    %1736 = vmatpush1.msra.mxu0 0.0
    %1737 = vmatprep.subr.mxu0 0.0
    %1738 = vmatpush1.msra.mxu0 0.0
    %1739 = vmatprep.subr.mxu0 0.0
    %1740 = vmatpush1.msra.mxu0 0.0
    %1741 = vmatprep.subr.mxu0 0.0
    %1742 = vmatpush1.msra.mxu0 0.0
    %1743 = vmatprep.subr.mxu0 0.0
    %1744 = vmatpush1.msra.mxu0 0.0
    %1745 = vmatprep.subr.mxu0 0.0
    %1746 = vmatpush1.msra.mxu0 0.0
    %1747 = vmatprep.subr.mxu0 0.0
    %1748 = vmatpush1.msra.mxu0 0.0
    %1749 = vmatprep.subr.mxu0 0.0
    %1750 = vmatpush1.msra.mxu0 0.0
    %1751 = vmatprep.subr.mxu0 0.0
    %1752 = vmatpush1.msra.mxu0 0.0
    %1753 = vmatprep.subr.mxu0 0.0
    %1754 = vmatpush1.msra.mxu0 0.0
    %1755 = vmatprep.subr.mxu0 0.0
    %1756 = vmatpush1.msra.mxu0 0.0
    %1757 = vmatprep.subr.mxu0 0.0
    %1758 = vmatpush1.msra.mxu0 0.0
    %1759 = vmatprep.subr.mxu0 0.0
    %1760 = vmatpush1.msra.mxu0 0.0
    %1761 = vmatprep.subr.mxu0 0.0
    %1762 = vmatpush1.msra.mxu0 0.0
    %1763 = vmatprep.subr.mxu0 0.0
    %1764 = vmatpush1.msra.mxu0 0.0
    %1765 = vmatprep.mubr.f32.mxu0 0.0
    %1766 = vmatmul.mubr.f32.gmra.mrb[0].mxu0 %v1604
    %v1767 = vpop.f32.mrb[0].mxu0
    %v1768 = vadd.f32 0.0, %v1767
    %v1769 = vpop.f32.mrb[0].mxu0
    %1770 = vdwg.mxu0
    %v1771 = vadd.f32 %v1700, %v1768
    %v1772 = vmul.f32 %v1771, 0.5
    %v1773 = vtanh.pop %v1772
    %v1774 = vmul.f32 %v1773, 0.5
    %v1775 = vadd.f32 %v1774, 0.5
    %v1776 = vtanh.pop %v1771
    %v1777 = vmul.f32 %v1775, %v1519
    %1779 = vrot.lane.b32.xlu0 %v1776, 64
    %v1780 = vpop.permute.xlu0 %1779
    %v1782 = vmul.f32 %v1775, %v1780
    %1784 = vrot.lane.b32.xlu0 %v1782, 32
    %v1785 = vpop.permute.xlu0 %1784
    %v1787 = vadd.f32 %v1777, %v1785
    %v1788 = vtanh.pop %v1787
    %1790 = vrot.lane.b32.xlu0 %v1788, 64
    %v1791 = vpop.permute.xlu0 %1790
    %v1793 = vmul.f32 %v1775, %v1791
    %1795 = vrot.lane.b32.xlu0 %v1698, 32
    %v1796 = vpop.permute.xlu0 %1795
    %v1797 = vsel %vm88, %v1796, 0
    %1799 = vmatprep.subr.mxu0 0.0
    %1800 = vmatpush1.msra.mxu0 %v82
    %1801 = vmatprep.subr.mxu0 0.0
    %1802 = vmatpush1.msra.mxu0 %v83
    %1803 = vmatprep.subr.mxu0 0.0
    %1804 = vmatpush1.msra.mxu0 %v84
    %1805 = vmatprep.subr.mxu0 0.0
    %1806 = vmatpush1.msra.mxu0 %v85
    %1807 = vmatprep.subr.mxu0 0.0
    %1808 = vmatpush1.msra.mxu0 0.0
    %1809 = vmatprep.subr.mxu0 0.0
    %1810 = vmatpush1.msra.mxu0 0.0
    %1811 = vmatprep.subr.mxu0 0.0
    %1812 = vmatpush1.msra.mxu0 0.0
    %1813 = vmatprep.subr.mxu0 0.0
    %1814 = vmatpush1.msra.mxu0 0.0
    %1815 = vmatprep.subr.mxu0 0.0
    %1816 = vmatpush1.msra.mxu0 0.0
    %1817 = vmatprep.subr.mxu0 0.0
    %1818 = vmatpush1.msra.mxu0 0.0
    %1819 = vmatprep.subr.mxu0 0.0
    %1820 = vmatpush1.msra.mxu0 0.0
    %1821 = vmatprep.subr.mxu0 0.0
    %1822 = vmatpush1.msra.mxu0 0.0
    %1823 = vmatprep.subr.mxu0 0.0
    %1824 = vmatpush1.msra.mxu0 0.0
    %1825 = vmatprep.subr.mxu0 0.0
    %1826 = vmatpush1.msra.mxu0 0.0
    %1827 = vmatprep.subr.mxu0 0.0
    %1828 = vmatpush1.msra.mxu0 0.0
    %1829 = vmatprep.subr.mxu0 0.0
    %1830 = vmatpush1.msra.mxu0 0.0
    %1831 = vmatprep.subr.mxu0 0.0
    %1832 = vmatpush1.msra.mxu0 0.0
    %1833 = vmatprep.subr.mxu0 0.0
    %1834 = vmatpush1.msra.mxu0 0.0
    %1835 = vmatprep.subr.mxu0 0.0
    %1836 = vmatpush1.msra.mxu0 0.0
    %1837 = vmatprep.subr.mxu0 0.0
    %1838 = vmatpush1.msra.mxu0 0.0
    %1839 = vmatprep.subr.mxu0 0.0
    %1840 = vmatpush1.msra.mxu0 0.0
    %1841 = vmatprep.subr.mxu0 0.0
    %1842 = vmatpush1.msra.mxu0 0.0
    %1843 = vmatprep.subr.mxu0 0.0
    %1844 = vmatpush1.msra.mxu0 0.0
    %1845 = vmatprep.subr.mxu0 0.0
    %1846 = vmatpush1.msra.mxu0 0.0
    %1847 = vmatprep.subr.mxu0 0.0
    %1848 = vmatpush1.msra.mxu0 0.0
    %1849 = vmatprep.subr.mxu0 0.0
    %1850 = vmatpush1.msra.mxu0 0.0
    %1851 = vmatprep.subr.mxu0 0.0
    %1852 = vmatpush1.msra.mxu0 0.0
    %1853 = vmatprep.subr.mxu0 0.0
    %1854 = vmatpush1.msra.mxu0 0.0
    %1855 = vmatprep.subr.mxu0 0.0
    %1856 = vmatpush1.msra.mxu0 0.0
    %1857 = vmatprep.subr.mxu0 0.0
    %1858 = vmatpush1.msra.mxu0 0.0
    %1859 = vmatprep.subr.mxu0 0.0
    %1860 = vmatpush1.msra.mxu0 0.0
    %1861 = vmatprep.subr.mxu0 0.0
    %1862 = vmatpush1.msra.mxu0 0.0
    %1863 = vmatprep.mubr.f32.mxu0 0.0
    %1864 = vmatmul.mubr.f32.gmra.mrb[0].mxu0 %v1797
    %v1865 = vpop.f32.mrb[0].mxu0
    %v1866 = vadd.f32 0.0, %v1865
    %v1867 = vpop.f32.mrb[0].mxu0
    %1868 = vdwg.mxu0
    %1870 = vrot.lane.b32.xlu0 %v1793, 32
    %v1871 = vpop.permute.xlu0 %1870
    %v1872 = vsel %vm88, %v1871, 0
    %1874 = vmatprep.subr.mxu0 0.0
    %1875 = vmatpush1.msra.mxu0 %v78
    %1876 = vmatprep.subr.mxu0 0.0
    %1877 = vmatpush1.msra.mxu0 %v79
    %1878 = vmatprep.subr.mxu0 0.0
    %1879 = vmatpush1.msra.mxu0 %v80
    %1880 = vmatprep.subr.mxu0 0.0
    %1881 = vmatpush1.msra.mxu0 %v81
    %1882 = vmatprep.subr.mxu0 0.0
    %1883 = vmatpush1.msra.mxu0 0.0
    %1884 = vmatprep.subr.mxu0 0.0
    %1885 = vmatpush1.msra.mxu0 0.0
    %1886 = vmatprep.subr.mxu0 0.0
    %1887 = vmatpush1.msra.mxu0 0.0
    %1888 = vmatprep.subr.mxu0 0.0
    %1889 = vmatpush1.msra.mxu0 0.0
    %1890 = vmatprep.subr.mxu0 0.0
    %1891 = vmatpush1.msra.mxu0 0.0
    %1892 = vmatprep.subr.mxu0 0.0
    %1893 = vmatpush1.msra.mxu0 0.0
    %1894 = vmatprep.subr.mxu0 0.0
    %1895 = vmatpush1.msra.mxu0 0.0
    %1896 = vmatprep.subr.mxu0 0.0
    %1897 = vmatpush1.msra.mxu0 0.0
    %1898 = vmatprep.subr.mxu0 0.0
    %1899 = vmatpush1.msra.mxu0 0.0
    %1900 = vmatprep.subr.mxu0 0.0
    %1901 = vmatpush1.msra.mxu0 0.0
    %1902 = vmatprep.subr.mxu0 0.0
    %1903 = vmatpush1.msra.mxu0 0.0
    %1904 = vmatprep.subr.mxu0 0.0
    %1905 = vmatpush1.msra.mxu0 0.0
    %1906 = vmatprep.subr.mxu0 0.0
    %1907 = vmatpush1.msra.mxu0 0.0
    %1908 = vmatprep.subr.mxu0 0.0
    %1909 = vmatpush1.msra.mxu0 0.0
    %1910 = vmatprep.subr.mxu0 0.0
    %1911 = vmatpush1.msra.mxu0 0.0
    %1912 = vmatprep.subr.mxu0 0.0
    %1913 = vmatpush1.msra.mxu0 0.0
    %1914 = vmatprep.subr.mxu0 0.0
    %1915 = vmatpush1.msra.mxu0 0.0
    %1916 = vmatprep.subr.mxu0 0.0
    %1917 = vmatpush1.msra.mxu0 0.0
    %1918 = vmatprep.subr.mxu0 0.0
    %1919 = vmatpush1.msra.mxu0 0.0
    %1920 = vmatprep.subr.mxu0 0.0
    %1921 = vmatpush1.msra.mxu0 0.0
    %1922 = vmatprep.subr.mxu0 0.0
    %1923 = vmatpush1.msra.mxu0 0.0
    %1924 = vmatprep.subr.mxu0 0.0
    %1925 = vmatpush1.msra.mxu0 0.0
    %1926 = vmatprep.subr.mxu0 0.0
    %1927 = vmatpush1.msra.mxu0 0.0
    %1928 = vmatprep.subr.mxu0 0.0
    %1929 = vmatpush1.msra.mxu0 0.0
    %1930 = vmatprep.subr.mxu0 0.0
    %1931 = vmatpush1.msra.mxu0 0.0
    %1932 = vmatprep.subr.mxu0 0.0
    %1933 = vmatpush1.msra.mxu0 0.0
    %1934 = vmatprep.subr.mxu0 0.0
    %1935 = vmatpush1.msra.mxu0 0.0
    %1936 = vmatprep.subr.mxu0 0.0
    %1937 = vmatpush1.msra.mxu0 0.0
    %1938 = vmatprep.mubr.f32.mxu0 0.0
    %1939 = vmatmul.mubr.f32.gmra.mrb[0].mxu0 %v1872
    %v1940 = vpop.f32.mrb[0].mxu0
    %v1941 = vadd.f32 %v1866, %v1940
    %v1942 = vpop.f32.mrb[0].mxu0
    %1943 = vdwg.mxu0
    %v1944 = vadd.f32 %v1941, %v334
    %v1945 = vmul.f32 %v1944, 0.5
    %v1946 = vtanh.pop %v1945
    %v1947 = vmul.f32 %v1946, 0.5
    %v1948 = vadd.f32 %v1947, 0.5
    %v1949 = vtanh.pop %v1944
    %v1950 = vmul.f32 %v1948, %v1692
    %1952 = vrot.lane.b32.xlu0 %v1949, 64
    %v1953 = vpop.permute.xlu0 %1952
    %v1955 = vmul.f32 %v1948, %v1953
    %1957 = vrot.lane.b32.xlu0 %v1955, 32
    %v1958 = vpop.permute.xlu0 %1957
    %v1960 = vadd.f32 %v1950, %v1958
    %v1961 = vtanh.pop %v1960
    %1963 = vrot.lane.b32.xlu0 %v1961, 64
    %v1964 = vpop.permute.xlu0 %1963
    %v1966 = vmul.f32 %v1948, %v1964
    %s1967 = scalar_lea.vmem [#allocation2], 14
    %v1968 = vld [vmem:[%s1967] sm:$0x3]
    %1969 = vmatprep.subr.mxu0 0.0
    %1970 = vmatpush1.msra.mxu0 %v74
    %1971 = vmatprep.subr.mxu0 0.0
    %1972 = vmatpush1.msra.mxu0 %v75
    %1973 = vmatprep.subr.mxu0 0.0
    %1974 = vmatpush1.msra.mxu0 %v76
    %1975 = vmatprep.subr.mxu0 0.0
    %1976 = vmatpush1.msra.mxu0 %v77
    %1977 = vmatprep.subr.mxu0 0.0
    %1978 = vmatpush1.msra.mxu0 0.0
    %1979 = vmatprep.subr.mxu0 0.0
    %1980 = vmatpush1.msra.mxu0 0.0
    %1981 = vmatprep.subr.mxu0 0.0
    %1982 = vmatpush1.msra.mxu0 0.0
    %1983 = vmatprep.subr.mxu0 0.0
    %1984 = vmatpush1.msra.mxu0 0.0
    %1985 = vmatprep.subr.mxu0 0.0
    %1986 = vmatpush1.msra.mxu0 0.0
    %1987 = vmatprep.subr.mxu0 0.0
    %1988 = vmatpush1.msra.mxu0 0.0
    %1989 = vmatprep.subr.mxu0 0.0
    %1990 = vmatpush1.msra.mxu0 0.0
    %1991 = vmatprep.subr.mxu0 0.0
    %1992 = vmatpush1.msra.mxu0 0.0
    %1993 = vmatprep.subr.mxu0 0.0
    %1994 = vmatpush1.msra.mxu0 0.0
    %1995 = vmatprep.subr.mxu0 0.0
    %1996 = vmatpush1.msra.mxu0 0.0
    %1997 = vmatprep.subr.mxu0 0.0
    %1998 = vmatpush1.msra.mxu0 0.0
    %1999 = vmatprep.subr.mxu0 0.0
    %2000 = vmatpush1.msra.mxu0 0.0
    %2001 = vmatprep.subr.mxu0 0.0
    %2002 = vmatpush1.msra.mxu0 0.0
    %2003 = vmatprep.subr.mxu0 0.0
    %2004 = vmatpush1.msra.mxu0 0.0
    %2005 = vmatprep.subr.mxu0 0.0
    %2006 = vmatpush1.msra.mxu0 0.0
    %2007 = vmatprep.subr.mxu0 0.0
    %2008 = vmatpush1.msra.mxu0 0.0
    %2009 = vmatprep.subr.mxu0 0.0
    %2010 = vmatpush1.msra.mxu0 0.0
    %2011 = vmatprep.subr.mxu0 0.0
    %2012 = vmatpush1.msra.mxu0 0.0
    %2013 = vmatprep.subr.mxu0 0.0
    %2014 = vmatpush1.msra.mxu0 0.0
    %2015 = vmatprep.subr.mxu0 0.0
    %2016 = vmatpush1.msra.mxu0 0.0
    %2017 = vmatprep.subr.mxu0 0.0
    %2018 = vmatpush1.msra.mxu0 0.0
    %2019 = vmatprep.subr.mxu0 0.0
    %2020 = vmatpush1.msra.mxu0 0.0
    %2021 = vmatprep.subr.mxu0 0.0
    %2022 = vmatpush1.msra.mxu0 0.0
    %2023 = vmatprep.subr.mxu0 0.0
    %2024 = vmatpush1.msra.mxu0 0.0
    %2025 = vmatprep.subr.mxu0 0.0
    %2026 = vmatpush1.msra.mxu0 0.0
    %2027 = vmatprep.subr.mxu0 0.0
    %2028 = vmatpush1.msra.mxu0 0.0
    %2029 = vmatprep.subr.mxu0 0.0
    %2030 = vmatpush1.msra.mxu0 0.0
    %2031 = vmatprep.subr.mxu0 0.0
    %2032 = vmatpush1.msra.mxu0 0.0
    %2033 = vmatprep.mubr.f32.mxu0 0.0
    %2034 = vmatmul.mubr.f32.gmra.mrb[0].mxu0 %v1872
    %v2035 = vpop.f32.mrb[0].mxu0
    %v2036 = vadd.f32 0.0, %v2035
    %v2037 = vpop.f32.mrb[0].mxu0
    %2038 = vdwg.mxu0
    %v2039 = vadd.f32 %v1968, %v2036
    %v2040 = vmul.f32 %v2039, 0.5
    %v2041 = vtanh.pop %v2040
    %v2042 = vmul.f32 %v2041, 0.5
    %v2043 = vadd.f32 %v2042, 0.5
    %v2044 = vtanh.pop %v2039
    %v2045 = vmul.f32 %v2043, %v1787
    %2047 = vrot.lane.b32.xlu0 %v2044, 64
    %v2048 = vpop.permute.xlu0 %2047
    %v2050 = vmul.f32 %v2043, %v2048
    %2052 = vrot.lane.b32.xlu0 %v2050, 32
    %v2053 = vpop.permute.xlu0 %2052
    %v2055 = vadd.f32 %v2045, %v2053
    %v2056 = vtanh.pop %v2055
    %2058 = vrot.lane.b32.xlu0 %v2056, 64
    %v2059 = vpop.permute.xlu0 %2058
    %v2061 = vmul.f32 %v2043, %v2059
    %2063 = vrot.lane.b32.xlu0 %v1966, 32
    %v2064 = vpop.permute.xlu0 %2063
    %v2065 = vsel %vm88, %v2064, 0
    %2067 = vmatprep.subr.mxu0 0.0
    %2068 = vmatpush1.msra.mxu0 %v82
    %2069 = vmatprep.subr.mxu0 0.0
    %2070 = vmatpush1.msra.mxu0 %v83
    %2071 = vmatprep.subr.mxu0 0.0
    %2072 = vmatpush1.msra.mxu0 %v84
    %2073 = vmatprep.subr.mxu0 0.0
    %2074 = vmatpush1.msra.mxu0 %v85
    %2075 = vmatprep.subr.mxu0 0.0
    %2076 = vmatpush1.msra.mxu0 0.0
    %2077 = vmatprep.subr.mxu0 0.0
    %2078 = vmatpush1.msra.mxu0 0.0
    %2079 = vmatprep.subr.mxu0 0.0
    %2080 = vmatpush1.msra.mxu0 0.0
    %2081 = vmatprep.subr.mxu0 0.0
    %2082 = vmatpush1.msra.mxu0 0.0
    %2083 = vmatprep.subr.mxu0 0.0
    %2084 = vmatpush1.msra.mxu0 0.0
    %2085 = vmatprep.subr.mxu0 0.0
    %2086 = vmatpush1.msra.mxu0 0.0
    %2087 = vmatprep.subr.mxu0 0.0
    %2088 = vmatpush1.msra.mxu0 0.0
    %2089 = vmatprep.subr.mxu0 0.0
    %2090 = vmatpush1.msra.mxu0 0.0
    %2091 = vmatprep.subr.mxu0 0.0
    %2092 = vmatpush1.msra.mxu0 0.0
    %2093 = vmatprep.subr.mxu0 0.0
    %2094 = vmatpush1.msra.mxu0 0.0
    %2095 = vmatprep.subr.mxu0 0.0
    %2096 = vmatpush1.msra.mxu0 0.0
    %2097 = vmatprep.subr.mxu0 0.0
    %2098 = vmatpush1.msra.mxu0 0.0
    %2099 = vmatprep.subr.mxu0 0.0
    %2100 = vmatpush1.msra.mxu0 0.0
    %2101 = vmatprep.subr.mxu0 0.0
    %2102 = vmatpush1.msra.mxu0 0.0
    %2103 = vmatprep.subr.mxu0 0.0
    %2104 = vmatpush1.msra.mxu0 0.0
    %2105 = vmatprep.subr.mxu0 0.0
    %2106 = vmatpush1.msra.mxu0 0.0
    %2107 = vmatprep.subr.mxu0 0.0
    %2108 = vmatpush1.msra.mxu0 0.0
    %2109 = vmatprep.subr.mxu0 0.0
    %2110 = vmatpush1.msra.mxu0 0.0
    %2111 = vmatprep.subr.mxu0 0.0
    %2112 = vmatpush1.msra.mxu0 0.0
    %2113 = vmatprep.subr.mxu0 0.0
    %2114 = vmatpush1.msra.mxu0 0.0
    %2115 = vmatprep.subr.mxu0 0.0
    %2116 = vmatpush1.msra.mxu0 0.0
    %2117 = vmatprep.subr.mxu0 0.0
    %2118 = vmatpush1.msra.mxu0 0.0
    %2119 = vmatprep.subr.mxu0 0.0
    %2120 = vmatpush1.msra.mxu0 0.0
    %2121 = vmatprep.subr.mxu0 0.0
    %2122 = vmatpush1.msra.mxu0 0.0
    %2123 = vmatprep.subr.mxu0 0.0
    %2124 = vmatpush1.msra.mxu0 0.0
    %2125 = vmatprep.subr.mxu0 0.0
    %2126 = vmatpush1.msra.mxu0 0.0
    %2127 = vmatprep.subr.mxu0 0.0
    %2128 = vmatpush1.msra.mxu0 0.0
    %2129 = vmatprep.subr.mxu0 0.0
    %2130 = vmatpush1.msra.mxu0 0.0
    %2131 = vmatprep.mubr.f32.mxu0 0.0
    %2132 = vmatmul.mubr.f32.gmra.mrb[0].mxu0 %v2065
    %v2133 = vpop.f32.mrb[0].mxu0
    %v2134 = vadd.f32 0.0, %v2133
    %v2135 = vpop.f32.mrb[0].mxu0
    %2136 = vdwg.mxu0
    %2138 = vrot.lane.b32.xlu0 %v2061, 32
    %v2139 = vpop.permute.xlu0 %2138
    %v2140 = vsel %vm88, %v2139, 0
    %2142 = vmatprep.subr.mxu0 0.0
    %2143 = vmatpush1.msra.mxu0 %v78
    %2144 = vmatprep.subr.mxu0 0.0
    %2145 = vmatpush1.msra.mxu0 %v79
    %2146 = vmatprep.subr.mxu0 0.0
    %2147 = vmatpush1.msra.mxu0 %v80
    %2148 = vmatprep.subr.mxu0 0.0
    %2149 = vmatpush1.msra.mxu0 %v81
    %2150 = vmatprep.subr.mxu0 0.0
    %2151 = vmatpush1.msra.mxu0 0.0
    %2152 = vmatprep.subr.mxu0 0.0
    %2153 = vmatpush1.msra.mxu0 0.0
    %2154 = vmatprep.subr.mxu0 0.0
    %2155 = vmatpush1.msra.mxu0 0.0
    %2156 = vmatprep.subr.mxu0 0.0
    %2157 = vmatpush1.msra.mxu0 0.0
    %2158 = vmatprep.subr.mxu0 0.0
    %2159 = vmatpush1.msra.mxu0 0.0
    %2160 = vmatprep.subr.mxu0 0.0
    %2161 = vmatpush1.msra.mxu0 0.0
    %2162 = vmatprep.subr.mxu0 0.0
    %2163 = vmatpush1.msra.mxu0 0.0
    %2164 = vmatprep.subr.mxu0 0.0
    %2165 = vmatpush1.msra.mxu0 0.0
    %2166 = vmatprep.subr.mxu0 0.0
    %2167 = vmatpush1.msra.mxu0 0.0
    %2168 = vmatprep.subr.mxu0 0.0
    %2169 = vmatpush1.msra.mxu0 0.0
    %2170 = vmatprep.subr.mxu0 0.0
    %2171 = vmatpush1.msra.mxu0 0.0
    %2172 = vmatprep.subr.mxu0 0.0
    %2173 = vmatpush1.msra.mxu0 0.0
    %2174 = vmatprep.subr.mxu0 0.0
    %2175 = vmatpush1.msra.mxu0 0.0
    %2176 = vmatprep.subr.mxu0 0.0
    %2177 = vmatpush1.msra.mxu0 0.0
    %2178 = vmatprep.subr.mxu0 0.0
    %2179 = vmatpush1.msra.mxu0 0.0
    %2180 = vmatprep.subr.mxu0 0.0
    %2181 = vmatpush1.msra.mxu0 0.0
    %2182 = vmatprep.subr.mxu0 0.0
    %2183 = vmatpush1.msra.mxu0 0.0
    %2184 = vmatprep.subr.mxu0 0.0
    %2185 = vmatpush1.msra.mxu0 0.0
    %2186 = vmatprep.subr.mxu0 0.0
    %2187 = vmatpush1.msra.mxu0 0.0
    %2188 = vmatprep.subr.mxu0 0.0
    %2189 = vmatpush1.msra.mxu0 0.0
    %2190 = vmatprep.subr.mxu0 0.0
    %2191 = vmatpush1.msra.mxu0 0.0
    %2192 = vmatprep.subr.mxu0 0.0
    %2193 = vmatpush1.msra.mxu0 0.0
    %2194 = vmatprep.subr.mxu0 0.0
    %2195 = vmatpush1.msra.mxu0 0.0
    %2196 = vmatprep.subr.mxu0 0.0
    %2197 = vmatpush1.msra.mxu0 0.0
    %2198 = vmatprep.subr.mxu0 0.0
    %2199 = vmatpush1.msra.mxu0 0.0
    %2200 = vmatprep.subr.mxu0 0.0
    %2201 = vmatpush1.msra.mxu0 0.0
    %2202 = vmatprep.subr.mxu0 0.0
    %2203 = vmatpush1.msra.mxu0 0.0
    %2204 = vmatprep.subr.mxu0 0.0
    %2205 = vmatpush1.msra.mxu0 0.0
    %2206 = vmatprep.mubr.f32.mxu0 0.0
    %2207 = vmatmul.mubr.f32.gmra.mrb[0].mxu0 %v2140
    %v2208 = vpop.f32.mrb[0].mxu0
    %v2209 = vadd.f32 %v2134, %v2208
    %v2210 = vpop.f32.mrb[0].mxu0
    %2211 = vdwg.mxu0
    %v2212 = vadd.f32 %v2209, %v334
    %v2213 = vmul.f32 %v2212, 0.5
    %v2214 = vtanh.pop %v2213
    %v2215 = vmul.f32 %v2214, 0.5
    %v2216 = vadd.f32 %v2215, 0.5
    %v2217 = vtanh.pop %v2212
    %v2218 = vmul.f32 %v2216, %v1960
    %2220 = vrot.lane.b32.xlu0 %v2217, 64
    %v2221 = vpop.permute.xlu0 %2220
    %v2223 = vmul.f32 %v2216, %v2221
    %2225 = vrot.lane.b32.xlu0 %v2223, 32
    %v2226 = vpop.permute.xlu0 %2225
    %v2228 = vadd.f32 %v2218, %v2226
    %v2229 = vtanh.pop %v2228
    %2231 = vrot.lane.b32.xlu0 %v2229, 64
    %v2232 = vpop.permute.xlu0 %2231
    %v2234 = vmul.f32 %v2216, %v2232
    %v2235 = vld [vmem:[%s5] sm:$0x3]
    %2237 = vrot.lane.b32.xlu0 %v2235, 96
    %v2238 = vpop.permute.xlu0 %2237
    %v2240 = vmul.f32 %v2234, %v2238
    %v2241 = vld [vmem:[%s6] sm:$0xff]
    %v2242 = vld [vmem:[%s6 + $0x8] sm:$0xff]
    %v2243 = vld [vmem:[%s6 + $0x10] sm:$0xff]
    %v2244 = vld [vmem:[%s6 + $0x18] sm:$0xff]
    %v2245 = vld [vmem:[%s7] sm:$0x1]
    %v2247 = vlaneseq
    %v2248 = vshrl.u32 %v2247, 7
    %v2249 = vsub.s32 0, %v2248
    %v2250 = vrot.slane %v2245, %v2249
    %2253 = vrot.lane.b32.xlu0 %v2240, 32
    %v2254 = vpop.permute.xlu0 %2253
    %v2255 = vsel %vm88, %v2254, 0
    %2257 = vmatprep.subr.mxu0 0.0
    %2258 = vmatpush1.msra.mxu0 %v2241
    %2259 = vmatprep.subr.mxu0 0.0
    %2260 = vmatpush1.msra.mxu0 %v2242
    %2261 = vmatprep.subr.mxu0 0.0
    %2262 = vmatpush1.msra.mxu0 %v2243
    %2263 = vmatprep.subr.mxu0 0.0
    %2264 = vmatpush1.msra.mxu0 %v2244
    %2265 = vmatprep.subr.mxu0 0.0
    %2266 = vmatpush1.msra.mxu0 0.0
    %2267 = vmatprep.subr.mxu0 0.0
    %2268 = vmatpush1.msra.mxu0 0.0
    %2269 = vmatprep.subr.mxu0 0.0
    %2270 = vmatpush1.msra.mxu0 0.0
    %2271 = vmatprep.subr.mxu0 0.0
    %2272 = vmatpush1.msra.mxu0 0.0
    %2273 = vmatprep.subr.mxu0 0.0
    %2274 = vmatpush1.msra.mxu0 0.0
    %2275 = vmatprep.subr.mxu0 0.0
    %2276 = vmatpush1.msra.mxu0 0.0
    %2277 = vmatprep.subr.mxu0 0.0
    %2278 = vmatpush1.msra.mxu0 0.0
    %2279 = vmatprep.subr.mxu0 0.0
    %2280 = vmatpush1.msra.mxu0 0.0
    %2281 = vmatprep.subr.mxu0 0.0
    %2282 = vmatpush1.msra.mxu0 0.0
    %2283 = vmatprep.subr.mxu0 0.0
    %2284 = vmatpush1.msra.mxu0 0.0
    %2285 = vmatprep.subr.mxu0 0.0
    %2286 = vmatpush1.msra.mxu0 0.0
    %2287 = vmatprep.subr.mxu0 0.0
    %2288 = vmatpush1.msra.mxu0 0.0
    %2289 = vmatprep.subr.mxu0 0.0
    %2290 = vmatpush1.msra.mxu0 0.0
    %2291 = vmatprep.subr.mxu0 0.0
    %2292 = vmatpush1.msra.mxu0 0.0
    %2293 = vmatprep.subr.mxu0 0.0
    %2294 = vmatpush1.msra.mxu0 0.0
    %2295 = vmatprep.subr.mxu0 0.0
    %2296 = vmatpush1.msra.mxu0 0.0
    %2297 = vmatprep.subr.mxu0 0.0
    %2298 = vmatpush1.msra.mxu0 0.0
    %2299 = vmatprep.subr.mxu0 0.0
    %2300 = vmatpush1.msra.mxu0 0.0
    %2301 = vmatprep.subr.mxu0 0.0
    %2302 = vmatpush1.msra.mxu0 0.0
    %2303 = vmatprep.subr.mxu0 0.0
    %2304 = vmatpush1.msra.mxu0 0.0
    %2305 = vmatprep.subr.mxu0 0.0
    %2306 = vmatpush1.msra.mxu0 0.0
    %2307 = vmatprep.subr.mxu0 0.0
    %2308 = vmatpush1.msra.mxu0 0.0
    %2309 = vmatprep.subr.mxu0 0.0
    %2310 = vmatpush1.msra.mxu0 0.0
    %2311 = vmatprep.subr.mxu0 0.0
    %2312 = vmatpush1.msra.mxu0 0.0
    %2313 = vmatprep.subr.mxu0 0.0
    %2314 = vmatpush1.msra.mxu0 0.0
    %2315 = vmatprep.subr.mxu0 0.0
    %2316 = vmatpush1.msra.mxu0 0.0
    %2317 = vmatprep.subr.mxu0 0.0
    %2318 = vmatpush1.msra.mxu0 0.0
    %2319 = vmatprep.subr.mxu0 0.0
    %2320 = vmatpush1.msra.mxu0 0.0
    %2321 = vmatprep.mubr.f32.mxu0 0.0
    %2322 = vmatmul.mubr.f32.gmra.mrb[0].mxu0 %v2255
    %v2323 = vpop.f32.mrb[0].mxu0
    %v2324 = vadd.f32 %v2250, %v2323
    %v2325 = vpop.f32.mrb[0].mxu0
    %2326 = vdwg.mxu0
    %vm2327 = vcmask 25600
    %2328 = vst.msk [vmem:[#allocation9] sm:$0x3] %vm2327, %v2324
    %v2329 = vsel %vm2327, %v2324, -inf
    %2330 = vmax.xlane.f32.xlu0 %v2329
    %v2331 = vpop.xlane.xlu0 %2330
    %v2332 = vsub.f32 %v2324, %v2331
    %v2333 = vmul.f32 %v2332, 1.442695
    %v2334 = vpow.pop %v2333
    %v2335 = vsel %vm2327, %v2334, 0.0
    %2336 = vadd.xlane.f32.xlu0 %v2335
    %v2337 = vpop.xlane.xlu0 %2336
    %v2338 = vrcp.pop %v2337
    %v2339 = vmul.f32 %v2334, %v2338
    %2340 = vst.msk [vmem:[#allocation8] sm:$0x3] %vm2327, %v2339
    // Predicated region
    $region46: #{tpu_custom_call.1} parent=1 // pred_check
      _
    $region47: #{tpu_custom_call.1} parent=1 // pred_check_branch
      %2342 = sbr.rel (0) target = $region49
    $region48: #{tpu_custom_call.1} parent=1 // pred_region
      %s2344 = ssub.s32 32, 32
      %2345 = vsyncadd [#allocation4], %s2344
      %s2347 = sshll.u32 [#allocation8], 4
      %s2348 = int_to_ptr.vmem [resolvable:$true] %s2347
      %2350 = dma.vmem_to_hbm [thread:$0]  %s2348, 32, %s8, [#allocation4]
    $region49: #{tpu_custom_call.1} parent=1 // pred_fallthru
      _
    // Predicated region
    $region50: #{tpu_custom_call.1} parent=1 // pred_check
      _
    $region51: #{tpu_custom_call.1} parent=1 // pred_check_branch
      %2352 = sbr.rel (0) target = $region53
    $region52: #{tpu_custom_call.1} parent=1 // pred_region
      %s2354 = ssub.s32 32, 32
      %2355 = vsyncadd [#allocation10], %s2354
      %s2357 = sshll.u32 [#allocation9], 4
      %s2358 = int_to_ptr.vmem [resolvable:$true] %s2357
      %2360 = dma.vmem_to_hbm [thread:$0]  %s2358, 32, %s9, [#allocation10]
    $region53: #{tpu_custom_call.1} parent=1 // pred_fallthru
      _
    // Predicated region
    $region54: #{tpu_custom_call.1} parent=1 // pred_check
      _
    $region55: #{tpu_custom_call.1} parent=1 // pred_check_branch
      %2362 = sbr.rel (0) target = $region57
    $region56: #{tpu_custom_call.1} parent=1 // pred_region
      %2363 = dma.done [#allocation4], 32
    $region57: #{tpu_custom_call.1} parent=1 // pred_fallthru
      _
    // Predicated region
    $region58: #{tpu_custom_call.1} parent=1 // pred_check
      _
    $region59: #{tpu_custom_call.1} parent=1 // pred_check_branch
      %2365 = sbr.rel (0) target = $region61
    $region60: #{tpu_custom_call.1} parent=1 // pred_region
      %2366 = dma.done [#allocation10], 32
    $region61: #{tpu_custom_call.1} parent=1 // pred_fallthru
      _
    %2367 = vsyncpa [#allocation3], 1
    %2368 = vsyncpa [#allocation6], 1
    %2369 = vsyncpa [#allocation4], 1
    %2370 = vsyncpa [#allocation10], 1

</llo_original>
